<compile_context>
chip_gen: v7x
topology: tpu7x:2x2x1
jax: 0.10.0
libtpu: 0.0.40
codegen_flags: <defaults>
</compile_context>

<pallas_src>
import jax
import jax.numpy as jnp
from jax.experimental import pallas as pl
from jax.experimental.pallas import tpu as pltpu

IN_DIM = 28 * 28   # 784
ENC_DIM = 32
ENC_PAD = 128      # lane-dense bottleneck (zero-padded)
OUT_PAD = 896      # 7 * 128, lane-dense decoder output (zero-padded)

# Padded layer dims (in, out); weights are stored as [in_features, out_features].
_LAYER_DIMS = [
    (IN_DIM, 512),
    (512, 256),
    (256, ENC_PAD),
    (ENC_PAD, 256),
    (256, 512),
    (512, OUT_PAD),
]


def ae_kernel(
    x_ref,
    w1_ref, s1_ref, b1_ref,
    w2_ref, s2_ref, b2_ref,
    w3_ref, s3_ref, b3_ref,
    w4_ref, s4_ref, b4_ref,
    w5_ref, s5_ref, b5_ref,
    w6_ref, s6_ref, b6_ref,
    enc_ref, dec_ref,
):
    # MXU consumes bf16 operands with f32 accumulation. int8 weights are only a
    # storage/DMA format; the int8 values (<=127) cast to bf16 exactly.
    x = x_ref[...].astype(jnp.bfloat16)

    def dense(h, w_ref, s_ref, b_ref):
        y = jnp.dot(h, w_ref[...].astype(jnp.bfloat16),
                    preferred_element_type=jnp.float32)
        # Per-output-channel dequant scale fused after the matmul + f32 bias.
        return y * s_ref[...] + b_ref[...]

    # ---- encoder: Linear(784,512) -> ReLU -> Linear(512,256) -> ReLU -> Linear(256,32[pad 128])
    h = jnp.maximum(dense(x, w1_ref, s1_ref, b1_ref), 0.0).astype(jnp.bfloat16)
    h = jnp.maximum(dense(h, w2_ref, s2_ref, b2_ref), 0.0).astype(jnp.bfloat16)
    enc = dense(h, w3_ref, s3_ref, b3_ref)
    enc_ref[...] = enc.astype(enc_ref.dtype)

    # ---- decoder: Linear(32[pad 128],256) -> ReLU -> Linear(256,512) -> ReLU -> Linear(512,784[pad 896])
    h = jnp.maximum(dense(enc.astype(jnp.bfloat16), w4_ref, s4_ref, b4_ref),
                    0.0).astype(jnp.bfloat16)
    h = jnp.maximum(dense(h, w5_ref, s5_ref, b5_ref), 0.0).astype(jnp.bfloat16)
    dec = dense(h, w6_ref, s6_ref, b6_ref)
    dec_ref[...] = dec.astype(dec_ref.dtype)


def prepare_params(params):
    """One-time prep:
      * zero-pad bottleneck (32->128) and decoder output (784->896) so the
        kernel's output slabs are lane-dense (zero padding keeps math identical),
      * weight-only int8 quantization with per-output-channel f32 scales,
      * biases kept in f32.
    Returns a flat list [w1_q, s1, b1, w2_q, s2, b2, ...]."""
    (w1, b1), (w2, b2), (w3, b3), (w4, b4), (w5, b5), (w6, b6) = params
    w3 = jnp.pad(w3, ((0, 0), (0, ENC_PAD - ENC_DIM)))
    b3 = jnp.pad(b3, ((0, 0), (0, ENC_PAD - ENC_DIM)))
    w4 = jnp.pad(w4, ((0, ENC_PAD - ENC_DIM), (0, 0)))
    w6 = jnp.pad(w6, ((0, 0), (0, OUT_PAD - IN_DIM)))
    b6 = jnp.pad(b6, ((0, 0), (0, OUT_PAD - IN_DIM)))
    flat = []
    for w, b in [(w1, b1), (w2, b2), (w3, b3), (w4, b4), (w5, b5), (w6, b6)]:
        amax = jnp.max(jnp.abs(w), axis=0, keepdims=True)            # (1, fout)
        scale = jnp.where(amax > 0, amax / 127.0, 1.0).astype(jnp.float32)
        w_q = jnp.clip(jnp.round(w / scale), -127.0, 127.0).astype(jnp.int8)
        flat += [w_q, scale, b.astype(jnp.float32)]
    return flat


def ae_forward(x, prepared_params, *, block_batch=None,
               out_dtype=jnp.bfloat16, slice_outputs=True):
    """x: [B, 784] float32. prepared_params: output of prepare_params().

    Returns (encoded, decoded). With slice_outputs=True the outputs are
    [B, 32] / [B, 784]; with False the padded lane-dense slabs
    [B_pad, 128] / [B_pad, 896] are returned (padded rows are NOT zero —
    downstream reductions must mask/slice them)."""
    B = x.shape[0]
    if block_batch is None:
        # Round the batch tile up to the f32 sublane height (8) for small/mid
        # batches; cap at 256 so VMEM stays small and large batches keep >= 2
        # grid steps (v7x megacore gets work on both TensorCores).
        nb_target = pl.cdiv(B, 256)
        block_batch = max(8, min(256, pl.cdiv(pl.cdiv(B, nb_target), 8) * 8))
    tb = block_batch
    b_pad = pl.cdiv(B, tb) * tb
    if b_pad != B:
        x = jnp.pad(x, ((0, b_pad - B), (0, 0)))
    nb = b_pad // tb

    # Activations blocked on batch (double-buffered by default); weights,
    # scales and biases are full-array, constant block index (VMEM-resident
    # across all batch tiles) and single-buffered since they never change.
    act_in_spec = pl.BlockSpec((tb, IN_DIM), lambda i: (i, 0))
    wb_specs = []
    for (fin, fout) in _LAYER_DIMS:
        wb_specs.append(pl.BlockSpec((fin, fout), lambda i: (0, 0),
                                     pipeline_mode=pl.Buffered(1)))   # int8 W
        wb_specs.append(pl.BlockSpec((1, fout), lambda i: (0, 0),
                                     pipeline_mode=pl.Buffered(1)))   # f32 scale
        wb_specs.append(pl.BlockSpec((1, fout), lambda i: (0, 0),
                                     pipeline_mode=pl.Buffered(1)))   # f32 bias
    enc_spec = pl.BlockSpec((tb, ENC_PAD), lambda i: (i, 0))
    dec_spec = pl.BlockSpec((tb, OUT_PAD), lambda i: (i, 0))

    out_bytes = jnp.dtype(out_dtype).itemsize
    flops = 2 * b_pad * sum(fi * fo for fi, fo in _LAYER_DIMS)
    weight_bytes = sum(fi * fo * 1 + 2 * fo * 4 for fi, fo in _LAYER_DIMS)
    act_bytes = b_pad * (IN_DIM * 4 + (ENC_PAD + OUT_PAD) * out_bytes)
    cost = pl.CostEstimate(flops=flops, transcendentals=0,
                           bytes_accessed=weight_bytes + act_bytes)

    enc, dec = pl.pallas_call(
        ae_kernel,
        out_shape=(
            jax.ShapeDtypeStruct((b_pad, ENC_PAD), out_dtype),
            jax.ShapeDtypeStruct((b_pad, OUT_PAD), out_dtype),
        ),
        grid_spec=pltpu.PrefetchScalarGridSpec(
            num_scalar_prefetch=0,
            grid=(nb,),
            in_specs=[act_in_spec] + wb_specs,
            out_specs=(enc_spec, dec_spec),
        ),
        compiler_params=pltpu.CompilerParams(
            dimension_semantics=("parallel",),
            vmem_limit_bytes=32 * 1024 * 1024,
        ),
        cost_estimate=cost,
    )(x, *prepared_params)

    if slice_outputs:
        return enc[:B, :ENC_DIM], dec[:B, :IN_DIM]
    return enc, dec


def init_params(key):
    """Deterministic init mimicking PyTorch Linear default (uniform +-1/sqrt(fan_in)).
    Weights stored as [in_features, out_features] (pre-transposed)."""
    dims = [(IN_DIM, 512), (512, 256), (256, ENC_DIM),
            (ENC_DIM, 256), (256, 512), (512, IN_DIM)]
    params = []
    for (fan_in, fan_out) in dims:
        key, kw, kb = jax.random.split(key, 3)
        bound = 1.0 / jnp.sqrt(float(fan_in))
        w = jax.random.uniform(kw, (fan_in, fan_out), jnp.float32, -bound, bound)
        b = jax.random.uniform(kb, (1, fan_out), jnp.float32, -bound, bound)
        params.append((w, b))
    return params


def ae_reference(x, prepared_params, out_dtype=jnp.bfloat16):
    """Pure-JAX reference mirroring the kernel's int8-weight / bf16-operand /
    f32-accumulation math."""
    p = prepared_params

    def dense(h, wq, s, b, relu):
        y = jnp.dot(h.astype(jnp.bfloat16), wq.astype(jnp.bfloat16),
                    preferred_element_type=jnp.float32) * s + b
        return jnp.maximum(y, 0.0) if relu else y

    h = dense(x, p[0], p[1], p[2], True)
    h = dense(h, p[3], p[4], p[5], True)
    enc = dense(h, p[6], p[7], p[8], False)
    h = dense(enc.astype(jnp.bfloat16), p[9], p[10], p[11], True)
    h = dense(h, p[12], p[13], p[14], True)
    dec = dense(h, p[15], p[16], p[17], False)
    return (enc[:, :ENC_DIM].astype(out_dtype),
            dec[:, :IN_DIM].astype(out_dtype))


if __name__ == "__main__":
    key = jax.random.PRNGKey(0)
    key, kx = jax.random.split(key)

    batch = 2
    x = jax.random.uniform(kx, (batch, IN_DIM), jnp.float32)  # flattened 28x28 images

    params = init_params(key)
    prepared = prepare_params(params)

    enc, dec = ae_forward(x, prepared)
    enc = jax.block_until_ready(enc)
    dec = jax.block_until_ready(dec)

    enc_ref, dec_ref = ae_reference(x, prepared)
    assert enc.shape == (batch, ENC_DIM) and dec.shape == (batch, IN_DIM)
    assert jnp.allclose(enc.astype(jnp.float32), enc_ref.astype(jnp.float32),
                        atol=1e-2, rtol=1e-2)
    assert jnp.allclose(dec.astype(jnp.float32), dec_ref.astype(jnp.float32),
                        atol=1e-2, rtol=1e-2)

    print("KERNEL_OK")
</pallas_src>

<mosaic_0001>
module attributes {stable_mosaic.version = 11 : i64} {
  func.func @ae_kernel(%arg0: i32, %arg1: memref<8x784xf32, #tpu.memory_space<vmem>>, %arg2: memref<784x512xi8, #tpu.memory_space<vmem>>, %arg3: memref<1x512xf32, #tpu.memory_space<vmem>>, %arg4: memref<1x512xf32, #tpu.memory_space<vmem>>, %arg5: memref<512x256xi8, #tpu.memory_space<vmem>>, %arg6: memref<1x256xf32, #tpu.memory_space<vmem>>, %arg7: memref<1x256xf32, #tpu.memory_space<vmem>>, %arg8: memref<256x128xi8, #tpu.memory_space<vmem>>, %arg9: memref<1x128xf32, #tpu.memory_space<vmem>>, %arg10: memref<1x128xf32, #tpu.memory_space<vmem>>, %arg11: memref<128x256xi8, #tpu.memory_space<vmem>>, %arg12: memref<1x256xf32, #tpu.memory_space<vmem>>, %arg13: memref<1x256xf32, #tpu.memory_space<vmem>>, %arg14: memref<256x512xi8, #tpu.memory_space<vmem>>, %arg15: memref<1x512xf32, #tpu.memory_space<vmem>>, %arg16: memref<1x512xf32, #tpu.memory_space<vmem>>, %arg17: memref<512x896xi8, #tpu.memory_space<vmem>>, %arg18: memref<1x896xf32, #tpu.memory_space<vmem>>, %arg19: memref<1x896xf32, #tpu.memory_space<vmem>>, %arg20: memref<8x128xbf16, #tpu.memory_space<vmem>>, %arg21: memref<8x896xbf16, #tpu.memory_space<vmem>>) attributes {dimension_semantics = [#tpu.dimension_semantics<parallel>], iteration_bounds = array<i64: 1>, scalar_prefetch = 0 : i64, scratch_operands = 0 : i64, tpu.core_type = #tpu.core_type<tc>, window_params = [{transform_indices = @transform_0, window_bounds = array<i64: 8, 784>}, {pipeline_mode = #tpu.pipeline_mode<synchronous>, transform_indices = @transform_1, window_bounds = array<i64: 784, 512>}, {pipeline_mode = #tpu.pipeline_mode<synchronous>, transform_indices = @transform_2, window_bounds = array<i64: 1, 512>}, {pipeline_mode = #tpu.pipeline_mode<synchronous>, transform_indices = @transform_3, window_bounds = array<i64: 1, 512>}, {pipeline_mode = #tpu.pipeline_mode<synchronous>, transform_indices = @transform_4, window_bounds = array<i64: 512, 256>}, {pipeline_mode = #tpu.pipeline_mode<synchronous>, transform_indices = @transform_5, window_bounds = array<i64: 1, 256>}, {pipeline_mode = #tpu.pipeline_mode<synchronous>, transform_indices = @transform_6, window_bounds = array<i64: 1, 256>}, {pipeline_mode = #tpu.pipeline_mode<synchronous>, transform_indices = @transform_7, window_bounds = array<i64: 256, 128>}, {pipeline_mode = #tpu.pipeline_mode<synchronous>, transform_indices = @transform_8, window_bounds = array<i64: 1, 128>}, {pipeline_mode = #tpu.pipeline_mode<synchronous>, transform_indices = @transform_9, window_bounds = array<i64: 1, 128>}, {pipeline_mode = #tpu.pipeline_mode<synchronous>, transform_indices = @transform_10, window_bounds = array<i64: 128, 256>}, {pipeline_mode = #tpu.pipeline_mode<synchronous>, transform_indices = @transform_11, window_bounds = array<i64: 1, 256>}, {pipeline_mode = #tpu.pipeline_mode<synchronous>, transform_indices = @transform_12, window_bounds = array<i64: 1, 256>}, {pipeline_mode = #tpu.pipeline_mode<synchronous>, transform_indices = @transform_13, window_bounds = array<i64: 256, 512>}, {pipeline_mode = #tpu.pipeline_mode<synchronous>, transform_indices = @transform_14, window_bounds = array<i64: 1, 512>}, {pipeline_mode = #tpu.pipeline_mode<synchronous>, transform_indices = @transform_15, window_bounds = array<i64: 1, 512>}, {pipeline_mode = #tpu.pipeline_mode<synchronous>, transform_indices = @transform_16, window_bounds = array<i64: 512, 896>}, {pipeline_mode = #tpu.pipeline_mode<synchronous>, transform_indices = @transform_17, window_bounds = array<i64: 1, 896>}, {pipeline_mode = #tpu.pipeline_mode<synchronous>, transform_indices = @transform_18, window_bounds = array<i64: 1, 896>}, {transform_indices = @transform_19, window_bounds = array<i64: 8, 128>}, {transform_indices = @transform_20, window_bounds = array<i64: 8, 896>}]} {
    %c0 = arith.constant 0 : index
    %c0_0 = arith.constant 0 : index
    %0 = vector.load %arg1[%c0, %c0_0] : memref<8x784xf32, #tpu.memory_space<vmem>>, vector<8x784xf32>
    %1 = arith.truncf %0 : vector<8x784xf32> to vector<8x784xbf16>
    %c0_1 = arith.constant 0 : index
    %c0_2 = arith.constant 0 : index
    %2 = vector.load %arg2[%c0_1, %c0_2] : memref<784x512xi8, #tpu.memory_space<vmem>>, vector<784x512xi8>
    %3 = arith.sitofp %2 : vector<784x512xi8> to vector<784x512xbf16>
    %cst = arith.constant dense<0.000000e+00> : vector<8x512xf32>
    %4 = tpu.matmul %1, %3, %cst {dimension_numbers = #tpu.dot_dimension_numbers<[1], [0], [0], [1], [0, 0, 1, 1], [], []>} : vector<8x784xbf16>, vector<784x512xbf16>, vector<8x512xf32> -> vector<8x512xf32>
    %c0_3 = arith.constant 0 : index
    %c0_4 = arith.constant 0 : index
    %5 = vector.load %arg3[%c0_3, %c0_4] : memref<1x512xf32, #tpu.memory_space<vmem>>, vector<1x512xf32>
    %6 = vector.broadcast %5 : vector<1x512xf32> to vector<8x512xf32>
    %7 = arith.mulf %4, %6 : vector<8x512xf32>
    %c0_5 = arith.constant 0 : index
    %c0_6 = arith.constant 0 : index
    %8 = vector.load %arg4[%c0_5, %c0_6] : memref<1x512xf32, #tpu.memory_space<vmem>>, vector<1x512xf32>
    %9 = vector.broadcast %8 : vector<1x512xf32> to vector<8x512xf32>
    %10 = arith.addf %7, %9 : vector<8x512xf32>
    %cst_7 = arith.constant 0.000000e+00 : f32
    %11 = vector.broadcast %cst_7 : f32 to vector<8x512xf32>
    %12 = arith.maximumf %10, %11 : vector<8x512xf32>
    %13 = arith.truncf %12 : vector<8x512xf32> to vector<8x512xbf16>
    %c0_8 = arith.constant 0 : index
    %c0_9 = arith.constant 0 : index
    %14 = vector.load %arg5[%c0_8, %c0_9] : memref<512x256xi8, #tpu.memory_space<vmem>>, vector<512x256xi8>
    %15 = arith.sitofp %14 : vector<512x256xi8> to vector<512x256xbf16>
    %cst_10 = arith.constant dense<0.000000e+00> : vector<8x256xf32>
    %16 = tpu.matmul %13, %15, %cst_10 {dimension_numbers = #tpu.dot_dimension_numbers<[1], [0], [0], [1], [0, 0, 1, 1], [], []>} : vector<8x512xbf16>, vector<512x256xbf16>, vector<8x256xf32> -> vector<8x256xf32>
    %c0_11 = arith.constant 0 : index
    %c0_12 = arith.constant 0 : index
    %17 = vector.load %arg6[%c0_11, %c0_12] : memref<1x256xf32, #tpu.memory_space<vmem>>, vector<1x256xf32>
    %18 = vector.broadcast %17 : vector<1x256xf32> to vector<8x256xf32>
    %19 = arith.mulf %16, %18 : vector<8x256xf32>
    %c0_13 = arith.constant 0 : index
    %c0_14 = arith.constant 0 : index
    %20 = vector.load %arg7[%c0_13, %c0_14] : memref<1x256xf32, #tpu.memory_space<vmem>>, vector<1x256xf32>
    %21 = vector.broadcast %20 : vector<1x256xf32> to vector<8x256xf32>
    %22 = arith.addf %19, %21 : vector<8x256xf32>
    %cst_15 = arith.constant 0.000000e+00 : f32
    %23 = vector.broadcast %cst_15 : f32 to vector<8x256xf32>
    %24 = arith.maximumf %22, %23 : vector<8x256xf32>
    %25 = arith.truncf %24 : vector<8x256xf32> to vector<8x256xbf16>
    %c0_16 = arith.constant 0 : index
    %c0_17 = arith.constant 0 : index
    %26 = vector.load %arg8[%c0_16, %c0_17] : memref<256x128xi8, #tpu.memory_space<vmem>>, vector<256x128xi8>
    %27 = arith.sitofp %26 : vector<256x128xi8> to vector<256x128xbf16>
    %cst_18 = arith.constant dense<0.000000e+00> : vector<8x128xf32>
    %28 = tpu.matmul %25, %27, %cst_18 {dimension_numbers = #tpu.dot_dimension_numbers<[1], [0], [0], [1], [0, 0, 1, 1], [], []>} : vector<8x256xbf16>, vector<256x128xbf16>, vector<8x128xf32> -> vector<8x128xf32>
    %c0_19 = arith.constant 0 : index
    %c0_20 = arith.constant 0 : index
    %29 = vector.load %arg9[%c0_19, %c0_20] : memref<1x128xf32, #tpu.memory_space<vmem>>, vector<1x128xf32>
    %30 = vector.broadcast %29 : vector<1x128xf32> to vector<8x128xf32>
    %31 = arith.mulf %28, %30 : vector<8x128xf32>
    %c0_21 = arith.constant 0 : index
    %c0_22 = arith.constant 0 : index
    %32 = vector.load %arg10[%c0_21, %c0_22] : memref<1x128xf32, #tpu.memory_space<vmem>>, vector<1x128xf32>
    %33 = vector.broadcast %32 : vector<1x128xf32> to vector<8x128xf32>
    %34 = arith.addf %31, %33 : vector<8x128xf32>
    %35 = arith.truncf %34 : vector<8x128xf32> to vector<8x128xbf16>
    %c0_23 = arith.constant 0 : index
    %c0_24 = arith.constant 0 : index
    %36 = vector.load %arg20[%c0_23, %c0_24] : memref<8x128xbf16, #tpu.memory_space<vmem>>, vector<8x128xbf16>
    tpu.vector_store %arg20[%c0_23, %c0_24], %35 {strides = array<i32>} : memref<8x128xbf16, #tpu.memory_space<vmem>>, vector<8x128xbf16>,
    %37 = arith.truncf %34 : vector<8x128xf32> to vector<8x128xbf16>
    %c0_25 = arith.constant 0 : index
    %c0_26 = arith.constant 0 : index
    %38 = vector.load %arg11[%c0_25, %c0_26] : memref<128x256xi8, #tpu.memory_space<vmem>>, vector<128x256xi8>
    %39 = arith.sitofp %38 : vector<128x256xi8> to vector<128x256xbf16>
    %cst_27 = arith.constant dense<0.000000e+00> : vector<8x256xf32>
    %40 = tpu.matmul %37, %39, %cst_27 {dimension_numbers = #tpu.dot_dimension_numbers<[1], [0], [0], [1], [0, 0, 1, 1], [], []>} : vector<8x128xbf16>, vector<128x256xbf16>, vector<8x256xf32> -> vector<8x256xf32>
    %c0_28 = arith.constant 0 : index
    %c0_29 = arith.constant 0 : index
    %41 = vector.load %arg12[%c0_28, %c0_29] : memref<1x256xf32, #tpu.memory_space<vmem>>, vector<1x256xf32>
    %42 = vector.broadcast %41 : vector<1x256xf32> to vector<8x256xf32>
    %43 = arith.mulf %40, %42 : vector<8x256xf32>
    %c0_30 = arith.constant 0 : index
    %c0_31 = arith.constant 0 : index
    %44 = vector.load %arg13[%c0_30, %c0_31] : memref<1x256xf32, #tpu.memory_space<vmem>>, vector<1x256xf32>
    %45 = vector.broadcast %44 : vector<1x256xf32> to vector<8x256xf32>
    %46 = arith.addf %43, %45 : vector<8x256xf32>
    %cst_32 = arith.constant 0.000000e+00 : f32
    %47 = vector.broadcast %cst_32 : f32 to vector<8x256xf32>
    %48 = arith.maximumf %46, %47 : vector<8x256xf32>
    %49 = arith.truncf %48 : vector<8x256xf32> to vector<8x256xbf16>
    %c0_33 = arith.constant 0 : index
    %c0_34 = arith.constant 0 : index
    %50 = vector.load %arg14[%c0_33, %c0_34] : memref<256x512xi8, #tpu.memory_space<vmem>>, vector<256x512xi8>
    %51 = arith.sitofp %50 : vector<256x512xi8> to vector<256x512xbf16>
    %cst_35 = arith.constant dense<0.000000e+00> : vector<8x512xf32>
    %52 = tpu.matmul %49, %51, %cst_35 {dimension_numbers = #tpu.dot_dimension_numbers<[1], [0], [0], [1], [0, 0, 1, 1], [], []>} : vector<8x256xbf16>, vector<256x512xbf16>, vector<8x512xf32> -> vector<8x512xf32>
    %c0_36 = arith.constant 0 : index
    %c0_37 = arith.constant 0 : index
    %53 = vector.load %arg15[%c0_36, %c0_37] : memref<1x512xf32, #tpu.memory_space<vmem>>, vector<1x512xf32>
    %54 = vector.broadcast %53 : vector<1x512xf32> to vector<8x512xf32>
    %55 = arith.mulf %52, %54 : vector<8x512xf32>
    %c0_38 = arith.constant 0 : index
    %c0_39 = arith.constant 0 : index
    %56 = vector.load %arg16[%c0_38, %c0_39] : memref<1x512xf32, #tpu.memory_space<vmem>>, vector<1x512xf32>
    %57 = vector.broadcast %56 : vector<1x512xf32> to vector<8x512xf32>
    %58 = arith.addf %55, %57 : vector<8x512xf32>
    %cst_40 = arith.constant 0.000000e+00 : f32
    %59 = vector.broadcast %cst_40 : f32 to vector<8x512xf32>
    %60 = arith.maximumf %58, %59 : vector<8x512xf32>
    %61 = arith.truncf %60 : vector<8x512xf32> to vector<8x512xbf16>
    %c0_41 = arith.constant 0 : index
    %c0_42 = arith.constant 0 : index
    %62 = vector.load %arg17[%c0_41, %c0_42] : memref<512x896xi8, #tpu.memory_space<vmem>>, vector<512x896xi8>
    %63 = arith.sitofp %62 : vector<512x896xi8> to vector<512x896xbf16>
    %cst_43 = arith.constant dense<0.000000e+00> : vector<8x896xf32>
    %64 = tpu.matmul %61, %63, %cst_43 {dimension_numbers = #tpu.dot_dimension_numbers<[1], [0], [0], [1], [0, 0, 1, 1], [], []>} : vector<8x512xbf16>, vector<512x896xbf16>, vector<8x896xf32> -> vector<8x896xf32>
    %c0_44 = arith.constant 0 : index
    %c0_45 = arith.constant 0 : index
    %65 = vector.load %arg18[%c0_44, %c0_45] : memref<1x896xf32, #tpu.memory_space<vmem>>, vector<1x896xf32>
    %66 = vector.broadcast %65 : vector<1x896xf32> to vector<8x896xf32>
    %67 = arith.mulf %64, %66 : vector<8x896xf32>
    %c0_46 = arith.constant 0 : index
    %c0_47 = arith.constant 0 : index
    %68 = vector.load %arg19[%c0_46, %c0_47] : memref<1x896xf32, #tpu.memory_space<vmem>>, vector<1x896xf32>
    %69 = vector.broadcast %68 : vector<1x896xf32> to vector<8x896xf32>
    %70 = arith.addf %67, %69 : vector<8x896xf32>
    %71 = arith.truncf %70 : vector<8x896xf32> to vector<8x896xbf16>
    %c0_48 = arith.constant 0 : index
    %c0_49 = arith.constant 0 : index
    %72 = vector.load %arg21[%c0_48, %c0_49] : memref<8x896xbf16, #tpu.memory_space<vmem>>, vector<8x896xbf16>
    tpu.vector_store %arg21[%c0_48, %c0_49], %71 {strides = array<i32>} : memref<8x896xbf16, #tpu.memory_space<vmem>>, vector<8x896xbf16>,
    return
  }
  func.func @transform_0(%arg0: i32) -> (i32, i32) {
    %c0_i32 = arith.constant 0 : i32
    %c0_i32_0 = arith.constant 0 : i32
    return %arg0, %c0_i32 : i32, i32
  }
  func.func @transform_1(%arg0: i32) -> (i32, i32) {
    %c0_i32 = arith.constant 0 : i32
    %c0_i32_0 = arith.constant 0 : i32
    %c0_i32_1 = arith.constant 0 : i32
    return %c0_i32, %c0_i32_0 : i32, i32
  }
  func.func @transform_2(%arg0: i32) -> (i32, i32) {
    %c0_i32 = arith.constant 0 : i32
    %c0_i32_0 = arith.constant 0 : i32
    %c0_i32_1 = arith.constant 0 : i32
    return %c0_i32, %c0_i32_0 : i32, i32
  }
  func.func @transform_3(%arg0: i32) -> (i32, i32) {
    %c0_i32 = arith.constant 0 : i32
    %c0_i32_0 = arith.constant 0 : i32
    %c0_i32_1 = arith.constant 0 : i32
    return %c0_i32, %c0_i32_0 : i32, i32
  }
  func.func @transform_4(%arg0: i32) -> (i32, i32) {
    %c0_i32 = arith.constant 0 : i32
    %c0_i32_0 = arith.constant 0 : i32
    %c0_i32_1 = arith.constant 0 : i32
    return %c0_i32, %c0_i32_0 : i32, i32
  }
  func.func @transform_5(%arg0: i32) -> (i32, i32) {
    %c0_i32 = arith.constant 0 : i32
    %c0_i32_0 = arith.constant 0 : i32
    %c0_i32_1 = arith.constant 0 : i32
    return %c0_i32, %c0_i32_0 : i32, i32
  }
  func.func @transform_6(%arg0: i32) -> (i32, i32) {
    %c0_i32 = arith.constant 0 : i32
    %c0_i32_0 = arith.constant 0 : i32
    %c0_i32_1 = arith.constant 0 : i32
    return %c0_i32, %c0_i32_0 : i32, i32
  }
  func.func @transform_7(%arg0: i32) -> (i32, i32) {
    %c0_i32 = arith.constant 0 : i32
    %c0_i32_0 = arith.constant 0 : i32
    %c0_i32_1 = arith.constant 0 : i32
    return %c0_i32, %c0_i32_0 : i32, i32
  }
  func.func @transform_8(%arg0: i32) -> (i32, i32) {
    %c0_i32 = arith.constant 0 : i32
    %c0_i32_0 = arith.constant 0 : i32
    %c0_i32_1 = arith.constant 0 : i32
    return %c0_i32, %c0_i32_0 : i32, i32
  }
  func.func @transform_9(%arg0: i32) -> (i32, i32) {
    %c0_i32 = arith.constant 0 : i32
    %c0_i32_0 = arith.constant 0 : i32
    %c0_i32_1 = arith.constant 0 : i32
    return %c0_i32, %c0_i32_0 : i32, i32
  }
  func.func @transform_10(%arg0: i32) -> (i32, i32) {
    %c0_i32 = arith.constant 0 : i32
    %c0_i32_0 = arith.constant 0 : i32
    %c0_i32_1 = arith.constant 0 : i32
    return %c0_i32, %c0_i32_0 : i32, i32
  }
  func.func @transform_11(%arg0: i32) -> (i32, i32) {
    %c0_i32 = arith.constant 0 : i32
    %c0_i32_0 = arith.constant 0 : i32
    %c0_i32_1 = arith.constant 0 : i32
    return %c0_i32, %c0_i32_0 : i32, i32
  }
  func.func @transform_12(%arg0: i32) -> (i32, i32) {
    %c0_i32 = arith.constant 0 : i32
    %c0_i32_0 = arith.constant 0 : i32
    %c0_i32_1 = arith.constant 0 : i32
    return %c0_i32, %c0_i32_0 : i32, i32
  }
  func.func @transform_13(%arg0: i32) -> (i32, i32) {
    %c0_i32 = arith.constant 0 : i32
    %c0_i32_0 = arith.constant 0 : i32
    %c0_i32_1 = arith.constant 0 : i32
    return %c0_i32, %c0_i32_0 : i32, i32
  }
  func.func @transform_14(%arg0: i32) -> (i32, i32) {
    %c0_i32 = arith.constant 0 : i32
    %c0_i32_0 = arith.constant 0 : i32
    %c0_i32_1 = arith.constant 0 : i32
    return %c0_i32, %c0_i32_0 : i32, i32
  }
  func.func @transform_15(%arg0: i32) -> (i32, i32) {
    %c0_i32 = arith.constant 0 : i32
    %c0_i32_0 = arith.constant 0 : i32
    %c0_i32_1 = arith.constant 0 : i32
    return %c0_i32, %c0_i32_0 : i32, i32
  }
  func.func @transform_16(%arg0: i32) -> (i32, i32) {
    %c0_i32 = arith.constant 0 : i32
    %c0_i32_0 = arith.constant 0 : i32
    %c0_i32_1 = arith.constant 0 : i32
    return %c0_i32, %c0_i32_0 : i32, i32
  }
  func.func @transform_17(%arg0: i32) -> (i32, i32) {
    %c0_i32 = arith.constant 0 : i32
    %c0_i32_0 = arith.constant 0 : i32
    %c0_i32_1 = arith.constant 0 : i32
    return %c0_i32, %c0_i32_0 : i32, i32
  }
  func.func @transform_18(%arg0: i32) -> (i32, i32) {
    %c0_i32 = arith.constant 0 : i32
    %c0_i32_0 = arith.constant 0 : i32
    %c0_i32_1 = arith.constant 0 : i32
    return %c0_i32, %c0_i32_0 : i32, i32
  }
  func.func @transform_19(%arg0: i32) -> (i32, i32) {
    %c0_i32 = arith.constant 0 : i32
    %c0_i32_0 = arith.constant 0 : i32
    return %arg0, %c0_i32 : i32, i32
  }
  func.func @transform_20(%arg0: i32) -> (i32, i32) {
    %c0_i32 = arith.constant 0 : i32
    %c0_i32_0 = arith.constant 0 : i32
    return %arg0, %c0_i32 : i32, i32
  }
}

</mosaic_0001>

<llo_original>
// kernel: tpu_custom_call.1
$region0: #{tpu_custom_call.1}
  #allocation0 [shape = 'u32[]', space=smem, size = 0x4, offset = 0x4, fixed_abs, tag = 'smem constant byte address 0x4 - core index']
  #allocation1 [shape = 'u32[144,128]{1,0:T(1,128)}', space=vmem, size = 0x12000, scoped, tag = 'internal scratch']
  %s0 = inlined_call_operand.hbm [shape: f32[8,784], index: 0, kind: input, shape index: {}]
  %s1 = inlined_call_operand.hbm [shape: s8[784,512], index: 1, kind: input, shape index: {}]
  %s2 = inlined_call_operand.hbm [shape: f32[1,512], index: 2, kind: input, shape index: {}]
  %s3 = inlined_call_operand.hbm [shape: f32[1,512], index: 3, kind: input, shape index: {}]
  %s4 = inlined_call_operand.hbm [shape: s8[512,256], index: 4, kind: input, shape index: {}]
  %s5 = inlined_call_operand.hbm [shape: f32[1,256], index: 5, kind: input, shape index: {}]
  %s6 = inlined_call_operand.hbm [shape: f32[1,256], index: 6, kind: input, shape index: {}]
  %s7 = inlined_call_operand.hbm [shape: s8[256,128], index: 7, kind: input, shape index: {}]
  %s8 = inlined_call_operand.vmem [shape: f32[1,128], index: 8, kind: input, shape index: {}]
  %s9 = inlined_call_operand.vmem [shape: f32[1,128], index: 9, kind: input, shape index: {}]
  %s10 = inlined_call_operand.hbm [shape: s8[128,256], index: 10, kind: input, shape index: {}]
  %s11 = inlined_call_operand.vmem [shape: f32[1,256], index: 11, kind: input, shape index: {}]
  %s12 = inlined_call_operand.vmem [shape: f32[1,256], index: 12, kind: input, shape index: {}]
  %s13 = inlined_call_operand.hbm [shape: s8[256,512], index: 13, kind: input, shape index: {}]
  %s14 = inlined_call_operand.vmem [shape: f32[1,512], index: 14, kind: input, shape index: {}]
  %s15 = inlined_call_operand.vmem [shape: f32[1,512], index: 15, kind: input, shape index: {}]
  %s16 = inlined_call_operand.hbm [shape: s8[512,896], index: 16, kind: input, shape index: {}]
  %s17 = inlined_call_operand.vmem [shape: f32[1,896], index: 17, kind: input, shape index: {}]
  %s18 = inlined_call_operand.vmem [shape: f32[1,896], index: 18, kind: input, shape index: {}]
  %s19 = inlined_call_operand.hbm [shape: bf16[8,128], index: 19, kind: output, shape index: {0}]
  %s20 = inlined_call_operand.hbm [shape: bf16[8,896], index: 20, kind: output, shape index: {1}]
  %21 = xla_tuple %s19, %s20
  %s22 = sld [smem:[#allocation0]]
  $region138: #{tpu_custom_call.1} parent=0
    _
  %s24 = ssub.s32 1, %s22
  %s25 = scalar_select 0, %s24, %s22
  $region1: #{tpu_custom_call.1} parent=0
    #allocation2 [shape = 'u8[28672]{0}', space=vmem, size = 0x7000, scoped, tag = 'input window, operand 0, single buffered']
    #allocation3 [shape = 's32[1]{0}', space=sflag, size = 0x4, scoped, tag = 'scoped memory for tpu_custom_call.1']
    #allocation4 [shape = 's32[1]{0}', space=sflag, size = 0x4, scoped, tag = 'scoped memory for tpu_custom_call.1']
    #allocation5 [shape = 'u8[401408]{0}', space=vmem, size = 0x62000, scoped, tag = 'input window, operand 1, single buffered']
    #allocation6 [shape = 's32[1]{0}', space=sflag, size = 0x4, scoped, tag = 'scoped memory for tpu_custom_call.1']
    #allocation7 [shape = 'u8[2048]{0}', space=vmem, size = 0x800, scoped, tag = 'input window, operand 2, single buffered']
    #allocation8 [shape = 'u8[2048]{0}', space=vmem, size = 0x800, scoped, tag = 'input window, operand 3, single buffered']
    #allocation9 [shape = 's32[1]{0}', space=sflag, size = 0x4, scoped, tag = 'scoped memory for tpu_custom_call.1']
    #allocation10 [shape = 'u8[131072]{0}', space=vmem, size = 0x20000, scoped, tag = 'input window, operand 4, single buffered']
    #allocation11 [shape = 'u8[1024]{0}', space=vmem, size = 0x400, scoped, tag = 'input window, operand 5, single buffered']
    #allocation12 [shape = 's32[1]{0}', space=sflag, size = 0x4, scoped, tag = 'scoped memory for tpu_custom_call.1']
    #allocation13 [shape = 'u8[1024]{0}', space=vmem, size = 0x400, scoped, tag = 'input window, operand 6, single buffered']
    #allocation14 [shape = 'u8[32768]{0}', space=vmem, size = 0x8000, scoped, tag = 'input window, operand 7, single buffered']
    #allocation15 [shape = 's32[1]{0}', space=sflag, size = 0x4, scoped, tag = 'scoped memory for tpu_custom_call.1']
    #allocation16 [shape = 'u8[32768]{0}', space=vmem, size = 0x8000, scoped, tag = 'input window, operand 10, single buffered']
    #allocation17 [shape = 'u8[131072]{0}', space=vmem, size = 0x20000, scoped, tag = 'input window, operand 13, single buffered']
    #allocation18 [shape = 's32[1]{0}', space=sflag, size = 0x4, scoped, tag = 'scoped memory for tpu_custom_call.1']
    #allocation19 [shape = 'u8[458752]{0}', space=vmem, size = 0x70000, scoped, tag = 'input window, operand 16, single buffered']
    #allocation20 [shape = 'u8[2048]{0}', space=vmem, size = 0x800, scoped, tag = 'output window, operand 0, single buffered']
    #allocation21 [shape = 'u8[14336]{0}', space=vmem, size = 0x3800, scoped, tag = 'output window, operand 1, single buffered']
    #allocation22 [shape = 's32[1]{0}', space=sflag, size = 0x4, scoped, tag = 'scoped memory for tpu_custom_call.1']
    %26 = vsyncpa [#allocation3], 0
    %27 = vsyncpa [#allocation6], 0
    %28 = vsyncpa [#allocation9], 0
    %29 = vsyncpa [#allocation12], 0
    %30 = vsyncpa [#allocation15], 0
    %31 = vsyncpa [#allocation18], 0
    %32 = vsyncpa [#allocation4], 0
    %33 = vsyncpa [#allocation22], 0
    // Predicated region
    $region2: #{tpu_custom_call.1} parent=1 // pred_check
      _
    $region3: #{tpu_custom_call.1} parent=1 // pred_check_branch
      %35 = sbr.rel (0) target = $region5
    $region4: #{tpu_custom_call.1} parent=1 // pred_region
      %s37 = ssub.s32 896, 896
      %38 = vsyncadd [#allocation3], %s37
      %s40 = sshll.u32 [#allocation2], 4
      %s41 = int_to_ptr.vmem [resolvable:$true] %s40
      %43 = dma.hbm_to_vmem [thread:$0]  %s0, 896, %s41, [#allocation3]
    $region5: #{tpu_custom_call.1} parent=1 // pred_fallthru
      _
    // Predicated region
    $region6: #{tpu_custom_call.1} parent=1 // pred_check
      _
    $region7: #{tpu_custom_call.1} parent=1 // pred_check_branch
      %45 = sbr.rel (0) target = $region9
    $region8: #{tpu_custom_call.1} parent=1 // pred_region
      %s47 = ssub.s32 12544, 12544
      %48 = vsyncadd [#allocation6], %s47
      %s49 = sshll.u32 [#allocation5], 4
      %s50 = int_to_ptr.vmem [resolvable:$true] %s49
      %55 = dma.hbm_to_vmem [thread:$0]  %s1, 12544, %s50, [#allocation6], 128, 128, 8
    $region9: #{tpu_custom_call.1} parent=1 // pred_fallthru
      _
    // Predicated region
    $region10: #{tpu_custom_call.1} parent=1 // pred_check
      _
    $region11: #{tpu_custom_call.1} parent=1 // pred_check_branch
      %57 = sbr.rel (0) target = $region13
    $region12: #{tpu_custom_call.1} parent=1 // pred_region
      %s59 = ssub.s32 64, 64
      %60 = vsyncadd [#allocation6], %s59
      %s62 = sshll.u32 [#allocation7], 4
      %s63 = int_to_ptr.vmem [resolvable:$true] %s62
      %65 = dma.hbm_to_vmem [thread:$0]  %s2, 64, %s63, [#allocation6]
    $region13: #{tpu_custom_call.1} parent=1 // pred_fallthru
      _
    // Predicated region
    $region14: #{tpu_custom_call.1} parent=1 // pred_check
      _
    $region15: #{tpu_custom_call.1} parent=1 // pred_check_branch
      %67 = sbr.rel (0) target = $region17
    $region16: #{tpu_custom_call.1} parent=1 // pred_region
      %s69 = ssub.s32 64, 64
      %70 = vsyncadd [#allocation9], %s69
      %s72 = sshll.u32 [#allocation8], 4
      %s73 = int_to_ptr.vmem [resolvable:$true] %s72
      %75 = dma.hbm_to_vmem [thread:$0]  %s3, 64, %s73, [#allocation9]
    $region17: #{tpu_custom_call.1} parent=1 // pred_fallthru
      _
    // Predicated region
    $region18: #{tpu_custom_call.1} parent=1 // pred_check
      _
    $region19: #{tpu_custom_call.1} parent=1 // pred_check_branch
      %77 = sbr.rel (0) target = $region21
    $region20: #{tpu_custom_call.1} parent=1 // pred_region
      %s79 = ssub.s32 4096, 4096
      %80 = vsyncadd [#allocation9], %s79
      %s81 = sshll.u32 [#allocation10], 4
      %s82 = int_to_ptr.vmem [resolvable:$true] %s81
      %87 = dma.hbm_to_vmem [thread:$0]  %s4, 4096, %s82, [#allocation9], 256, 256, 16
    $region21: #{tpu_custom_call.1} parent=1 // pred_fallthru
      _
    // Predicated region
    $region22: #{tpu_custom_call.1} parent=1 // pred_check
      _
    $region23: #{tpu_custom_call.1} parent=1 // pred_check_branch
      %89 = sbr.rel (0) target = $region25
    $region24: #{tpu_custom_call.1} parent=1 // pred_region
      %s91 = ssub.s32 32, 32
      %92 = vsyncadd [#allocation12], %s91
      %s94 = sshll.u32 [#allocation11], 4
      %s95 = int_to_ptr.vmem [resolvable:$true] %s94
      %97 = dma.hbm_to_vmem [thread:$0]  %s5, 32, %s95, [#allocation12]
    $region25: #{tpu_custom_call.1} parent=1 // pred_fallthru
      _
    // Predicated region
    $region26: #{tpu_custom_call.1} parent=1 // pred_check
      _
    $region27: #{tpu_custom_call.1} parent=1 // pred_check_branch
      %99 = sbr.rel (0) target = $region29
    $region28: #{tpu_custom_call.1} parent=1 // pred_region
      %s101 = ssub.s32 32, 32
      %102 = vsyncadd [#allocation12], %s101
      %s104 = sshll.u32 [#allocation13], 4
      %s105 = int_to_ptr.vmem [resolvable:$true] %s104
      %107 = dma.hbm_to_vmem [thread:$0]  %s6, 32, %s105, [#allocation12]
    $region29: #{tpu_custom_call.1} parent=1 // pred_fallthru
      _
    // Predicated region
    $region30: #{tpu_custom_call.1} parent=1 // pred_check
      _
    $region31: #{tpu_custom_call.1} parent=1 // pred_check_branch
      %109 = sbr.rel (0) target = $region33
    $region32: #{tpu_custom_call.1} parent=1 // pred_region
      %s111 = ssub.s32 1024, 1024
      %112 = vsyncadd [#allocation15], %s111
      %s113 = sshll.u32 [#allocation14], 4
      %s114 = int_to_ptr.vmem [resolvable:$true] %s113
      %119 = dma.hbm_to_vmem [thread:$0]  %s7, 1024, %s114, [#allocation15], 128, 128, 8
    $region33: #{tpu_custom_call.1} parent=1 // pred_fallthru
      _
    // Predicated region
    $region34: #{tpu_custom_call.1} parent=1 // pred_check
      _
    $region35: #{tpu_custom_call.1} parent=1 // pred_check_branch
      %121 = sbr.rel (0) target = $region37
    $region36: #{tpu_custom_call.1} parent=1 // pred_region
      _
    $region37: #{tpu_custom_call.1} parent=1 // pred_fallthru
      _
    // Predicated region
    $region38: #{tpu_custom_call.1} parent=1 // pred_check
      _
    $region39: #{tpu_custom_call.1} parent=1 // pred_check_branch
      %123 = sbr.rel (0) target = $region41
    $region40: #{tpu_custom_call.1} parent=1 // pred_region
      _
    $region41: #{tpu_custom_call.1} parent=1 // pred_fallthru
      _
    // Predicated region
    $region42: #{tpu_custom_call.1} parent=1 // pred_check
      _
    $region43: #{tpu_custom_call.1} parent=1 // pred_check_branch
      %125 = sbr.rel (0) target = $region45
    $region44: #{tpu_custom_call.1} parent=1 // pred_region
      %s127 = ssub.s32 1024, 1024
      %128 = vsyncadd [#allocation15], %s127
      %s129 = sshll.u32 [#allocation16], 4
      %s130 = int_to_ptr.vmem [resolvable:$true] %s129
      %135 = dma.hbm_to_vmem [thread:$0]  %s10, 1024, %s130, [#allocation15], 256, 256, 16
    $region45: #{tpu_custom_call.1} parent=1 // pred_fallthru
      _
    // Predicated region
    $region46: #{tpu_custom_call.1} parent=1 // pred_check
      _
    $region47: #{tpu_custom_call.1} parent=1 // pred_check_branch
      %137 = sbr.rel (0) target = $region49
    $region48: #{tpu_custom_call.1} parent=1 // pred_region
      _
    $region49: #{tpu_custom_call.1} parent=1 // pred_fallthru
      _
    // Predicated region
    $region50: #{tpu_custom_call.1} parent=1 // pred_check
      _
    $region51: #{tpu_custom_call.1} parent=1 // pred_check_branch
      %139 = sbr.rel (0) target = $region53
    $region52: #{tpu_custom_call.1} parent=1 // pred_region
      _
    $region53: #{tpu_custom_call.1} parent=1 // pred_fallthru
      _
    // Predicated region
    $region54: #{tpu_custom_call.1} parent=1 // pred_check
      _
    $region55: #{tpu_custom_call.1} parent=1 // pred_check_branch
      %141 = sbr.rel (0) target = $region57
    $region56: #{tpu_custom_call.1} parent=1 // pred_region
      %s143 = ssub.s32 4096, 4096
      %144 = vsyncadd [#allocation18], %s143
      %s145 = sshll.u32 [#allocation17], 4
      %s146 = int_to_ptr.vmem [resolvable:$true] %s145
      %151 = dma.hbm_to_vmem [thread:$0]  %s13, 4096, %s146, [#allocation18], 512, 512, 32
    $region57: #{tpu_custom_call.1} parent=1 // pred_fallthru
      _
    // Predicated region
    $region58: #{tpu_custom_call.1} parent=1 // pred_check
      _
    $region59: #{tpu_custom_call.1} parent=1 // pred_check_branch
      %153 = sbr.rel (0) target = $region61
    $region60: #{tpu_custom_call.1} parent=1 // pred_region
      _
    $region61: #{tpu_custom_call.1} parent=1 // pred_fallthru
      _
    // Predicated region
    $region62: #{tpu_custom_call.1} parent=1 // pred_check
      _
    $region63: #{tpu_custom_call.1} parent=1 // pred_check_branch
      %155 = sbr.rel (0) target = $region65
    $region64: #{tpu_custom_call.1} parent=1 // pred_region
      _
    $region65: #{tpu_custom_call.1} parent=1 // pred_fallthru
      _
    // Predicated region
    $region66: #{tpu_custom_call.1} parent=1 // pred_check
      _
    $region67: #{tpu_custom_call.1} parent=1 // pred_check_branch
      %157 = sbr.rel (0) target = $region69
    $region68: #{tpu_custom_call.1} parent=1 // pred_region
      %s159 = ssub.s32 14336, 14336
      %160 = vsyncadd [#allocation18], %s159
      %s161 = sshll.u32 [#allocation19], 4
      %s162 = int_to_ptr.vmem [resolvable:$true] %s161
      %167 = dma.hbm_to_vmem [thread:$0]  %s16, 14336, %s162, [#allocation18], 896, 896, 56
    $region69: #{tpu_custom_call.1} parent=1 // pred_fallthru
      _
    // Predicated region
    $region70: #{tpu_custom_call.1} parent=1 // pred_check
      _
    $region71: #{tpu_custom_call.1} parent=1 // pred_check_branch
      %169 = sbr.rel (0) target = $region73
    $region72: #{tpu_custom_call.1} parent=1 // pred_region
      _
    $region73: #{tpu_custom_call.1} parent=1 // pred_fallthru
      _
    // Predicated region
    $region74: #{tpu_custom_call.1} parent=1 // pred_check
      _
    $region75: #{tpu_custom_call.1} parent=1 // pred_check_branch
      %171 = sbr.rel (0) target = $region77
    $region76: #{tpu_custom_call.1} parent=1 // pred_region
      _
    $region77: #{tpu_custom_call.1} parent=1 // pred_fallthru
      _
    // Predicated region
    $region78: #{tpu_custom_call.1} parent=1 // pred_check
      _
    $region79: #{tpu_custom_call.1} parent=1 // pred_check_branch
      %173 = sbr.rel (0) target = $region81
    $region80: #{tpu_custom_call.1} parent=1 // pred_region
      %174 = dma.done [#allocation3], 896
    $region81: #{tpu_custom_call.1} parent=1 // pred_fallthru
      _
    // Predicated region
    $region82: #{tpu_custom_call.1} parent=1 // pred_check
      _
    $region83: #{tpu_custom_call.1} parent=1 // pred_check_branch
      %176 = sbr.rel (0) target = $region85
    $region84: #{tpu_custom_call.1} parent=1 // pred_region
      %177 = dma.done [#allocation6], 12544
    $region85: #{tpu_custom_call.1} parent=1 // pred_fallthru
      _
    // Predicated region
    $region86: #{tpu_custom_call.1} parent=1 // pred_check
      _
    $region87: #{tpu_custom_call.1} parent=1 // pred_check_branch
      %179 = sbr.rel (0) target = $region89
    $region88: #{tpu_custom_call.1} parent=1 // pred_region
      %180 = dma.done [#allocation6], 64
    $region89: #{tpu_custom_call.1} parent=1 // pred_fallthru
      _
    // Predicated region
    $region90: #{tpu_custom_call.1} parent=1 // pred_check
      _
    $region91: #{tpu_custom_call.1} parent=1 // pred_check_branch
      %182 = sbr.rel (0) target = $region93
    $region92: #{tpu_custom_call.1} parent=1 // pred_region
      %183 = dma.done [#allocation9], 64
    $region93: #{tpu_custom_call.1} parent=1 // pred_fallthru
      _
    // Predicated region
    $region94: #{tpu_custom_call.1} parent=1 // pred_check
      _
    $region95: #{tpu_custom_call.1} parent=1 // pred_check_branch
      %185 = sbr.rel (0) target = $region97
    $region96: #{tpu_custom_call.1} parent=1 // pred_region
      %186 = dma.done [#allocation9], 4096
    $region97: #{tpu_custom_call.1} parent=1 // pred_fallthru
      _
    // Predicated region
    $region98: #{tpu_custom_call.1} parent=1 // pred_check
      _
    $region99: #{tpu_custom_call.1} parent=1 // pred_check_branch
      %188 = sbr.rel (0) target = $region101
    $region100: #{tpu_custom_call.1} parent=1 // pred_region
      %189 = dma.done [#allocation12], 32
    $region101: #{tpu_custom_call.1} parent=1 // pred_fallthru
      _
    // Predicated region
    $region102: #{tpu_custom_call.1} parent=1 // pred_check
      _
    $region103: #{tpu_custom_call.1} parent=1 // pred_check_branch
      %191 = sbr.rel (0) target = $region105
    $region104: #{tpu_custom_call.1} parent=1 // pred_region
      %192 = dma.done [#allocation12], 32
    $region105: #{tpu_custom_call.1} parent=1 // pred_fallthru
      _
    // Predicated region
    $region106: #{tpu_custom_call.1} parent=1 // pred_check
      _
    $region107: #{tpu_custom_call.1} parent=1 // pred_check_branch
      %194 = sbr.rel (0) target = $region109
    $region108: #{tpu_custom_call.1} parent=1 // pred_region
      %195 = dma.done [#allocation15], 1024
    $region109: #{tpu_custom_call.1} parent=1 // pred_fallthru
      _
    // Predicated region
    $region110: #{tpu_custom_call.1} parent=1 // pred_check
      _
    $region111: #{tpu_custom_call.1} parent=1 // pred_check_branch
      %197 = sbr.rel (0) target = $region113
    $region112: #{tpu_custom_call.1} parent=1 // pred_region
      %198 = dma.done [#allocation15], 1024
    $region113: #{tpu_custom_call.1} parent=1 // pred_fallthru
      _
    // Predicated region
    $region114: #{tpu_custom_call.1} parent=1 // pred_check
      _
    $region115: #{tpu_custom_call.1} parent=1 // pred_check_branch
      %200 = sbr.rel (0) target = $region117
    $region116: #{tpu_custom_call.1} parent=1 // pred_region
      %201 = dma.done [#allocation18], 4096
    $region117: #{tpu_custom_call.1} parent=1 // pred_fallthru
      _
    // Predicated region
    $region118: #{tpu_custom_call.1} parent=1 // pred_check
      _
    $region119: #{tpu_custom_call.1} parent=1 // pred_check_branch
      %203 = sbr.rel (0) target = $region121
    $region120: #{tpu_custom_call.1} parent=1 // pred_region
      %204 = dma.done [#allocation18], 14336
    $region121: #{tpu_custom_call.1} parent=1 // pred_fallthru
      _
    %v206 = vld [vmem:[#allocation2] sm:$0xff]
    %v207 = vld [vmem:[#allocation2 + $0x8] sm:$0xff]
    %v208 = vld [vmem:[#allocation2 + $0x10] sm:$0xff]
    %v209 = vld [vmem:[#allocation2 + $0x18] sm:$0xff]
    %v210 = vld [vmem:[#allocation2 + $0x20] sm:$0xff]
    %v211 = vld [vmem:[#allocation2 + $0x28] sm:$0xff]
    %v212 = vld [vmem:[#allocation2 + $0x30] sm:$0xff]
    %v213 = vpack.c.bf16 %v206, %v206
    %v214 = vpack.c.bf16 %v207, %v207
    %v215 = vpack.c.bf16 %v208, %v208
    %v216 = vpack.c.bf16 %v209, %v209
    %v217 = vpack.c.bf16 %v210, %v210
    %v218 = vpack.c.bf16 %v211, %v211
    %v219 = vpack.c.bf16 %v212, %v212
    %v220 = vld [vmem:[#allocation5] sm:$0xff]
    %v221 = vld [vmem:[#allocation5 + $0x8] sm:$0xff]
    %v222 = vld [vmem:[#allocation5 + $0x10] sm:$0xff]
    %v223 = vld [vmem:[#allocation5 + $0x18] sm:$0xff]
    %v224 = vld [vmem:[#allocation5 + $0x20] sm:$0xff]
    %v225 = vld [vmem:[#allocation5 + $0x28] sm:$0xff]
    %v226 = vld [vmem:[#allocation5 + $0x30] sm:$0xff]
    %v227 = vld [vmem:[#allocation5 + $0x38] sm:$0xff]
    %v228 = vld [vmem:[#allocation5 + $0x40] sm:$0xff]
    %v229 = vld [vmem:[#allocation5 + $0x48] sm:$0xff]
    %v230 = vld [vmem:[#allocation5 + $0x50] sm:$0xff]
    %v231 = vld [vmem:[#allocation5 + $0x58] sm:$0xff]
    %v232 = vld [vmem:[#allocation5 + $0x60] sm:$0xff]
    %v233 = vld [vmem:[#allocation5 + $0x68] sm:$0xff]
    %v234 = vld [vmem:[#allocation5 + $0x70] sm:$0xff]
    %v235 = vld [vmem:[#allocation5 + $0x78] sm:$0xff]
    %v236 = vld [vmem:[#allocation5 + $0x80] sm:$0xff]
    %v237 = vld [vmem:[#allocation5 + $0x88] sm:$0xff]
    %v238 = vld [vmem:[#allocation5 + $0x90] sm:$0xff]
    %v239 = vld [vmem:[#allocation5 + $0x98] sm:$0xff]
    %v240 = vld [vmem:[#allocation5 + $0xa0] sm:$0xff]
    %v241 = vld [vmem:[#allocation5 + $0xa8] sm:$0xff]
    %v242 = vld [vmem:[#allocation5 + $0xb0] sm:$0xff]
    %v243 = vld [vmem:[#allocation5 + $0xb8] sm:$0xff]
    %v244 = vld [vmem:[#allocation5 + $0xc0] sm:$0xff]
    %v245 = vld [vmem:[#allocation5 + $0xc8] sm:$0xff]
    %v246 = vld [vmem:[#allocation5 + $0xd0] sm:$0xff]
    %v247 = vld [vmem:[#allocation5 + $0xd8] sm:$0xff]
    %v248 = vld [vmem:[#allocation5 + $0xe0] sm:$0xff]
    %v249 = vld [vmem:[#allocation5 + $0xe8] sm:$0xff]
    %v250 = vld [vmem:[#allocation5 + $0xf0] sm:$0xff]
    %v251 = vld [vmem:[#allocation5 + $0xf8] sm:$0xff]
    %v252 = vld [vmem:[#allocation5 + $0x100] sm:$0xff]
    %v253 = vld [vmem:[#allocation5 + $0x108] sm:$0xff]
    %v254 = vld [vmem:[#allocation5 + $0x110] sm:$0xff]
    %v255 = vld [vmem:[#allocation5 + $0x118] sm:$0xff]
    %v256 = vld [vmem:[#allocation5 + $0x120] sm:$0xff]
    %v257 = vld [vmem:[#allocation5 + $0x128] sm:$0xff]
    %v258 = vld [vmem:[#allocation5 + $0x130] sm:$0xff]
    %v259 = vld [vmem:[#allocation5 + $0x138] sm:$0xff]
    %v260 = vld [vmem:[#allocation5 + $0x140] sm:$0xff]
    %v261 = vld [vmem:[#allocation5 + $0x148] sm:$0xff]
    %v262 = vld [vmem:[#allocation5 + $0x150] sm:$0xff]
    %v263 = vld [vmem:[#allocation5 + $0x158] sm:$0xff]
    %v264 = vld [vmem:[#allocation5 + $0x160] sm:$0xff]
    %v265 = vld [vmem:[#allocation5 + $0x168] sm:$0xff]
    %v266 = vld [vmem:[#allocation5 + $0x170] sm:$0xff]
    %v267 = vld [vmem:[#allocation5 + $0x178] sm:$0xff]
    %v268 = vld [vmem:[#allocation5 + $0x180] sm:$0xff]
    %v269 = vld [vmem:[#allocation5 + $0x188] sm:$0xff]
    %v270 = vld [vmem:[#allocation5 + $0x190] sm:$0xff]
    %v271 = vld [vmem:[#allocation5 + $0x198] sm:$0xff]
    %v272 = vld [vmem:[#allocation5 + $0x1a0] sm:$0xff]
    %v273 = vld [vmem:[#allocation5 + $0x1a8] sm:$0xff]
    %v274 = vld [vmem:[#allocation5 + $0x1b0] sm:$0xff]
    %v275 = vld [vmem:[#allocation5 + $0x1b8] sm:$0xff]
    %v276 = vld [vmem:[#allocation5 + $0x1c0] sm:$0xff]
    %v277 = vld [vmem:[#allocation5 + $0x1c8] sm:$0xff]
    %v278 = vld [vmem:[#allocation5 + $0x1d0] sm:$0xff]
    %v279 = vld [vmem:[#allocation5 + $0x1d8] sm:$0xff]
    %v280 = vld [vmem:[#allocation5 + $0x1e0] sm:$0xff]
    %v281 = vld [vmem:[#allocation5 + $0x1e8] sm:$0xff]
    %v282 = vld [vmem:[#allocation5 + $0x1f0] sm:$0xff]
    %v283 = vld [vmem:[#allocation5 + $0x1f8] sm:$0xff]
    %v284 = vld [vmem:[#allocation5 + $0x200] sm:$0xff]
    %v285 = vld [vmem:[#allocation5 + $0x208] sm:$0xff]
    %v286 = vld [vmem:[#allocation5 + $0x210] sm:$0xff]
    %v287 = vld [vmem:[#allocation5 + $0x218] sm:$0xff]
    %v288 = vld [vmem:[#allocation5 + $0x220] sm:$0xff]
    %v289 = vld [vmem:[#allocation5 + $0x228] sm:$0xff]
    %v290 = vld [vmem:[#allocation5 + $0x230] sm:$0xff]
    %v291 = vld [vmem:[#allocation5 + $0x238] sm:$0xff]
    %v292 = vld [vmem:[#allocation5 + $0x240] sm:$0xff]
    %v293 = vld [vmem:[#allocation5 + $0x248] sm:$0xff]
    %v294 = vld [vmem:[#allocation5 + $0x250] sm:$0xff]
    %v295 = vld [vmem:[#allocation5 + $0x258] sm:$0xff]
    %v296 = vld [vmem:[#allocation5 + $0x260] sm:$0xff]
    %v297 = vld [vmem:[#allocation5 + $0x268] sm:$0xff]
    %v298 = vld [vmem:[#allocation5 + $0x270] sm:$0xff]
    %v299 = vld [vmem:[#allocation5 + $0x278] sm:$0xff]
    %v300 = vld [vmem:[#allocation5 + $0x280] sm:$0xff]
    %v301 = vld [vmem:[#allocation5 + $0x288] sm:$0xff]
    %v302 = vld [vmem:[#allocation5 + $0x290] sm:$0xff]
    %v303 = vld [vmem:[#allocation5 + $0x298] sm:$0xff]
    %v304 = vld [vmem:[#allocation5 + $0x2a0] sm:$0xff]
    %v305 = vld [vmem:[#allocation5 + $0x2a8] sm:$0xff]
    %v306 = vld [vmem:[#allocation5 + $0x2b0] sm:$0xff]
    %v307 = vld [vmem:[#allocation5 + $0x2b8] sm:$0xff]
    %v308 = vld [vmem:[#allocation5 + $0x2c0] sm:$0xff]
    %v309 = vld [vmem:[#allocation5 + $0x2c8] sm:$0xff]
    %v310 = vld [vmem:[#allocation5 + $0x2d0] sm:$0xff]
    %v311 = vld [vmem:[#allocation5 + $0x2d8] sm:$0xff]
    %v312 = vld [vmem:[#allocation5 + $0x2e0] sm:$0xff]
    %v313 = vld [vmem:[#allocation5 + $0x2e8] sm:$0xff]
    %v314 = vld [vmem:[#allocation5 + $0x2f0] sm:$0xff]
    %v315 = vld [vmem:[#allocation5 + $0x2f8] sm:$0xff]
    %v316 = vld [vmem:[#allocation5 + $0x300] sm:$0xff]
    %v317 = vld [vmem:[#allocation5 + $0x308] sm:$0xff]
    %v318 = vunpack.c.l.s8.bf16 %v220
    %v319 = vunpack.c.h.s8.bf16 %v220
    %v320 = vunpack.c.l.s8.bf16 %v221
    %v321 = vunpack.c.h.s8.bf16 %v221
    %v322 = vunpack.c.l.s8.bf16 %v222
    %v323 = vunpack.c.h.s8.bf16 %v222
    %v324 = vunpack.c.l.s8.bf16 %v223
    %v325 = vunpack.c.h.s8.bf16 %v223
    %v326 = vunpack.c.l.s8.bf16 %v224
    %v327 = vunpack.c.h.s8.bf16 %v224
    %v328 = vunpack.c.l.s8.bf16 %v225
    %v329 = vunpack.c.h.s8.bf16 %v225
    %v330 = vunpack.c.l.s8.bf16 %v226
    %v331 = vunpack.c.h.s8.bf16 %v226
    %v332 = vunpack.c.l.s8.bf16 %v227
    %v333 = vunpack.c.h.s8.bf16 %v227
    %v334 = vunpack.c.l.s8.bf16 %v228
    %v335 = vunpack.c.h.s8.bf16 %v228
    %v336 = vunpack.c.l.s8.bf16 %v229
    %v337 = vunpack.c.h.s8.bf16 %v229
    %v338 = vunpack.c.l.s8.bf16 %v230
    %v339 = vunpack.c.h.s8.bf16 %v230
    %v340 = vunpack.c.l.s8.bf16 %v231
    %v341 = vunpack.c.h.s8.bf16 %v231
    %v342 = vunpack.c.l.s8.bf16 %v232
    %v343 = vunpack.c.h.s8.bf16 %v232
    %v344 = vunpack.c.l.s8.bf16 %v233
    %v345 = vunpack.c.h.s8.bf16 %v233
    %v346 = vunpack.c.l.s8.bf16 %v234
    %v347 = vunpack.c.h.s8.bf16 %v234
    %v348 = vunpack.c.l.s8.bf16 %v235
    %v349 = vunpack.c.h.s8.bf16 %v235
    %v350 = vunpack.c.l.s8.bf16 %v236
    %v351 = vunpack.c.h.s8.bf16 %v236
    %v352 = vunpack.c.l.s8.bf16 %v237
    %v353 = vunpack.c.h.s8.bf16 %v237
    %v354 = vunpack.c.l.s8.bf16 %v238
    %v355 = vunpack.c.h.s8.bf16 %v238
    %v356 = vunpack.c.l.s8.bf16 %v239
    %v357 = vunpack.c.h.s8.bf16 %v239
    %v358 = vunpack.c.l.s8.bf16 %v240
    %v359 = vunpack.c.h.s8.bf16 %v240
    %v360 = vunpack.c.l.s8.bf16 %v241
    %v361 = vunpack.c.h.s8.bf16 %v241
    %v362 = vunpack.c.l.s8.bf16 %v242
    %v363 = vunpack.c.h.s8.bf16 %v242
    %v364 = vunpack.c.l.s8.bf16 %v243
    %v365 = vunpack.c.h.s8.bf16 %v243
    %v366 = vunpack.c.l.s8.bf16 %v244
    %v367 = vunpack.c.h.s8.bf16 %v244
    %v368 = vunpack.c.l.s8.bf16 %v245
    %v369 = vunpack.c.h.s8.bf16 %v245
    %v370 = vunpack.c.l.s8.bf16 %v246
    %v371 = vunpack.c.h.s8.bf16 %v246
    %v372 = vunpack.c.l.s8.bf16 %v247
    %v373 = vunpack.c.h.s8.bf16 %v247
    %v374 = vunpack.c.l.s8.bf16 %v248
    %v375 = vunpack.c.h.s8.bf16 %v248
    %v376 = vunpack.c.l.s8.bf16 %v249
    %v377 = vunpack.c.h.s8.bf16 %v249
    %v378 = vunpack.c.l.s8.bf16 %v250
    %v379 = vunpack.c.h.s8.bf16 %v250
    %v380 = vunpack.c.l.s8.bf16 %v251
    %v381 = vunpack.c.h.s8.bf16 %v251
    %v382 = vunpack.c.l.s8.bf16 %v252
    %v383 = vunpack.c.h.s8.bf16 %v252
    %v384 = vunpack.c.l.s8.bf16 %v253
    %v385 = vunpack.c.h.s8.bf16 %v253
    %v386 = vunpack.c.l.s8.bf16 %v254
    %v387 = vunpack.c.h.s8.bf16 %v254
    %v388 = vunpack.c.l.s8.bf16 %v255
    %v389 = vunpack.c.h.s8.bf16 %v255
    %v390 = vunpack.c.l.s8.bf16 %v256
    %v391 = vunpack.c.h.s8.bf16 %v256
    %v392 = vunpack.c.l.s8.bf16 %v257
    %v393 = vunpack.c.h.s8.bf16 %v257
    %v394 = vunpack.c.l.s8.bf16 %v258
    %v395 = vunpack.c.h.s8.bf16 %v258
    %v396 = vunpack.c.l.s8.bf16 %v259
    %v397 = vunpack.c.h.s8.bf16 %v259
    %v398 = vunpack.c.l.s8.bf16 %v260
    %v399 = vunpack.c.h.s8.bf16 %v260
    %v400 = vunpack.c.l.s8.bf16 %v261
    %v401 = vunpack.c.h.s8.bf16 %v261
    %v402 = vunpack.c.l.s8.bf16 %v262
    %v403 = vunpack.c.h.s8.bf16 %v262
    %v404 = vunpack.c.l.s8.bf16 %v263
    %v405 = vunpack.c.h.s8.bf16 %v263
    %v406 = vunpack.c.l.s8.bf16 %v264
    %v407 = vunpack.c.h.s8.bf16 %v264
    %v408 = vunpack.c.l.s8.bf16 %v265
    %v409 = vunpack.c.h.s8.bf16 %v265
    %v410 = vunpack.c.l.s8.bf16 %v266
    %v411 = vunpack.c.h.s8.bf16 %v266
    %v412 = vunpack.c.l.s8.bf16 %v267
    %v413 = vunpack.c.h.s8.bf16 %v267
    %v414 = vunpack.c.l.s8.bf16 %v268
    %v415 = vunpack.c.h.s8.bf16 %v268
    %v416 = vunpack.c.l.s8.bf16 %v269
    %v417 = vunpack.c.h.s8.bf16 %v269
    %v418 = vunpack.c.l.s8.bf16 %v270
    %v419 = vunpack.c.h.s8.bf16 %v270
    %v420 = vunpack.c.l.s8.bf16 %v271
    %v421 = vunpack.c.h.s8.bf16 %v271
    %v422 = vunpack.c.l.s8.bf16 %v272
    %v423 = vunpack.c.h.s8.bf16 %v272
    %v424 = vunpack.c.l.s8.bf16 %v273
    %v425 = vunpack.c.h.s8.bf16 %v273
    %v426 = vunpack.c.l.s8.bf16 %v274
    %v427 = vunpack.c.h.s8.bf16 %v274
    %v428 = vunpack.c.l.s8.bf16 %v275
    %v429 = vunpack.c.h.s8.bf16 %v275
    %v430 = vunpack.c.l.s8.bf16 %v276
    %v431 = vunpack.c.h.s8.bf16 %v276
    %v432 = vunpack.c.l.s8.bf16 %v277
    %v433 = vunpack.c.h.s8.bf16 %v277
    %v434 = vunpack.c.l.s8.bf16 %v278
    %v435 = vunpack.c.h.s8.bf16 %v278
    %v436 = vunpack.c.l.s8.bf16 %v279
    %v437 = vunpack.c.h.s8.bf16 %v279
    %v438 = vunpack.c.l.s8.bf16 %v280
    %v439 = vunpack.c.h.s8.bf16 %v280
    %v440 = vunpack.c.l.s8.bf16 %v281
    %v441 = vunpack.c.h.s8.bf16 %v281
    %v442 = vunpack.c.l.s8.bf16 %v282
    %v443 = vunpack.c.h.s8.bf16 %v282
    %v444 = vunpack.c.l.s8.bf16 %v283
    %v445 = vunpack.c.h.s8.bf16 %v283
    %v446 = vunpack.c.l.s8.bf16 %v284
    %v447 = vunpack.c.h.s8.bf16 %v284
    %v448 = vunpack.c.l.s8.bf16 %v285
    %v449 = vunpack.c.h.s8.bf16 %v285
    %v450 = vunpack.c.l.s8.bf16 %v286
    %v451 = vunpack.c.h.s8.bf16 %v286
    %v452 = vunpack.c.l.s8.bf16 %v287
    %v453 = vunpack.c.h.s8.bf16 %v287
    %v454 = vunpack.c.l.s8.bf16 %v288
    %v455 = vunpack.c.h.s8.bf16 %v288
    %v456 = vunpack.c.l.s8.bf16 %v289
    %v457 = vunpack.c.h.s8.bf16 %v289
    %v458 = vunpack.c.l.s8.bf16 %v290
    %v459 = vunpack.c.h.s8.bf16 %v290
    %v460 = vunpack.c.l.s8.bf16 %v291
    %v461 = vunpack.c.h.s8.bf16 %v291
    %v462 = vunpack.c.l.s8.bf16 %v292
    %v463 = vunpack.c.h.s8.bf16 %v292
    %v464 = vunpack.c.l.s8.bf16 %v293
    %v465 = vunpack.c.h.s8.bf16 %v293
    %v466 = vunpack.c.l.s8.bf16 %v294
    %v467 = vunpack.c.h.s8.bf16 %v294
    %v468 = vunpack.c.l.s8.bf16 %v295
    %v469 = vunpack.c.h.s8.bf16 %v295
    %v470 = vunpack.c.l.s8.bf16 %v296
    %v471 = vunpack.c.h.s8.bf16 %v296
    %v472 = vunpack.c.l.s8.bf16 %v297
    %v473 = vunpack.c.h.s8.bf16 %v297
    %v474 = vunpack.c.l.s8.bf16 %v298
    %v475 = vunpack.c.h.s8.bf16 %v298
    %v476 = vunpack.c.l.s8.bf16 %v299
    %v477 = vunpack.c.h.s8.bf16 %v299
    %v478 = vunpack.c.l.s8.bf16 %v300
    %v479 = vunpack.c.h.s8.bf16 %v300
    %v480 = vunpack.c.l.s8.bf16 %v301
    %v481 = vunpack.c.h.s8.bf16 %v301
    %v482 = vunpack.c.l.s8.bf16 %v302
    %v483 = vunpack.c.h.s8.bf16 %v302
    %v484 = vunpack.c.l.s8.bf16 %v303
    %v485 = vunpack.c.h.s8.bf16 %v303
    %v486 = vunpack.c.l.s8.bf16 %v304
    %v487 = vunpack.c.h.s8.bf16 %v304
    %v488 = vunpack.c.l.s8.bf16 %v305
    %v489 = vunpack.c.h.s8.bf16 %v305
    %v490 = vunpack.c.l.s8.bf16 %v306
    %v491 = vunpack.c.h.s8.bf16 %v306
    %v492 = vunpack.c.l.s8.bf16 %v307
    %v493 = vunpack.c.h.s8.bf16 %v307
    %v494 = vunpack.c.l.s8.bf16 %v308
    %v495 = vunpack.c.h.s8.bf16 %v308
    %v496 = vunpack.c.l.s8.bf16 %v309
    %v497 = vunpack.c.h.s8.bf16 %v309
    %v498 = vunpack.c.l.s8.bf16 %v310
    %v499 = vunpack.c.h.s8.bf16 %v310
    %v500 = vunpack.c.l.s8.bf16 %v311
    %v501 = vunpack.c.h.s8.bf16 %v311
    %v502 = vunpack.c.l.s8.bf16 %v312
    %v503 = vunpack.c.h.s8.bf16 %v312
    %v504 = vunpack.c.l.s8.bf16 %v313
    %v505 = vunpack.c.h.s8.bf16 %v313
    %v506 = vunpack.c.l.s8.bf16 %v314
    %v507 = vunpack.c.h.s8.bf16 %v314
    %v508 = vunpack.c.l.s8.bf16 %v315
    %v509 = vunpack.c.h.s8.bf16 %v315
    %v510 = vunpack.c.l.s8.bf16 %v316
    %v511 = vunpack.c.h.s8.bf16 %v316
    %v512 = vunpack.c.l.s8.bf16 %v317
    %v513 = vunpack.c.h.s8.bf16 %v317
    %v710 = vunpack.c.l.b16 %v318
    %v711 = vunpack.c.h.b16 %v318
    %v712 = vunpack.c.l.b16 %v319
    %v713 = vunpack.c.h.b16 %v319
    %v714 = vunpack.c.l.b16 %v320
    %v715 = vunpack.c.h.b16 %v320
    %v716 = vunpack.c.l.b16 %v321
    %v717 = vunpack.c.h.b16 %v321
    %v718 = vunpack.c.l.b16 %v322
    %v719 = vunpack.c.h.b16 %v322
    %v720 = vunpack.c.l.b16 %v323
    %v721 = vunpack.c.h.b16 %v323
    %v722 = vunpack.c.l.b16 %v324
    %v723 = vunpack.c.h.b16 %v324
    %v724 = vunpack.c.l.b16 %v325
    %v725 = vunpack.c.h.b16 %v325
    %v726 = vunpack.c.l.b16 %v326
    %v727 = vunpack.c.h.b16 %v326
    %v728 = vunpack.c.l.b16 %v327
    %v729 = vunpack.c.h.b16 %v327
    %v730 = vunpack.c.l.b16 %v328
    %v731 = vunpack.c.h.b16 %v328
    %v732 = vunpack.c.l.b16 %v329
    %v733 = vunpack.c.h.b16 %v329
    %v734 = vunpack.c.l.b16 %v330
    %v735 = vunpack.c.h.b16 %v330
    %v736 = vunpack.c.l.b16 %v331
    %v737 = vunpack.c.h.b16 %v331
    %v738 = vunpack.c.l.b16 %v332
    %v739 = vunpack.c.h.b16 %v332
    %v740 = vunpack.c.l.b16 %v333
    %v741 = vunpack.c.h.b16 %v333
    %v742 = vunpack.c.l.b16 %v334
    %v743 = vunpack.c.h.b16 %v334
    %v744 = vunpack.c.l.b16 %v335
    %v745 = vunpack.c.h.b16 %v335
    %v746 = vunpack.c.l.b16 %v336
    %v747 = vunpack.c.h.b16 %v336
    %v748 = vunpack.c.l.b16 %v337
    %v749 = vunpack.c.h.b16 %v337
    %v750 = vunpack.c.l.b16 %v338
    %v751 = vunpack.c.h.b16 %v338
    %v752 = vunpack.c.l.b16 %v339
    %v753 = vunpack.c.h.b16 %v339
    %v754 = vunpack.c.l.b16 %v340
    %v755 = vunpack.c.h.b16 %v340
    %v756 = vunpack.c.l.b16 %v341
    %v757 = vunpack.c.h.b16 %v341
    %v758 = vunpack.c.l.b16 %v342
    %v759 = vunpack.c.h.b16 %v342
    %v760 = vunpack.c.l.b16 %v343
    %v761 = vunpack.c.h.b16 %v343
    %v762 = vunpack.c.l.b16 %v344
    %v763 = vunpack.c.h.b16 %v344
    %v764 = vunpack.c.l.b16 %v345
    %v765 = vunpack.c.h.b16 %v345
    %v766 = vunpack.c.l.b16 %v346
    %v767 = vunpack.c.h.b16 %v346
    %v768 = vunpack.c.l.b16 %v347
    %v769 = vunpack.c.h.b16 %v347
    %v770 = vunpack.c.l.b16 %v348
    %v771 = vunpack.c.h.b16 %v348
    %v772 = vunpack.c.l.b16 %v349
    %v773 = vunpack.c.h.b16 %v349
    %v774 = vunpack.c.l.b16 %v350
    %v775 = vunpack.c.h.b16 %v350
    %v776 = vunpack.c.l.b16 %v351
    %v777 = vunpack.c.h.b16 %v351
    %v778 = vunpack.c.l.b16 %v352
    %v779 = vunpack.c.h.b16 %v352
    %v780 = vunpack.c.l.b16 %v353
    %v781 = vunpack.c.h.b16 %v353
    %v782 = vunpack.c.l.b16 %v354
    %v783 = vunpack.c.h.b16 %v354
    %v784 = vunpack.c.l.b16 %v355
    %v785 = vunpack.c.h.b16 %v355
    %v786 = vunpack.c.l.b16 %v356
    %v787 = vunpack.c.h.b16 %v356
    %v788 = vunpack.c.l.b16 %v357
    %v789 = vunpack.c.h.b16 %v357
    %v790 = vunpack.c.l.b16 %v358
    %v791 = vunpack.c.h.b16 %v358
    %v792 = vunpack.c.l.b16 %v359
    %v793 = vunpack.c.h.b16 %v359
    %v794 = vunpack.c.l.b16 %v360
    %v795 = vunpack.c.h.b16 %v360
    %v796 = vunpack.c.l.b16 %v361
    %v797 = vunpack.c.h.b16 %v361
    %v798 = vunpack.c.l.b16 %v362
    %v799 = vunpack.c.h.b16 %v362
    %v800 = vunpack.c.l.b16 %v363
    %v801 = vunpack.c.h.b16 %v363
    %v802 = vunpack.c.l.b16 %v364
    %v803 = vunpack.c.h.b16 %v364
    %v804 = vunpack.c.l.b16 %v365
    %v805 = vunpack.c.h.b16 %v365
    %v806 = vunpack.c.l.b16 %v366
    %v807 = vunpack.c.h.b16 %v366
    %v808 = vunpack.c.l.b16 %v367
    %v809 = vunpack.c.h.b16 %v367
    %v810 = vunpack.c.l.b16 %v368
    %v811 = vunpack.c.h.b16 %v368
    %v812 = vunpack.c.l.b16 %v369
    %v813 = vunpack.c.h.b16 %v369
    %v814 = vunpack.c.l.b16 %v370
    %v815 = vunpack.c.h.b16 %v370
    %v816 = vunpack.c.l.b16 %v371
    %v817 = vunpack.c.h.b16 %v371
    %v818 = vunpack.c.l.b16 %v372
    %v819 = vunpack.c.h.b16 %v372
    %v820 = vunpack.c.l.b16 %v373
    %v821 = vunpack.c.h.b16 %v373
    %v822 = vunpack.c.l.b16 %v374
    %v823 = vunpack.c.h.b16 %v374
    %v824 = vunpack.c.l.b16 %v375
    %v825 = vunpack.c.h.b16 %v375
    %v826 = vunpack.c.l.b16 %v376
    %v827 = vunpack.c.h.b16 %v376
    %v828 = vunpack.c.l.b16 %v377
    %v829 = vunpack.c.h.b16 %v377
    %v830 = vunpack.c.l.b16 %v378
    %v831 = vunpack.c.h.b16 %v378
    %v832 = vunpack.c.l.b16 %v379
    %v833 = vunpack.c.h.b16 %v379
    %v834 = vunpack.c.l.b16 %v380
    %v835 = vunpack.c.h.b16 %v380
    %v836 = vunpack.c.l.b16 %v381
    %v837 = vunpack.c.h.b16 %v381
    %v838 = vunpack.c.l.b16 %v382
    %v839 = vunpack.c.h.b16 %v382
    %v840 = vunpack.c.l.b16 %v383
    %v841 = vunpack.c.h.b16 %v383
    %v842 = vunpack.c.l.b16 %v384
    %v843 = vunpack.c.h.b16 %v384
    %v844 = vunpack.c.l.b16 %v385
    %v845 = vunpack.c.h.b16 %v385
    %v846 = vunpack.c.l.b16 %v386
    %v847 = vunpack.c.h.b16 %v386
    %v848 = vunpack.c.l.b16 %v387
    %v849 = vunpack.c.h.b16 %v387
    %v850 = vunpack.c.l.b16 %v388
    %v851 = vunpack.c.h.b16 %v388
    %v852 = vunpack.c.l.b16 %v389
    %v853 = vunpack.c.h.b16 %v389
    %v854 = vunpack.c.l.b16 %v390
    %v855 = vunpack.c.h.b16 %v390
    %v856 = vunpack.c.l.b16 %v391
    %v857 = vunpack.c.h.b16 %v391
    %v858 = vunpack.c.l.b16 %v392
    %v859 = vunpack.c.h.b16 %v392
    %v860 = vunpack.c.l.b16 %v393
    %v861 = vunpack.c.h.b16 %v393
    %v862 = vunpack.c.l.b16 %v394
    %v863 = vunpack.c.h.b16 %v394
    %v864 = vunpack.c.l.b16 %v395
    %v865 = vunpack.c.h.b16 %v395
    %v866 = vunpack.c.l.b16 %v396
    %v867 = vunpack.c.h.b16 %v396
    %v868 = vunpack.c.l.b16 %v397
    %v869 = vunpack.c.h.b16 %v397
    %v870 = vunpack.c.l.b16 %v398
    %v871 = vunpack.c.h.b16 %v398
    %v872 = vunpack.c.l.b16 %v399
    %v873 = vunpack.c.h.b16 %v399
    %v874 = vunpack.c.l.b16 %v400
    %v875 = vunpack.c.h.b16 %v400
    %v876 = vunpack.c.l.b16 %v401
    %v877 = vunpack.c.h.b16 %v401
    %v878 = vunpack.c.l.b16 %v402
    %v879 = vunpack.c.h.b16 %v402
    %v880 = vunpack.c.l.b16 %v403
    %v881 = vunpack.c.h.b16 %v403
    %v882 = vunpack.c.l.b16 %v404
    %v883 = vunpack.c.h.b16 %v404
    %v884 = vunpack.c.l.b16 %v405
    %v885 = vunpack.c.h.b16 %v405
    %v886 = vunpack.c.l.b16 %v406
    %v887 = vunpack.c.h.b16 %v406
    %v888 = vunpack.c.l.b16 %v407
    %v889 = vunpack.c.h.b16 %v407
    %v890 = vunpack.c.l.b16 %v408
    %v891 = vunpack.c.h.b16 %v408
    %v892 = vunpack.c.l.b16 %v409
    %v893 = vunpack.c.h.b16 %v409
    %v894 = vunpack.c.l.b16 %v410
    %v895 = vunpack.c.h.b16 %v410
    %v896 = vunpack.c.l.b16 %v411
    %v897 = vunpack.c.h.b16 %v411
    %v898 = vunpack.c.l.b16 %v412
    %v899 = vunpack.c.h.b16 %v412
    %v900 = vunpack.c.l.b16 %v413
    %v901 = vunpack.c.h.b16 %v413
    %v902 = vunpack.c.l.b16 %v414
    %v903 = vunpack.c.h.b16 %v414
    %v904 = vunpack.c.l.b16 %v415
    %v905 = vunpack.c.h.b16 %v415
    %v906 = vunpack.c.l.b16 %v416
    %v907 = vunpack.c.h.b16 %v416
    %v908 = vunpack.c.l.b16 %v417
    %v909 = vunpack.c.h.b16 %v417
    %v910 = vunpack.c.l.b16 %v418
    %v911 = vunpack.c.h.b16 %v418
    %v912 = vunpack.c.l.b16 %v419
    %v913 = vunpack.c.h.b16 %v419
    %v914 = vunpack.c.l.b16 %v420
    %v915 = vunpack.c.h.b16 %v420
    %v916 = vunpack.c.l.b16 %v421
    %v917 = vunpack.c.h.b16 %v421
    %v918 = vunpack.c.l.b16 %v422
    %v919 = vunpack.c.h.b16 %v422
    %v920 = vunpack.c.l.b16 %v423
    %v921 = vunpack.c.h.b16 %v423
    %v922 = vunpack.c.l.b16 %v424
    %v923 = vunpack.c.h.b16 %v424
    %v924 = vunpack.c.l.b16 %v425
    %v925 = vunpack.c.h.b16 %v425
    %v926 = vunpack.c.l.b16 %v426
    %v927 = vunpack.c.h.b16 %v426
    %v928 = vunpack.c.l.b16 %v427
    %v929 = vunpack.c.h.b16 %v427
    %v930 = vunpack.c.l.b16 %v428
    %v931 = vunpack.c.h.b16 %v428
    %v932 = vunpack.c.l.b16 %v429
    %v933 = vunpack.c.h.b16 %v429
    %v934 = vunpack.c.l.b16 %v430
    %v935 = vunpack.c.h.b16 %v430
    %v936 = vunpack.c.l.b16 %v431
    %v937 = vunpack.c.h.b16 %v431
    %v938 = vunpack.c.l.b16 %v432
    %v939 = vunpack.c.h.b16 %v432
    %v940 = vunpack.c.l.b16 %v433
    %v941 = vunpack.c.h.b16 %v433
    %v942 = vunpack.c.l.b16 %v434
    %v943 = vunpack.c.h.b16 %v434
    %v944 = vunpack.c.l.b16 %v435
    %v945 = vunpack.c.h.b16 %v435
    %v946 = vunpack.c.l.b16 %v436
    %v947 = vunpack.c.h.b16 %v436
    %v948 = vunpack.c.l.b16 %v437
    %v949 = vunpack.c.h.b16 %v437
    %v950 = vunpack.c.l.b16 %v438
    %v951 = vunpack.c.h.b16 %v438
    %v952 = vunpack.c.l.b16 %v439
    %v953 = vunpack.c.h.b16 %v439
    %v954 = vunpack.c.l.b16 %v440
    %v955 = vunpack.c.h.b16 %v440
    %v956 = vunpack.c.l.b16 %v441
    %v957 = vunpack.c.h.b16 %v441
    %v958 = vunpack.c.l.b16 %v442
    %v959 = vunpack.c.h.b16 %v442
    %v960 = vunpack.c.l.b16 %v443
    %v961 = vunpack.c.h.b16 %v443
    %v962 = vunpack.c.l.b16 %v444
    %v963 = vunpack.c.h.b16 %v444
    %v964 = vunpack.c.l.b16 %v445
    %v965 = vunpack.c.h.b16 %v445
    %v966 = vunpack.c.l.b16 %v446
    %v967 = vunpack.c.h.b16 %v446
    %v968 = vunpack.c.l.b16 %v447
    %v969 = vunpack.c.h.b16 %v447
    %v970 = vunpack.c.l.b16 %v448
    %v971 = vunpack.c.h.b16 %v448
    %v972 = vunpack.c.l.b16 %v449
    %v973 = vunpack.c.h.b16 %v449
    %v974 = vunpack.c.l.b16 %v450
    %v975 = vunpack.c.h.b16 %v450
    %v976 = vunpack.c.l.b16 %v451
    %v977 = vunpack.c.h.b16 %v451
    %v978 = vunpack.c.l.b16 %v452
    %v979 = vunpack.c.h.b16 %v452
    %v980 = vunpack.c.l.b16 %v453
    %v981 = vunpack.c.h.b16 %v453
    %v982 = vunpack.c.l.b16 %v454
    %v983 = vunpack.c.h.b16 %v454
    %v984 = vunpack.c.l.b16 %v455
    %v985 = vunpack.c.h.b16 %v455
    %v986 = vunpack.c.l.b16 %v456
    %v987 = vunpack.c.h.b16 %v456
    %v988 = vunpack.c.l.b16 %v457
    %v989 = vunpack.c.h.b16 %v457
    %v990 = vunpack.c.l.b16 %v458
    %v991 = vunpack.c.h.b16 %v458
    %v992 = vunpack.c.l.b16 %v459
    %v993 = vunpack.c.h.b16 %v459
    %v994 = vunpack.c.l.b16 %v460
    %v995 = vunpack.c.h.b16 %v460
    %v996 = vunpack.c.l.b16 %v461
    %v997 = vunpack.c.h.b16 %v461
    %v998 = vunpack.c.l.b16 %v462
    %v999 = vunpack.c.h.b16 %v462
    %v1000 = vunpack.c.l.b16 %v463
    %v1001 = vunpack.c.h.b16 %v463
    %v1002 = vunpack.c.l.b16 %v464
    %v1003 = vunpack.c.h.b16 %v464
    %v1004 = vunpack.c.l.b16 %v465
    %v1005 = vunpack.c.h.b16 %v465
    %v1006 = vunpack.c.l.b16 %v466
    %v1007 = vunpack.c.h.b16 %v466
    %v1008 = vunpack.c.l.b16 %v467
    %v1009 = vunpack.c.h.b16 %v467
    %v1010 = vunpack.c.l.b16 %v468
    %v1011 = vunpack.c.h.b16 %v468
    %v1012 = vunpack.c.l.b16 %v469
    %v1013 = vunpack.c.h.b16 %v469
    %v1014 = vunpack.c.l.b16 %v470
    %v1015 = vunpack.c.h.b16 %v470
    %v1016 = vunpack.c.l.b16 %v471
    %v1017 = vunpack.c.h.b16 %v471
    %v1018 = vunpack.c.l.b16 %v472
    %v1019 = vunpack.c.h.b16 %v472
    %v1020 = vunpack.c.l.b16 %v473
    %v1021 = vunpack.c.h.b16 %v473
    %v1022 = vunpack.c.l.b16 %v474
    %v1023 = vunpack.c.h.b16 %v474
    %v1024 = vunpack.c.l.b16 %v475
    %v1025 = vunpack.c.h.b16 %v475
    %v1026 = vunpack.c.l.b16 %v476
    %v1027 = vunpack.c.h.b16 %v476
    %v1028 = vunpack.c.l.b16 %v477
    %v1029 = vunpack.c.h.b16 %v477
    %v1030 = vunpack.c.l.b16 %v478
    %v1031 = vunpack.c.h.b16 %v478
    %v1032 = vunpack.c.l.b16 %v479
    %v1033 = vunpack.c.h.b16 %v479
    %v1034 = vunpack.c.l.b16 %v480
    %v1035 = vunpack.c.h.b16 %v480
    %v1036 = vunpack.c.l.b16 %v481
    %v1037 = vunpack.c.h.b16 %v481
    %v1038 = vunpack.c.l.b16 %v482
    %v1039 = vunpack.c.h.b16 %v482
    %v1040 = vunpack.c.l.b16 %v483
    %v1041 = vunpack.c.h.b16 %v483
    %v1042 = vunpack.c.l.b16 %v484
    %v1043 = vunpack.c.h.b16 %v484
    %v1044 = vunpack.c.l.b16 %v485
    %v1045 = vunpack.c.h.b16 %v485
    %v1046 = vunpack.c.l.b16 %v486
    %v1047 = vunpack.c.h.b16 %v486
    %v1048 = vunpack.c.l.b16 %v487
    %v1049 = vunpack.c.h.b16 %v487
    %v1050 = vunpack.c.l.b16 %v488
    %v1051 = vunpack.c.h.b16 %v488
    %v1052 = vunpack.c.l.b16 %v489
    %v1053 = vunpack.c.h.b16 %v489
    %v1054 = vunpack.c.l.b16 %v490
    %v1055 = vunpack.c.h.b16 %v490
    %v1056 = vunpack.c.l.b16 %v491
    %v1057 = vunpack.c.h.b16 %v491
    %v1058 = vunpack.c.l.b16 %v492
    %v1059 = vunpack.c.h.b16 %v492
    %v1060 = vunpack.c.l.b16 %v493
    %v1061 = vunpack.c.h.b16 %v493
    %v1062 = vunpack.c.l.b16 %v494
    %v1063 = vunpack.c.h.b16 %v494
    %v1064 = vunpack.c.l.b16 %v495
    %v1065 = vunpack.c.h.b16 %v495
    %v1066 = vunpack.c.l.b16 %v496
    %v1067 = vunpack.c.h.b16 %v496
    %v1068 = vunpack.c.l.b16 %v497
    %v1069 = vunpack.c.h.b16 %v497
    %v1070 = vunpack.c.l.b16 %v498
    %v1071 = vunpack.c.h.b16 %v498
    %v1072 = vunpack.c.l.b16 %v499
    %v1073 = vunpack.c.h.b16 %v499
    %v1074 = vunpack.c.l.b16 %v500
    %v1075 = vunpack.c.h.b16 %v500
    %v1076 = vunpack.c.l.b16 %v501
    %v1077 = vunpack.c.h.b16 %v501
    %v1078 = vunpack.c.l.b16 %v502
    %v1079 = vunpack.c.h.b16 %v502
    %v1080 = vunpack.c.l.b16 %v503
    %v1081 = vunpack.c.h.b16 %v503
    %v1082 = vunpack.c.l.b16 %v504
    %v1083 = vunpack.c.h.b16 %v504
    %v1084 = vunpack.c.l.b16 %v505
    %v1085 = vunpack.c.h.b16 %v505
    %v1086 = vunpack.c.l.b16 %v506
    %v1087 = vunpack.c.h.b16 %v506
    %v1088 = vunpack.c.l.b16 %v507
    %v1089 = vunpack.c.h.b16 %v507
    %v1090 = vunpack.c.l.b16 %v508
    %v1091 = vunpack.c.h.b16 %v508
    %v1092 = vunpack.c.l.b16 %v509
    %v1093 = vunpack.c.h.b16 %v509
    %v1094 = vunpack.c.l.b16 %v510
    %v1095 = vunpack.c.h.b16 %v510
    %v1096 = vunpack.c.l.b16 %v511
    %v1097 = vunpack.c.h.b16 %v511
    %v1098 = vunpack.c.l.b16 %v512
    %v1099 = vunpack.c.h.b16 %v512
    %v1100 = vunpack.c.l.b16 %v513
    %v1101 = vunpack.c.h.b16 %v513
    %v1102 = vpack.c.b16 %v714, %v710
    %v1103 = vpack.c.b16 %v715, %v711
    %v1104 = vpack.c.b16 %v716, %v712
    %v1105 = vpack.c.b16 %v717, %v713
    %v1106 = vpack.c.b16 %v722, %v718
    %v1107 = vpack.c.b16 %v723, %v719
    %v1108 = vpack.c.b16 %v724, %v720
    %v1109 = vpack.c.b16 %v725, %v721
    %v1110 = vpack.c.b16 %v730, %v726
    %v1111 = vpack.c.b16 %v731, %v727
    %v1112 = vpack.c.b16 %v732, %v728
    %v1113 = vpack.c.b16 %v733, %v729
    %v1114 = vpack.c.b16 %v738, %v734
    %v1115 = vpack.c.b16 %v739, %v735
    %v1116 = vpack.c.b16 %v740, %v736
    %v1117 = vpack.c.b16 %v741, %v737
    %v1118 = vpack.c.b16 %v746, %v742
    %v1119 = vpack.c.b16 %v747, %v743
    %v1120 = vpack.c.b16 %v748, %v744
    %v1121 = vpack.c.b16 %v749, %v745
    %v1122 = vpack.c.b16 %v754, %v750
    %v1123 = vpack.c.b16 %v755, %v751
    %v1124 = vpack.c.b16 %v756, %v752
    %v1125 = vpack.c.b16 %v757, %v753
    %v1126 = vpack.c.b16 %v762, %v758
    %v1127 = vpack.c.b16 %v763, %v759
    %v1128 = vpack.c.b16 %v764, %v760
    %v1129 = vpack.c.b16 %v765, %v761
    %v1130 = vpack.c.b16 %v770, %v766
    %v1131 = vpack.c.b16 %v771, %v767
    %v1132 = vpack.c.b16 %v772, %v768
    %v1133 = vpack.c.b16 %v773, %v769
    %v1134 = vpack.c.b16 %v778, %v774
    %v1135 = vpack.c.b16 %v779, %v775
    %v1136 = vpack.c.b16 %v780, %v776
    %v1137 = vpack.c.b16 %v781, %v777
    %v1138 = vpack.c.b16 %v786, %v782
    %v1139 = vpack.c.b16 %v787, %v783
    %v1140 = vpack.c.b16 %v788, %v784
    %v1141 = vpack.c.b16 %v789, %v785
    %v1142 = vpack.c.b16 %v794, %v790
    %v1143 = vpack.c.b16 %v795, %v791
    %v1144 = vpack.c.b16 %v796, %v792
    %v1145 = vpack.c.b16 %v797, %v793
    %v1146 = vpack.c.b16 %v802, %v798
    %v1147 = vpack.c.b16 %v803, %v799
    %v1148 = vpack.c.b16 %v804, %v800
    %v1149 = vpack.c.b16 %v805, %v801
    %v1150 = vpack.c.b16 %v810, %v806
    %v1151 = vpack.c.b16 %v811, %v807
    %v1152 = vpack.c.b16 %v812, %v808
    %v1153 = vpack.c.b16 %v813, %v809
    %v1154 = vpack.c.b16 %v818, %v814
    %v1155 = vpack.c.b16 %v819, %v815
    %v1156 = vpack.c.b16 %v820, %v816
    %v1157 = vpack.c.b16 %v821, %v817
    %v1158 = vpack.c.b16 %v826, %v822
    %v1159 = vpack.c.b16 %v827, %v823
    %v1160 = vpack.c.b16 %v828, %v824
    %v1161 = vpack.c.b16 %v829, %v825
    %v1162 = vpack.c.b16 %v834, %v830
    %v1163 = vpack.c.b16 %v835, %v831
    %v1164 = vpack.c.b16 %v836, %v832
    %v1165 = vpack.c.b16 %v837, %v833
    %v1166 = vpack.c.b16 %v842, %v838
    %v1167 = vpack.c.b16 %v843, %v839
    %v1168 = vpack.c.b16 %v844, %v840
    %v1169 = vpack.c.b16 %v845, %v841
    %v1170 = vpack.c.b16 %v850, %v846
    %v1171 = vpack.c.b16 %v851, %v847
    %v1172 = vpack.c.b16 %v852, %v848
    %v1173 = vpack.c.b16 %v853, %v849
    %v1174 = vpack.c.b16 %v858, %v854
    %v1175 = vpack.c.b16 %v859, %v855
    %v1176 = vpack.c.b16 %v860, %v856
    %v1177 = vpack.c.b16 %v861, %v857
    %v1178 = vpack.c.b16 %v866, %v862
    %v1179 = vpack.c.b16 %v867, %v863
    %v1180 = vpack.c.b16 %v868, %v864
    %v1181 = vpack.c.b16 %v869, %v865
    %v1182 = vpack.c.b16 %v874, %v870
    %v1183 = vpack.c.b16 %v875, %v871
    %v1184 = vpack.c.b16 %v876, %v872
    %v1185 = vpack.c.b16 %v877, %v873
    %v1186 = vpack.c.b16 %v882, %v878
    %v1187 = vpack.c.b16 %v883, %v879
    %v1188 = vpack.c.b16 %v884, %v880
    %v1189 = vpack.c.b16 %v885, %v881
    %v1190 = vpack.c.b16 %v890, %v886
    %v1191 = vpack.c.b16 %v891, %v887
    %v1192 = vpack.c.b16 %v892, %v888
    %v1193 = vpack.c.b16 %v893, %v889
    %v1194 = vpack.c.b16 %v898, %v894
    %v1195 = vpack.c.b16 %v899, %v895
    %v1196 = vpack.c.b16 %v900, %v896
    %v1197 = vpack.c.b16 %v901, %v897
    %v1198 = vpack.c.b16 %v906, %v902
    %v1199 = vpack.c.b16 %v907, %v903
    %v1200 = vpack.c.b16 %v908, %v904
    %v1201 = vpack.c.b16 %v909, %v905
    %v1202 = vpack.c.b16 %v914, %v910
    %v1203 = vpack.c.b16 %v915, %v911
    %v1204 = vpack.c.b16 %v916, %v912
    %v1205 = vpack.c.b16 %v917, %v913
    %v1206 = vpack.c.b16 %v922, %v918
    %v1207 = vpack.c.b16 %v923, %v919
    %v1208 = vpack.c.b16 %v924, %v920
    %v1209 = vpack.c.b16 %v925, %v921
    %v1210 = vpack.c.b16 %v930, %v926
    %v1211 = vpack.c.b16 %v931, %v927
    %v1212 = vpack.c.b16 %v932, %v928
    %v1213 = vpack.c.b16 %v933, %v929
    %v1214 = vpack.c.b16 %v938, %v934
    %v1215 = vpack.c.b16 %v939, %v935
    %v1216 = vpack.c.b16 %v940, %v936
    %v1217 = vpack.c.b16 %v941, %v937
    %v1218 = vpack.c.b16 %v946, %v942
    %v1219 = vpack.c.b16 %v947, %v943
    %v1220 = vpack.c.b16 %v948, %v944
    %v1221 = vpack.c.b16 %v949, %v945
    %v1222 = vpack.c.b16 %v954, %v950
    %v1223 = vpack.c.b16 %v955, %v951
    %v1224 = vpack.c.b16 %v956, %v952
    %v1225 = vpack.c.b16 %v957, %v953
    %v1226 = vpack.c.b16 %v962, %v958
    %v1227 = vpack.c.b16 %v963, %v959
    %v1228 = vpack.c.b16 %v964, %v960
    %v1229 = vpack.c.b16 %v965, %v961
    %v1230 = vpack.c.b16 %v970, %v966
    %v1231 = vpack.c.b16 %v971, %v967
    %v1232 = vpack.c.b16 %v972, %v968
    %v1233 = vpack.c.b16 %v973, %v969
    %v1234 = vpack.c.b16 %v978, %v974
    %v1235 = vpack.c.b16 %v979, %v975
    %v1236 = vpack.c.b16 %v980, %v976
    %v1237 = vpack.c.b16 %v981, %v977
    %v1238 = vpack.c.b16 %v986, %v982
    %v1239 = vpack.c.b16 %v987, %v983
    %v1240 = vpack.c.b16 %v988, %v984
    %v1241 = vpack.c.b16 %v989, %v985
    %v1242 = vpack.c.b16 %v994, %v990
    %v1243 = vpack.c.b16 %v995, %v991
    %v1244 = vpack.c.b16 %v996, %v992
    %v1245 = vpack.c.b16 %v997, %v993
    %v1246 = vpack.c.b16 %v1002, %v998
    %v1247 = vpack.c.b16 %v1003, %v999
    %v1248 = vpack.c.b16 %v1004, %v1000
    %v1249 = vpack.c.b16 %v1005, %v1001
    %v1250 = vpack.c.b16 %v1010, %v1006
    %v1251 = vpack.c.b16 %v1011, %v1007
    %v1252 = vpack.c.b16 %v1012, %v1008
    %v1253 = vpack.c.b16 %v1013, %v1009
    %v1254 = vpack.c.b16 %v1018, %v1014
    %v1255 = vpack.c.b16 %v1019, %v1015
    %v1256 = vpack.c.b16 %v1020, %v1016
    %v1257 = vpack.c.b16 %v1021, %v1017
    %v1258 = vpack.c.b16 %v1026, %v1022
    %v1259 = vpack.c.b16 %v1027, %v1023
    %v1260 = vpack.c.b16 %v1028, %v1024
    %v1261 = vpack.c.b16 %v1029, %v1025
    %v1262 = vpack.c.b16 %v1034, %v1030
    %v1263 = vpack.c.b16 %v1035, %v1031
    %v1264 = vpack.c.b16 %v1036, %v1032
    %v1265 = vpack.c.b16 %v1037, %v1033
    %v1266 = vpack.c.b16 %v1042, %v1038
    %v1267 = vpack.c.b16 %v1043, %v1039
    %v1268 = vpack.c.b16 %v1044, %v1040
    %v1269 = vpack.c.b16 %v1045, %v1041
    %v1270 = vpack.c.b16 %v1050, %v1046
    %v1271 = vpack.c.b16 %v1051, %v1047
    %v1272 = vpack.c.b16 %v1052, %v1048
    %v1273 = vpack.c.b16 %v1053, %v1049
    %v1274 = vpack.c.b16 %v1058, %v1054
    %v1275 = vpack.c.b16 %v1059, %v1055
    %v1276 = vpack.c.b16 %v1060, %v1056
    %v1277 = vpack.c.b16 %v1061, %v1057
    %v1278 = vpack.c.b16 %v1066, %v1062
    %v1279 = vpack.c.b16 %v1067, %v1063
    %v1280 = vpack.c.b16 %v1068, %v1064
    %v1281 = vpack.c.b16 %v1069, %v1065
    %v1282 = vpack.c.b16 %v1074, %v1070
    %v1283 = vpack.c.b16 %v1075, %v1071
    %v1284 = vpack.c.b16 %v1076, %v1072
    %v1285 = vpack.c.b16 %v1077, %v1073
    %v1286 = vpack.c.b16 %v1082, %v1078
    %v1287 = vpack.c.b16 %v1083, %v1079
    %v1288 = vpack.c.b16 %v1084, %v1080
    %v1289 = vpack.c.b16 %v1085, %v1081
    %v1290 = vpack.c.b16 %v1090, %v1086
    %v1291 = vpack.c.b16 %v1091, %v1087
    %v1292 = vpack.c.b16 %v1092, %v1088
    %v1293 = vpack.c.b16 %v1093, %v1089
    %v1294 = vpack.c.b16 %v1098, %v1094
    %v1295 = vpack.c.b16 %v1099, %v1095
    %v1296 = vpack.c.b16 %v1100, %v1096
    %v1297 = vpack.c.b16 %v1101, %v1097
    %vm1494 = vcmask 130048
    %v1496 = vsel %vm1494, %v219, 0
    %1498 = vmatprep.subr.bf16.mxu0 %v1103
    %1499 = vmatpush1.bf16.msra.mxu0 %v1102
    %1500 = vmatprep.subr.bf16.mxu0 %v1107
    %1501 = vmatpush1.bf16.msra.mxu0 %v1106
    %1502 = vmatprep.subr.bf16.mxu0 %v1111
    %1503 = vmatpush1.bf16.msra.mxu0 %v1110
    %1504 = vmatprep.subr.bf16.mxu0 %v1115
    %1505 = vmatpush1.bf16.msra.mxu0 %v1114
    %1506 = vmatprep.subr.bf16.mxu0 %v1119
    %1507 = vmatpush1.bf16.msra.mxu0 %v1118
    %1508 = vmatprep.subr.bf16.mxu0 %v1123
    %1509 = vmatpush1.bf16.msra.mxu0 %v1122
    %1510 = vmatprep.subr.bf16.mxu0 %v1127
    %1511 = vmatpush1.bf16.msra.mxu0 %v1126
    %1512 = vmatprep.subr.bf16.mxu0 %v1131
    %1513 = vmatpush1.bf16.msra.mxu0 %v1130
    %1514 = vmatprep.subr.bf16.mxu0 %v1135
    %1515 = vmatpush1.bf16.msra.mxu0 %v1134
    %1516 = vmatprep.subr.bf16.mxu0 %v1139
    %1517 = vmatpush1.bf16.msra.mxu0 %v1138
    %1518 = vmatprep.subr.bf16.mxu0 %v1143
    %1519 = vmatpush1.bf16.msra.mxu0 %v1142
    %1520 = vmatprep.subr.bf16.mxu0 %v1147
    %1521 = vmatpush1.bf16.msra.mxu0 %v1146
    %1522 = vmatprep.subr.bf16.mxu0 %v1151
    %1523 = vmatpush1.bf16.msra.mxu0 %v1150
    %1524 = vmatprep.subr.bf16.mxu0 %v1155
    %1525 = vmatpush1.bf16.msra.mxu0 %v1154
    %1526 = vmatprep.subr.bf16.mxu0 %v1159
    %1527 = vmatpush1.bf16.msra.mxu0 %v1158
    %1528 = vmatprep.subr.bf16.mxu0 %v1163
    %1529 = vmatpush1.bf16.msra.mxu0 %v1162
    %1530 = vmatprep.mubr.bf16.mxu0 %v214
    %1531 = vmatmul.mubr.bf16.gmra.mrb[0].mxu0 %v213
    %v1532 = vpop.f32.mrb[0].mxu0
    %v1533 = vadd.f32 0.0, %v1532
    %v1534 = vpop.f32.mrb[0].mxu0
    %v1535 = vadd.f32 0.0, %v1534
    %v1536 = vpop.f32.mrb[0].mxu0
    %v1537 = vpop.f32.mrb[0].mxu0
    %1538 = vdwg.mxu0
    %1539 = vmatprep.subr.bf16.mxu0 %v1167
    %1540 = vmatpush1.bf16.msra.mxu0 %v1166
    %1541 = vmatprep.subr.bf16.mxu0 %v1171
    %1542 = vmatpush1.bf16.msra.mxu0 %v1170
    %1543 = vmatprep.subr.bf16.mxu0 %v1175
    %1544 = vmatpush1.bf16.msra.mxu0 %v1174
    %1545 = vmatprep.subr.bf16.mxu0 %v1179
    %1546 = vmatpush1.bf16.msra.mxu0 %v1178
    %1547 = vmatprep.subr.bf16.mxu0 %v1183
    %1548 = vmatpush1.bf16.msra.mxu0 %v1182
    %1549 = vmatprep.subr.bf16.mxu0 %v1187
    %1550 = vmatpush1.bf16.msra.mxu0 %v1186
    %1551 = vmatprep.subr.bf16.mxu0 %v1191
    %1552 = vmatpush1.bf16.msra.mxu0 %v1190
    %1553 = vmatprep.subr.bf16.mxu0 %v1195
    %1554 = vmatpush1.bf16.msra.mxu0 %v1194
    %1555 = vmatprep.subr.bf16.mxu0 %v1199
    %1556 = vmatpush1.bf16.msra.mxu0 %v1198
    %1557 = vmatprep.subr.bf16.mxu0 %v1203
    %1558 = vmatpush1.bf16.msra.mxu0 %v1202
    %1559 = vmatprep.subr.bf16.mxu0 %v1207
    %1560 = vmatpush1.bf16.msra.mxu0 %v1206
    %1561 = vmatprep.subr.bf16.mxu0 %v1211
    %1562 = vmatpush1.bf16.msra.mxu0 %v1210
    %1563 = vmatprep.subr.bf16.mxu0 %v1215
    %1564 = vmatpush1.bf16.msra.mxu0 %v1214
    %1565 = vmatprep.subr.bf16.mxu0 %v1219
    %1566 = vmatpush1.bf16.msra.mxu0 %v1218
    %1567 = vmatprep.subr.bf16.mxu0 %v1223
    %1568 = vmatpush1.bf16.msra.mxu0 %v1222
    %1569 = vmatprep.subr.bf16.mxu0 %v1227
    %1570 = vmatpush1.bf16.msra.mxu0 %v1226
    %1571 = vmatprep.mubr.bf16.mxu0 %v216
    %1572 = vmatmul.mubr.bf16.gmra.mrb[0].mxu0 %v215
    %v1573 = vpop.f32.mrb[0].mxu0
    %v1574 = vadd.f32 %v1533, %v1573
    %v1575 = vpop.f32.mrb[0].mxu0
    %v1576 = vadd.f32 %v1535, %v1575
    %v1577 = vpop.f32.mrb[0].mxu0
    %v1578 = vpop.f32.mrb[0].mxu0
    %1579 = vdwg.mxu0
    %1580 = vmatprep.subr.bf16.mxu0 %v1231
    %1581 = vmatpush1.bf16.msra.mxu0 %v1230
    %1582 = vmatprep.subr.bf16.mxu0 %v1235
    %1583 = vmatpush1.bf16.msra.mxu0 %v1234
    %1584 = vmatprep.subr.bf16.mxu0 %v1239
    %1585 = vmatpush1.bf16.msra.mxu0 %v1238
    %1586 = vmatprep.subr.bf16.mxu0 %v1243
    %1587 = vmatpush1.bf16.msra.mxu0 %v1242
    %1588 = vmatprep.subr.bf16.mxu0 %v1247
    %1589 = vmatpush1.bf16.msra.mxu0 %v1246
    %1590 = vmatprep.subr.bf16.mxu0 %v1251
    %1591 = vmatpush1.bf16.msra.mxu0 %v1250
    %1592 = vmatprep.subr.bf16.mxu0 %v1255
    %1593 = vmatpush1.bf16.msra.mxu0 %v1254
    %1594 = vmatprep.subr.bf16.mxu0 %v1259
    %1595 = vmatpush1.bf16.msra.mxu0 %v1258
    %1596 = vmatprep.subr.bf16.mxu0 %v1263
    %1597 = vmatpush1.bf16.msra.mxu0 %v1262
    %1598 = vmatprep.subr.bf16.mxu0 %v1267
    %1599 = vmatpush1.bf16.msra.mxu0 %v1266
    %1600 = vmatprep.subr.bf16.mxu0 %v1271
    %1601 = vmatpush1.bf16.msra.mxu0 %v1270
    %1602 = vmatprep.subr.bf16.mxu0 %v1275
    %1603 = vmatpush1.bf16.msra.mxu0 %v1274
    %1604 = vmatprep.subr.bf16.mxu0 %v1279
    %1605 = vmatpush1.bf16.msra.mxu0 %v1278
    %1606 = vmatprep.subr.bf16.mxu0 %v1283
    %1607 = vmatpush1.bf16.msra.mxu0 %v1282
    %1608 = vmatprep.subr.bf16.mxu0 %v1287
    %1609 = vmatpush1.bf16.msra.mxu0 %v1286
    %1610 = vmatprep.subr.bf16.mxu0 %v1291
    %1611 = vmatpush1.bf16.msra.mxu0 %v1290
    %1612 = vmatprep.mubr.bf16.mxu0 %v218
    %1613 = vmatmul.mubr.bf16.gmra.mrb[0].mxu0 %v217
    %v1614 = vpop.f32.mrb[0].mxu0
    %v1615 = vadd.f32 %v1574, %v1614
    %v1616 = vpop.f32.mrb[0].mxu0
    %v1617 = vadd.f32 %v1576, %v1616
    %v1618 = vpop.f32.mrb[0].mxu0
    %v1619 = vpop.f32.mrb[0].mxu0
    %1620 = vdwg.mxu0
    %1621 = vmatprep.subr.bf16.mxu0 %v1295
    %1622 = vmatpush1.bf16.msra.mxu0 %v1294
    %1623 = vmatprep.subr.bf16.mxu0 0
    %1624 = vmatpush1.bf16.msra.mxu0 0
    %1625 = vmatprep.subr.bf16.mxu0 0
    %1626 = vmatpush1.bf16.msra.mxu0 0
    %1627 = vmatprep.subr.bf16.mxu0 0
    %1628 = vmatpush1.bf16.msra.mxu0 0
    %1629 = vmatprep.subr.bf16.mxu0 0
    %1630 = vmatpush1.bf16.msra.mxu0 0
    %1631 = vmatprep.subr.bf16.mxu0 0
    %1632 = vmatpush1.bf16.msra.mxu0 0
    %1633 = vmatprep.subr.bf16.mxu0 0
    %1634 = vmatpush1.bf16.msra.mxu0 0
    %1635 = vmatprep.subr.bf16.mxu0 0
    %1636 = vmatpush1.bf16.msra.mxu0 0
    %1637 = vmatprep.subr.bf16.mxu0 0
    %1638 = vmatpush1.bf16.msra.mxu0 0
    %1639 = vmatprep.subr.bf16.mxu0 0
    %1640 = vmatpush1.bf16.msra.mxu0 0
    %1641 = vmatprep.subr.bf16.mxu0 0
    %1642 = vmatpush1.bf16.msra.mxu0 0
    %1643 = vmatprep.subr.bf16.mxu0 0
    %1644 = vmatpush1.bf16.msra.mxu0 0
    %1645 = vmatprep.subr.bf16.mxu0 0
    %1646 = vmatpush1.bf16.msra.mxu0 0
    %1647 = vmatprep.subr.bf16.mxu0 0
    %1648 = vmatpush1.bf16.msra.mxu0 0
    %1649 = vmatprep.subr.bf16.mxu0 0
    %1650 = vmatpush1.bf16.msra.mxu0 0
    %1651 = vmatprep.subr.bf16.mxu0 0
    %1652 = vmatpush1.bf16.msra.mxu0 0
    %1653 = vmatprep.mubr.bf16.mxu0 0
    %1654 = vmatmul.mubr.bf16.gmra.mrb[0].mxu0 %v1496
    %v1655 = vpop.f32.mrb[0].mxu0
    %v1656 = vadd.f32 %v1615, %v1655
    %v1657 = vpop.f32.mrb[0].mxu0
    %v1658 = vadd.f32 %v1617, %v1657
    %v1659 = vpop.f32.mrb[0].mxu0
    %v1660 = vpop.f32.mrb[0].mxu0
    %1661 = vdwg.mxu0
    %1662 = vmatprep.subr.bf16.mxu0 %v1105
    %1663 = vmatpush1.bf16.msra.mxu0 %v1104
    %1664 = vmatprep.subr.bf16.mxu0 %v1109
    %1665 = vmatpush1.bf16.msra.mxu0 %v1108
    %1666 = vmatprep.subr.bf16.mxu0 %v1113
    %1667 = vmatpush1.bf16.msra.mxu0 %v1112
    %1668 = vmatprep.subr.bf16.mxu0 %v1117
    %1669 = vmatpush1.bf16.msra.mxu0 %v1116
    %1670 = vmatprep.subr.bf16.mxu0 %v1121
    %1671 = vmatpush1.bf16.msra.mxu0 %v1120
    %1672 = vmatprep.subr.bf16.mxu0 %v1125
    %1673 = vmatpush1.bf16.msra.mxu0 %v1124
    %1674 = vmatprep.subr.bf16.mxu0 %v1129
    %1675 = vmatpush1.bf16.msra.mxu0 %v1128
    %1676 = vmatprep.subr.bf16.mxu0 %v1133
    %1677 = vmatpush1.bf16.msra.mxu0 %v1132
    %1678 = vmatprep.subr.bf16.mxu0 %v1137
    %1679 = vmatpush1.bf16.msra.mxu0 %v1136
    %1680 = vmatprep.subr.bf16.mxu0 %v1141
    %1681 = vmatpush1.bf16.msra.mxu0 %v1140
    %1682 = vmatprep.subr.bf16.mxu0 %v1145
    %1683 = vmatpush1.bf16.msra.mxu0 %v1144
    %1684 = vmatprep.subr.bf16.mxu0 %v1149
    %1685 = vmatpush1.bf16.msra.mxu0 %v1148
    %1686 = vmatprep.subr.bf16.mxu0 %v1153
    %1687 = vmatpush1.bf16.msra.mxu0 %v1152
    %1688 = vmatprep.subr.bf16.mxu0 %v1157
    %1689 = vmatpush1.bf16.msra.mxu0 %v1156
    %1690 = vmatprep.subr.bf16.mxu0 %v1161
    %1691 = vmatpush1.bf16.msra.mxu0 %v1160
    %1692 = vmatprep.subr.bf16.mxu0 %v1165
    %1693 = vmatpush1.bf16.msra.mxu0 %v1164
    %1694 = vmatprep.mubr.bf16.mxu0 %v214
    %1695 = vmatmul.mubr.bf16.gmra.mrb[0].mxu0 %v213
    %v1696 = vpop.f32.mrb[0].mxu0
    %v1697 = vadd.f32 0.0, %v1696
    %v1698 = vpop.f32.mrb[0].mxu0
    %v1699 = vadd.f32 0.0, %v1698
    %v1700 = vpop.f32.mrb[0].mxu0
    %v1701 = vpop.f32.mrb[0].mxu0
    %1702 = vdwg.mxu0
    %1703 = vmatprep.subr.bf16.mxu0 %v1169
    %1704 = vmatpush1.bf16.msra.mxu0 %v1168
    %1705 = vmatprep.subr.bf16.mxu0 %v1173
    %1706 = vmatpush1.bf16.msra.mxu0 %v1172
    %1707 = vmatprep.subr.bf16.mxu0 %v1177
    %1708 = vmatpush1.bf16.msra.mxu0 %v1176
    %1709 = vmatprep.subr.bf16.mxu0 %v1181
    %1710 = vmatpush1.bf16.msra.mxu0 %v1180
    %1711 = vmatprep.subr.bf16.mxu0 %v1185
    %1712 = vmatpush1.bf16.msra.mxu0 %v1184
    %1713 = vmatprep.subr.bf16.mxu0 %v1189
    %1714 = vmatpush1.bf16.msra.mxu0 %v1188
    %1715 = vmatprep.subr.bf16.mxu0 %v1193
    %1716 = vmatpush1.bf16.msra.mxu0 %v1192
    %1717 = vmatprep.subr.bf16.mxu0 %v1197
    %1718 = vmatpush1.bf16.msra.mxu0 %v1196
    %1719 = vmatprep.subr.bf16.mxu0 %v1201
    %1720 = vmatpush1.bf16.msra.mxu0 %v1200
    %1721 = vmatprep.subr.bf16.mxu0 %v1205
    %1722 = vmatpush1.bf16.msra.mxu0 %v1204
    %1723 = vmatprep.subr.bf16.mxu0 %v1209
    %1724 = vmatpush1.bf16.msra.mxu0 %v1208
    %1725 = vmatprep.subr.bf16.mxu0 %v1213
    %1726 = vmatpush1.bf16.msra.mxu0 %v1212
    %1727 = vmatprep.subr.bf16.mxu0 %v1217
    %1728 = vmatpush1.bf16.msra.mxu0 %v1216
    %1729 = vmatprep.subr.bf16.mxu0 %v1221
    %1730 = vmatpush1.bf16.msra.mxu0 %v1220
    %1731 = vmatprep.subr.bf16.mxu0 %v1225
    %1732 = vmatpush1.bf16.msra.mxu0 %v1224
    %1733 = vmatprep.subr.bf16.mxu0 %v1229
    %1734 = vmatpush1.bf16.msra.mxu0 %v1228
    %1735 = vmatprep.mubr.bf16.mxu0 %v216
    %1736 = vmatmul.mubr.bf16.gmra.mrb[0].mxu0 %v215
    %v1737 = vpop.f32.mrb[0].mxu0
    %v1738 = vadd.f32 %v1697, %v1737
    %v1739 = vpop.f32.mrb[0].mxu0
    %v1740 = vadd.f32 %v1699, %v1739
    %v1741 = vpop.f32.mrb[0].mxu0
    %v1742 = vpop.f32.mrb[0].mxu0
    %1743 = vdwg.mxu0
    %1744 = vmatprep.subr.bf16.mxu0 %v1233
    %1745 = vmatpush1.bf16.msra.mxu0 %v1232
    %1746 = vmatprep.subr.bf16.mxu0 %v1237
    %1747 = vmatpush1.bf16.msra.mxu0 %v1236
    %1748 = vmatprep.subr.bf16.mxu0 %v1241
    %1749 = vmatpush1.bf16.msra.mxu0 %v1240
    %1750 = vmatprep.subr.bf16.mxu0 %v1245
    %1751 = vmatpush1.bf16.msra.mxu0 %v1244
    %1752 = vmatprep.subr.bf16.mxu0 %v1249
    %1753 = vmatpush1.bf16.msra.mxu0 %v1248
    %1754 = vmatprep.subr.bf16.mxu0 %v1253
    %1755 = vmatpush1.bf16.msra.mxu0 %v1252
    %1756 = vmatprep.subr.bf16.mxu0 %v1257
    %1757 = vmatpush1.bf16.msra.mxu0 %v1256
    %1758 = vmatprep.subr.bf16.mxu0 %v1261
    %1759 = vmatpush1.bf16.msra.mxu0 %v1260
    %1760 = vmatprep.subr.bf16.mxu0 %v1265
    %1761 = vmatpush1.bf16.msra.mxu0 %v1264
    %1762 = vmatprep.subr.bf16.mxu0 %v1269
    %1763 = vmatpush1.bf16.msra.mxu0 %v1268
    %1764 = vmatprep.subr.bf16.mxu0 %v1273
    %1765 = vmatpush1.bf16.msra.mxu0 %v1272
    %1766 = vmatprep.subr.bf16.mxu0 %v1277
    %1767 = vmatpush1.bf16.msra.mxu0 %v1276
    %1768 = vmatprep.subr.bf16.mxu0 %v1281
    %1769 = vmatpush1.bf16.msra.mxu0 %v1280
    %1770 = vmatprep.subr.bf16.mxu0 %v1285
    %1771 = vmatpush1.bf16.msra.mxu0 %v1284
    %1772 = vmatprep.subr.bf16.mxu0 %v1289
    %1773 = vmatpush1.bf16.msra.mxu0 %v1288
    %1774 = vmatprep.subr.bf16.mxu0 %v1293
    %1775 = vmatpush1.bf16.msra.mxu0 %v1292
    %1776 = vmatprep.mubr.bf16.mxu0 %v218
    %1777 = vmatmul.mubr.bf16.gmra.mrb[0].mxu0 %v217
    %v1778 = vpop.f32.mrb[0].mxu0
    %v1779 = vadd.f32 %v1738, %v1778
    %v1780 = vpop.f32.mrb[0].mxu0
    %v1781 = vadd.f32 %v1740, %v1780
    %v1782 = vpop.f32.mrb[0].mxu0
    %v1783 = vpop.f32.mrb[0].mxu0
    %1784 = vdwg.mxu0
    %1785 = vmatprep.subr.bf16.mxu0 %v1297
    %1786 = vmatpush1.bf16.msra.mxu0 %v1296
    %1787 = vmatprep.subr.bf16.mxu0 0
    %1788 = vmatpush1.bf16.msra.mxu0 0
    %1789 = vmatprep.subr.bf16.mxu0 0
    %1790 = vmatpush1.bf16.msra.mxu0 0
    %1791 = vmatprep.subr.bf16.mxu0 0
    %1792 = vmatpush1.bf16.msra.mxu0 0
    %1793 = vmatprep.subr.bf16.mxu0 0
    %1794 = vmatpush1.bf16.msra.mxu0 0
    %1795 = vmatprep.subr.bf16.mxu0 0
    %1796 = vmatpush1.bf16.msra.mxu0 0
    %1797 = vmatprep.subr.bf16.mxu0 0
    %1798 = vmatpush1.bf16.msra.mxu0 0
    %1799 = vmatprep.subr.bf16.mxu0 0
    %1800 = vmatpush1.bf16.msra.mxu0 0
    %1801 = vmatprep.subr.bf16.mxu0 0
    %1802 = vmatpush1.bf16.msra.mxu0 0
    %1803 = vmatprep.subr.bf16.mxu0 0
    %1804 = vmatpush1.bf16.msra.mxu0 0
    %1805 = vmatprep.subr.bf16.mxu0 0
    %1806 = vmatpush1.bf16.msra.mxu0 0
    %1807 = vmatprep.subr.bf16.mxu0 0
    %1808 = vmatpush1.bf16.msra.mxu0 0
    %1809 = vmatprep.subr.bf16.mxu0 0
    %1810 = vmatpush1.bf16.msra.mxu0 0
    %1811 = vmatprep.subr.bf16.mxu0 0
    %1812 = vmatpush1.bf16.msra.mxu0 0
    %1813 = vmatprep.subr.bf16.mxu0 0
    %1814 = vmatpush1.bf16.msra.mxu0 0
    %1815 = vmatprep.subr.bf16.mxu0 0
    %1816 = vmatpush1.bf16.msra.mxu0 0
    %1817 = vmatprep.mubr.bf16.mxu0 0
    %1818 = vmatmul.mubr.bf16.gmra.mrb[0].mxu0 %v1496
    %v1819 = vpop.f32.mrb[0].mxu0
    %v1820 = vadd.f32 %v1779, %v1819
    %v1821 = vpop.f32.mrb[0].mxu0
    %v1822 = vadd.f32 %v1781, %v1821
    %v1823 = vpop.f32.mrb[0].mxu0
    %v1824 = vpop.f32.mrb[0].mxu0
    %1825 = vdwg.mxu0
    %v1826 = vld [vmem:[#allocation7] sm:$0xf]
    %v1828 = vlaneseq
    %v1829 = vshrl.u32 %v1828, 7
    %v1830 = vsub.s32 0, %v1829
    %v1831 = vrot.slane %v1826, %v1830
    %v1832 = vlaneseq
    %v1833 = vshrl.u32 %v1832, 7
    %v1834 = vsub.s32 1, %v1833
    %v1835 = vrot.slane %v1826, %v1834
    %v1836 = vlaneseq
    %v1837 = vshrl.u32 %v1836, 7
    %v1838 = vsub.s32 2, %v1837
    %v1839 = vrot.slane %v1826, %v1838
    %v1840 = vlaneseq
    %v1841 = vshrl.u32 %v1840, 7
    %v1842 = vsub.s32 3, %v1841
    %v1843 = vrot.slane %v1826, %v1842
    %v1848 = vmul.f32 %v1656, %v1831
    %v1849 = vmul.f32 %v1658, %v1835
    %v1850 = vmul.f32 %v1820, %v1839
    %v1851 = vmul.f32 %v1822, %v1843
    %v1852 = vld [vmem:[#allocation8] sm:$0xf]
    %v1854 = vlaneseq
    %v1855 = vshrl.u32 %v1854, 7
    %v1856 = vsub.s32 0, %v1855
    %v1857 = vrot.slane %v1852, %v1856
    %v1858 = vlaneseq
    %v1859 = vshrl.u32 %v1858, 7
    %v1860 = vsub.s32 1, %v1859
    %v1861 = vrot.slane %v1852, %v1860
    %v1862 = vlaneseq
    %v1863 = vshrl.u32 %v1862, 7
    %v1864 = vsub.s32 2, %v1863
    %v1865 = vrot.slane %v1852, %v1864
    %v1866 = vlaneseq
    %v1867 = vshrl.u32 %v1866, 7
    %v1868 = vsub.s32 3, %v1867
    %v1869 = vrot.slane %v1852, %v1868
    %v1874 = vadd.f32 %v1848, %v1857
    %v1875 = vadd.f32 %v1849, %v1861
    %v1876 = vadd.f32 %v1850, %v1865
    %v1877 = vadd.f32 %v1851, %v1869
    %v1878 = vmax.f32 %v1874, 0.0
    %v1879 = vmax.f32 %v1875, 0.0
    %v1880 = vmax.f32 %v1876, 0.0
    %v1881 = vmax.f32 %v1877, 0.0
    %v1882 = vpack.c.bf16 %v1878, %v1878
    %v1883 = vpack.c.bf16 %v1879, %v1879
    %v1884 = vpack.c.bf16 %v1880, %v1880
    %v1885 = vpack.c.bf16 %v1881, %v1881
    %v1886 = vld [vmem:[#allocation10] sm:$0xff]
    %v1887 = vld [vmem:[#allocation10 + $0x8] sm:$0xff]
    %v1888 = vld [vmem:[#allocation10 + $0x10] sm:$0xff]
    %v1889 = vld [vmem:[#allocation10 + $0x18] sm:$0xff]
    %v1890 = vld [vmem:[#allocation10 + $0x20] sm:$0xff]
    %v1891 = vld [vmem:[#allocation10 + $0x28] sm:$0xff]
    %v1892 = vld [vmem:[#allocation10 + $0x30] sm:$0xff]
    %v1893 = vld [vmem:[#allocation10 + $0x38] sm:$0xff]
    %v1894 = vld [vmem:[#allocation10 + $0x40] sm:$0xff]
    %v1895 = vld [vmem:[#allocation10 + $0x48] sm:$0xff]
    %v1896 = vld [vmem:[#allocation10 + $0x50] sm:$0xff]
    %v1897 = vld [vmem:[#allocation10 + $0x58] sm:$0xff]
    %v1898 = vld [vmem:[#allocation10 + $0x60] sm:$0xff]
    %v1899 = vld [vmem:[#allocation10 + $0x68] sm:$0xff]
    %v1900 = vld [vmem:[#allocation10 + $0x70] sm:$0xff]
    %v1901 = vld [vmem:[#allocation10 + $0x78] sm:$0xff]
    %v1902 = vld [vmem:[#allocation10 + $0x80] sm:$0xff]
    %v1903 = vld [vmem:[#allocation10 + $0x88] sm:$0xff]
    %v1904 = vld [vmem:[#allocation10 + $0x90] sm:$0xff]
    %v1905 = vld [vmem:[#allocation10 + $0x98] sm:$0xff]
    %v1906 = vld [vmem:[#allocation10 + $0xa0] sm:$0xff]
    %v1907 = vld [vmem:[#allocation10 + $0xa8] sm:$0xff]
    %v1908 = vld [vmem:[#allocation10 + $0xb0] sm:$0xff]
    %v1909 = vld [vmem:[#allocation10 + $0xb8] sm:$0xff]
    %v1910 = vld [vmem:[#allocation10 + $0xc0] sm:$0xff]
    %v1911 = vld [vmem:[#allocation10 + $0xc8] sm:$0xff]
    %v1912 = vld [vmem:[#allocation10 + $0xd0] sm:$0xff]
    %v1913 = vld [vmem:[#allocation10 + $0xd8] sm:$0xff]
    %v1914 = vld [vmem:[#allocation10 + $0xe0] sm:$0xff]
    %v1915 = vld [vmem:[#allocation10 + $0xe8] sm:$0xff]
    %v1916 = vld [vmem:[#allocation10 + $0xf0] sm:$0xff]
    %v1917 = vld [vmem:[#allocation10 + $0xf8] sm:$0xff]
    %v1918 = vunpack.c.l.s8.bf16 %v1886
    %v1919 = vunpack.c.l.s8.bf16 %v1887
    %v1920 = vunpack.c.h.s8.bf16 %v1886
    %v1921 = vunpack.c.h.s8.bf16 %v1887
    %v1922 = vunpack.c.l.s8.bf16 %v1888
    %v1923 = vunpack.c.l.s8.bf16 %v1889
    %v1924 = vunpack.c.h.s8.bf16 %v1888
    %v1925 = vunpack.c.h.s8.bf16 %v1889
    %v1926 = vunpack.c.l.s8.bf16 %v1890
    %v1927 = vunpack.c.l.s8.bf16 %v1891
    %v1928 = vunpack.c.h.s8.bf16 %v1890
    %v1929 = vunpack.c.h.s8.bf16 %v1891
    %v1930 = vunpack.c.l.s8.bf16 %v1892
    %v1931 = vunpack.c.l.s8.bf16 %v1893
    %v1932 = vunpack.c.h.s8.bf16 %v1892
    %v1933 = vunpack.c.h.s8.bf16 %v1893
    %v1934 = vunpack.c.l.s8.bf16 %v1894
    %v1935 = vunpack.c.l.s8.bf16 %v1895
    %v1936 = vunpack.c.h.s8.bf16 %v1894
    %v1937 = vunpack.c.h.s8.bf16 %v1895
    %v1938 = vunpack.c.l.s8.bf16 %v1896
    %v1939 = vunpack.c.l.s8.bf16 %v1897
    %v1940 = vunpack.c.h.s8.bf16 %v1896
    %v1941 = vunpack.c.h.s8.bf16 %v1897
    %v1942 = vunpack.c.l.s8.bf16 %v1898
    %v1943 = vunpack.c.l.s8.bf16 %v1899
    %v1944 = vunpack.c.h.s8.bf16 %v1898
    %v1945 = vunpack.c.h.s8.bf16 %v1899
    %v1946 = vunpack.c.l.s8.bf16 %v1900
    %v1947 = vunpack.c.l.s8.bf16 %v1901
    %v1948 = vunpack.c.h.s8.bf16 %v1900
    %v1949 = vunpack.c.h.s8.bf16 %v1901
    %v1950 = vunpack.c.l.s8.bf16 %v1902
    %v1951 = vunpack.c.l.s8.bf16 %v1903
    %v1952 = vunpack.c.h.s8.bf16 %v1902
    %v1953 = vunpack.c.h.s8.bf16 %v1903
    %v1954 = vunpack.c.l.s8.bf16 %v1904
    %v1955 = vunpack.c.l.s8.bf16 %v1905
    %v1956 = vunpack.c.h.s8.bf16 %v1904
    %v1957 = vunpack.c.h.s8.bf16 %v1905
    %v1958 = vunpack.c.l.s8.bf16 %v1906
    %v1959 = vunpack.c.l.s8.bf16 %v1907
    %v1960 = vunpack.c.h.s8.bf16 %v1906
    %v1961 = vunpack.c.h.s8.bf16 %v1907
    %v1962 = vunpack.c.l.s8.bf16 %v1908
    %v1963 = vunpack.c.l.s8.bf16 %v1909
    %v1964 = vunpack.c.h.s8.bf16 %v1908
    %v1965 = vunpack.c.h.s8.bf16 %v1909
    %v1966 = vunpack.c.l.s8.bf16 %v1910
    %v1967 = vunpack.c.l.s8.bf16 %v1911
    %v1968 = vunpack.c.h.s8.bf16 %v1910
    %v1969 = vunpack.c.h.s8.bf16 %v1911
    %v1970 = vunpack.c.l.s8.bf16 %v1912
    %v1971 = vunpack.c.l.s8.bf16 %v1913
    %v1972 = vunpack.c.h.s8.bf16 %v1912
    %v1973 = vunpack.c.h.s8.bf16 %v1913
    %v1974 = vunpack.c.l.s8.bf16 %v1914
    %v1975 = vunpack.c.l.s8.bf16 %v1915
    %v1976 = vunpack.c.h.s8.bf16 %v1914
    %v1977 = vunpack.c.h.s8.bf16 %v1915
    %v1978 = vunpack.c.l.s8.bf16 %v1916
    %v1979 = vunpack.c.l.s8.bf16 %v1917
    %v1980 = vunpack.c.h.s8.bf16 %v1916
    %v1981 = vunpack.c.h.s8.bf16 %v1917
    %1982 = vmatprep.subr.bf16.mxu0 %v1919
    %1983 = vmatpush1.bf16.msra.mxu0 %v1918
    %1984 = vmatprep.subr.bf16.mxu0 %v1921
    %1985 = vmatpush1.bf16.msra.mxu0 %v1920
    %1986 = vmatprep.subr.bf16.mxu0 %v1923
    %1987 = vmatpush1.bf16.msra.mxu0 %v1922
    %1988 = vmatprep.subr.bf16.mxu0 %v1925
    %1989 = vmatpush1.bf16.msra.mxu0 %v1924
    %1990 = vmatprep.subr.bf16.mxu0 %v1927
    %1991 = vmatpush1.bf16.msra.mxu0 %v1926
    %1992 = vmatprep.subr.bf16.mxu0 %v1929
    %1993 = vmatpush1.bf16.msra.mxu0 %v1928
    %1994 = vmatprep.subr.bf16.mxu0 %v1931
    %1995 = vmatpush1.bf16.msra.mxu0 %v1930
    %1996 = vmatprep.subr.bf16.mxu0 %v1933
    %1997 = vmatpush1.bf16.msra.mxu0 %v1932
    %1998 = vmatprep.subr.bf16.mxu0 %v1935
    %1999 = vmatpush1.bf16.msra.mxu0 %v1934
    %2000 = vmatprep.subr.bf16.mxu0 %v1937
    %2001 = vmatpush1.bf16.msra.mxu0 %v1936
    %2002 = vmatprep.subr.bf16.mxu0 %v1939
    %2003 = vmatpush1.bf16.msra.mxu0 %v1938
    %2004 = vmatprep.subr.bf16.mxu0 %v1941
    %2005 = vmatpush1.bf16.msra.mxu0 %v1940
    %2006 = vmatprep.subr.bf16.mxu0 %v1943
    %2007 = vmatpush1.bf16.msra.mxu0 %v1942
    %2008 = vmatprep.subr.bf16.mxu0 %v1945
    %2009 = vmatpush1.bf16.msra.mxu0 %v1944
    %2010 = vmatprep.subr.bf16.mxu0 %v1947
    %2011 = vmatpush1.bf16.msra.mxu0 %v1946
    %2012 = vmatprep.subr.bf16.mxu0 %v1949
    %2013 = vmatpush1.bf16.msra.mxu0 %v1948
    %2014 = vmatprep.mubr.bf16.mxu0 %v1883
    %2015 = vmatmul.mubr.bf16.gmra.mrb[0].mxu0 %v1882
    %v2016 = vpop.f32.mrb[0].mxu0
    %v2017 = vadd.f32 0.0, %v2016
    %v2018 = vpop.f32.mrb[0].mxu0
    %v2019 = vadd.f32 0.0, %v2018
    %v2020 = vpop.f32.mrb[0].mxu0
    %v2021 = vpop.f32.mrb[0].mxu0
    %2022 = vdwg.mxu0
    %2023 = vmatprep.subr.bf16.mxu0 %v1951
    %2024 = vmatpush1.bf16.msra.mxu0 %v1950
    %2025 = vmatprep.subr.bf16.mxu0 %v1953
    %2026 = vmatpush1.bf16.msra.mxu0 %v1952
    %2027 = vmatprep.subr.bf16.mxu0 %v1955
    %2028 = vmatpush1.bf16.msra.mxu0 %v1954
    %2029 = vmatprep.subr.bf16.mxu0 %v1957
    %2030 = vmatpush1.bf16.msra.mxu0 %v1956
    %2031 = vmatprep.subr.bf16.mxu0 %v1959
    %2032 = vmatpush1.bf16.msra.mxu0 %v1958
    %2033 = vmatprep.subr.bf16.mxu0 %v1961
    %2034 = vmatpush1.bf16.msra.mxu0 %v1960
    %2035 = vmatprep.subr.bf16.mxu0 %v1963
    %2036 = vmatpush1.bf16.msra.mxu0 %v1962
    %2037 = vmatprep.subr.bf16.mxu0 %v1965
    %2038 = vmatpush1.bf16.msra.mxu0 %v1964
    %2039 = vmatprep.subr.bf16.mxu0 %v1967
    %2040 = vmatpush1.bf16.msra.mxu0 %v1966
    %2041 = vmatprep.subr.bf16.mxu0 %v1969
    %2042 = vmatpush1.bf16.msra.mxu0 %v1968
    %2043 = vmatprep.subr.bf16.mxu0 %v1971
    %2044 = vmatpush1.bf16.msra.mxu0 %v1970
    %2045 = vmatprep.subr.bf16.mxu0 %v1973
    %2046 = vmatpush1.bf16.msra.mxu0 %v1972
    %2047 = vmatprep.subr.bf16.mxu0 %v1975
    %2048 = vmatpush1.bf16.msra.mxu0 %v1974
    %2049 = vmatprep.subr.bf16.mxu0 %v1977
    %2050 = vmatpush1.bf16.msra.mxu0 %v1976
    %2051 = vmatprep.subr.bf16.mxu0 %v1979
    %2052 = vmatpush1.bf16.msra.mxu0 %v1978
    %2053 = vmatprep.subr.bf16.mxu0 %v1981
    %2054 = vmatpush1.bf16.msra.mxu0 %v1980
    %2055 = vmatprep.mubr.bf16.mxu0 %v1885
    %2056 = vmatmul.mubr.bf16.gmra.mrb[0].mxu0 %v1884
    %v2057 = vpop.f32.mrb[0].mxu0
    %v2058 = vadd.f32 %v2017, %v2057
    %v2059 = vpop.f32.mrb[0].mxu0
    %v2060 = vadd.f32 %v2019, %v2059
    %v2061 = vpop.f32.mrb[0].mxu0
    %v2062 = vpop.f32.mrb[0].mxu0
    %2063 = vdwg.mxu0
    %v2064 = vld [vmem:[#allocation11] sm:$0x3]
    %v2066 = vlaneseq
    %v2067 = vshrl.u32 %v2066, 7
    %v2068 = vsub.s32 0, %v2067
    %v2069 = vrot.slane %v2064, %v2068
    %v2070 = vlaneseq
    %v2071 = vshrl.u32 %v2070, 7
    %v2072 = vsub.s32 1, %v2071
    %v2073 = vrot.slane %v2064, %v2072
    %v2076 = vmul.f32 %v2058, %v2069
    %v2077 = vmul.f32 %v2060, %v2073
    %v2078 = vld [vmem:[#allocation13] sm:$0x3]
    %v2080 = vlaneseq
    %v2081 = vshrl.u32 %v2080, 7
    %v2082 = vsub.s32 0, %v2081
    %v2083 = vrot.slane %v2078, %v2082
    %v2084 = vlaneseq
    %v2085 = vshrl.u32 %v2084, 7
    %v2086 = vsub.s32 1, %v2085
    %v2087 = vrot.slane %v2078, %v2086
    %v2090 = vadd.f32 %v2076, %v2083
    %v2091 = vadd.f32 %v2077, %v2087
    %v2092 = vmax.f32 %v2090, 0.0
    %v2093 = vmax.f32 %v2091, 0.0
    %v2094 = vpack.c.bf16 %v2092, %v2092
    %v2095 = vpack.c.bf16 %v2093, %v2093
    %v2096 = vld [vmem:[#allocation14] sm:$0xff]
    %v2097 = vld [vmem:[#allocation14 + $0x8] sm:$0xff]
    %v2098 = vld [vmem:[#allocation14 + $0x10] sm:$0xff]
    %v2099 = vld [vmem:[#allocation14 + $0x18] sm:$0xff]
    %v2100 = vld [vmem:[#allocation14 + $0x20] sm:$0xff]
    %v2101 = vld [vmem:[#allocation14 + $0x28] sm:$0xff]
    %v2102 = vld [vmem:[#allocation14 + $0x30] sm:$0xff]
    %v2103 = vld [vmem:[#allocation14 + $0x38] sm:$0xff]
    %v2104 = vunpack.c.l.s8.bf16 %v2096
    %v2105 = vunpack.c.h.s8.bf16 %v2096
    %v2106 = vunpack.c.l.s8.bf16 %v2097
    %v2107 = vunpack.c.h.s8.bf16 %v2097
    %v2108 = vunpack.c.l.s8.bf16 %v2098
    %v2109 = vunpack.c.h.s8.bf16 %v2098
    %v2110 = vunpack.c.l.s8.bf16 %v2099
    %v2111 = vunpack.c.h.s8.bf16 %v2099
    %v2112 = vunpack.c.l.s8.bf16 %v2100
    %v2113 = vunpack.c.h.s8.bf16 %v2100
    %v2114 = vunpack.c.l.s8.bf16 %v2101
    %v2115 = vunpack.c.h.s8.bf16 %v2101
    %v2116 = vunpack.c.l.s8.bf16 %v2102
    %v2117 = vunpack.c.h.s8.bf16 %v2102
    %v2118 = vunpack.c.l.s8.bf16 %v2103
    %v2119 = vunpack.c.h.s8.bf16 %v2103
    %2120 = vmatprep.subr.bf16.mxu0 0
    %2121 = vmatpush1.bf16.msra.mxu0 %v2104
    %2122 = vmatprep.subr.bf16.mxu0 0
    %2123 = vmatpush1.bf16.msra.mxu0 %v2105
    %2124 = vmatprep.subr.bf16.mxu0 0
    %2125 = vmatpush1.bf16.msra.mxu0 %v2106
    %2126 = vmatprep.subr.bf16.mxu0 0
    %2127 = vmatpush1.bf16.msra.mxu0 %v2107
    %2128 = vmatprep.subr.bf16.mxu0 0
    %2129 = vmatpush1.bf16.msra.mxu0 %v2108
    %2130 = vmatprep.subr.bf16.mxu0 0
    %2131 = vmatpush1.bf16.msra.mxu0 %v2109
    %2132 = vmatprep.subr.bf16.mxu0 0
    %2133 = vmatpush1.bf16.msra.mxu0 %v2110
    %2134 = vmatprep.subr.bf16.mxu0 0
    %2135 = vmatpush1.bf16.msra.mxu0 %v2111
    %2136 = vmatprep.subr.bf16.mxu0 0
    %2137 = vmatpush1.bf16.msra.mxu0 %v2112
    %2138 = vmatprep.subr.bf16.mxu0 0
    %2139 = vmatpush1.bf16.msra.mxu0 %v2113
    %2140 = vmatprep.subr.bf16.mxu0 0
    %2141 = vmatpush1.bf16.msra.mxu0 %v2114
    %2142 = vmatprep.subr.bf16.mxu0 0
    %2143 = vmatpush1.bf16.msra.mxu0 %v2115
    %2144 = vmatprep.subr.bf16.mxu0 0
    %2145 = vmatpush1.bf16.msra.mxu0 %v2116
    %2146 = vmatprep.subr.bf16.mxu0 0
    %2147 = vmatpush1.bf16.msra.mxu0 %v2117
    %2148 = vmatprep.subr.bf16.mxu0 0
    %2149 = vmatpush1.bf16.msra.mxu0 %v2118
    %2150 = vmatprep.subr.bf16.mxu0 0
    %2151 = vmatpush1.bf16.msra.mxu0 %v2119
    %2152 = vmatprep.mubr.bf16.mxu0 %v2095
    %2153 = vmatmul.mubr.bf16.gmra.mrb[0].mxu0 %v2094
    %v2154 = vpop.f32.mrb[0].mxu0
    %v2155 = vadd.f32 0.0, %v2154
    %v2156 = vpop.f32.mrb[0].mxu0
    %v2157 = vpop.f32.mrb[0].mxu0
    %v2158 = vpop.f32.mrb[0].mxu0
    %2159 = vdwg.mxu0
    %v2160 = vld [vmem:[%s8] sm:$0x1]
    %v2162 = vlaneseq
    %v2163 = vshrl.u32 %v2162, 7
    %v2164 = vsub.s32 0, %v2163
    %v2165 = vrot.slane %v2160, %v2164
    %v2167 = vmul.f32 %v2155, %v2165
    %v2168 = vld [vmem:[%s9] sm:$0x1]
    %v2170 = vlaneseq
    %v2171 = vshrl.u32 %v2170, 7
    %v2172 = vsub.s32 0, %v2171
    %v2173 = vrot.slane %v2168, %v2172
    %v2175 = vadd.f32 %v2167, %v2173
    %v2176 = vpack.c.bf16 %v2175, %v2175
    %2177 = vst [vmem:[#allocation20] sm:$0xf] %v2176
    %v2178 = vld [vmem:[#allocation16] sm:$0xff]
    %v2179 = vld [vmem:[#allocation16 + $0x8] sm:$0xff]
    %v2180 = vld [vmem:[#allocation16 + $0x10] sm:$0xff]
    %v2181 = vld [vmem:[#allocation16 + $0x18] sm:$0xff]
    %v2182 = vld [vmem:[#allocation16 + $0x20] sm:$0xff]
    %v2183 = vld [vmem:[#allocation16 + $0x28] sm:$0xff]
    %v2184 = vld [vmem:[#allocation16 + $0x30] sm:$0xff]
    %v2185 = vld [vmem:[#allocation16 + $0x38] sm:$0xff]
    %v2186 = vunpack.c.l.s8.bf16 %v2178
    %v2187 = vunpack.c.l.s8.bf16 %v2179
    %v2188 = vunpack.c.h.s8.bf16 %v2178
    %v2189 = vunpack.c.h.s8.bf16 %v2179
    %v2190 = vunpack.c.l.s8.bf16 %v2180
    %v2191 = vunpack.c.l.s8.bf16 %v2181
    %v2192 = vunpack.c.h.s8.bf16 %v2180
    %v2193 = vunpack.c.h.s8.bf16 %v2181
    %v2194 = vunpack.c.l.s8.bf16 %v2182
    %v2195 = vunpack.c.l.s8.bf16 %v2183
    %v2196 = vunpack.c.h.s8.bf16 %v2182
    %v2197 = vunpack.c.h.s8.bf16 %v2183
    %v2198 = vunpack.c.l.s8.bf16 %v2184
    %v2199 = vunpack.c.l.s8.bf16 %v2185
    %v2200 = vunpack.c.h.s8.bf16 %v2184
    %v2201 = vunpack.c.h.s8.bf16 %v2185
    %2202 = vmatprep.subr.bf16.mxu0 %v2187
    %2203 = vmatpush1.bf16.msra.mxu0 %v2186
    %2204 = vmatprep.subr.bf16.mxu0 %v2189
    %2205 = vmatpush1.bf16.msra.mxu0 %v2188
    %2206 = vmatprep.subr.bf16.mxu0 %v2191
    %2207 = vmatpush1.bf16.msra.mxu0 %v2190
    %2208 = vmatprep.subr.bf16.mxu0 %v2193
    %2209 = vmatpush1.bf16.msra.mxu0 %v2192
    %2210 = vmatprep.subr.bf16.mxu0 %v2195
    %2211 = vmatpush1.bf16.msra.mxu0 %v2194
    %2212 = vmatprep.subr.bf16.mxu0 %v2197
    %2213 = vmatpush1.bf16.msra.mxu0 %v2196
    %2214 = vmatprep.subr.bf16.mxu0 %v2199
    %2215 = vmatpush1.bf16.msra.mxu0 %v2198
    %2216 = vmatprep.subr.bf16.mxu0 %v2201
    %2217 = vmatpush1.bf16.msra.mxu0 %v2200
    %2218 = vmatprep.subr.bf16.mxu0 0
    %2219 = vmatpush1.bf16.msra.mxu0 0
    %2220 = vmatprep.subr.bf16.mxu0 0
    %2221 = vmatpush1.bf16.msra.mxu0 0
    %2222 = vmatprep.subr.bf16.mxu0 0
    %2223 = vmatpush1.bf16.msra.mxu0 0
    %2224 = vmatprep.subr.bf16.mxu0 0
    %2225 = vmatpush1.bf16.msra.mxu0 0
    %2226 = vmatprep.subr.bf16.mxu0 0
    %2227 = vmatpush1.bf16.msra.mxu0 0
    %2228 = vmatprep.subr.bf16.mxu0 0
    %2229 = vmatpush1.bf16.msra.mxu0 0
    %2230 = vmatprep.subr.bf16.mxu0 0
    %2231 = vmatpush1.bf16.msra.mxu0 0
    %2232 = vmatprep.subr.bf16.mxu0 0
    %2233 = vmatpush1.bf16.msra.mxu0 0
    %2234 = vmatprep.mubr.bf16.mxu0 0
    %2235 = vmatmul.mubr.bf16.gmra.mrb[0].mxu0 %v2176
    %v2236 = vpop.f32.mrb[0].mxu0
    %v2237 = vadd.f32 0.0, %v2236
    %v2238 = vpop.f32.mrb[0].mxu0
    %v2239 = vadd.f32 0.0, %v2238
    %v2240 = vpop.f32.mrb[0].mxu0
    %v2241 = vpop.f32.mrb[0].mxu0
    %2242 = vdwg.mxu0
    %v2243 = vld [vmem:[%s11] sm:$0x3]
    %v2245 = vlaneseq
    %v2246 = vshrl.u32 %v2245, 7
    %v2247 = vsub.s32 0, %v2246
    %v2248 = vrot.slane %v2243, %v2247
    %v2249 = vlaneseq
    %v2250 = vshrl.u32 %v2249, 7
    %v2251 = vsub.s32 1, %v2250
    %v2252 = vrot.slane %v2243, %v2251
    %v2255 = vmul.f32 %v2237, %v2248
    %v2256 = vmul.f32 %v2239, %v2252
    %v2257 = vld [vmem:[%s12] sm:$0x3]
    %v2259 = vlaneseq
    %v2260 = vshrl.u32 %v2259, 7
    %v2261 = vsub.s32 0, %v2260
    %v2262 = vrot.slane %v2257, %v2261
    %v2263 = vlaneseq
    %v2264 = vshrl.u32 %v2263, 7
    %v2265 = vsub.s32 1, %v2264
    %v2266 = vrot.slane %v2257, %v2265
    %v2269 = vadd.f32 %v2255, %v2262
    %v2270 = vadd.f32 %v2256, %v2266
    %v2271 = vmax.f32 %v2269, 0.0
    %v2272 = vmax.f32 %v2270, 0.0
    %v2273 = vpack.c.bf16 %v2271, %v2271
    %v2274 = vpack.c.bf16 %v2272, %v2272
    %v2275 = vld [vmem:[#allocation17] sm:$0xff]
    %v2276 = vld [vmem:[#allocation17 + $0x8] sm:$0xff]
    %v2277 = vld [vmem:[#allocation17 + $0x10] sm:$0xff]
    %v2278 = vld [vmem:[#allocation17 + $0x18] sm:$0xff]
    %v2279 = vld [vmem:[#allocation17 + $0x20] sm:$0xff]
    %v2280 = vld [vmem:[#allocation17 + $0x28] sm:$0xff]
    %v2281 = vld [vmem:[#allocation17 + $0x30] sm:$0xff]
    %v2282 = vld [vmem:[#allocation17 + $0x38] sm:$0xff]
    %v2283 = vld [vmem:[#allocation17 + $0x40] sm:$0xff]
    %v2284 = vld [vmem:[#allocation17 + $0x48] sm:$0xff]
    %v2285 = vld [vmem:[#allocation17 + $0x50] sm:$0xff]
    %v2286 = vld [vmem:[#allocation17 + $0x58] sm:$0xff]
    %v2287 = vld [vmem:[#allocation17 + $0x60] sm:$0xff]
    %v2288 = vld [vmem:[#allocation17 + $0x68] sm:$0xff]
    %v2289 = vld [vmem:[#allocation17 + $0x70] sm:$0xff]
    %v2290 = vld [vmem:[#allocation17 + $0x78] sm:$0xff]
    %v2291 = vld [vmem:[#allocation17 + $0x80] sm:$0xff]
    %v2292 = vld [vmem:[#allocation17 + $0x88] sm:$0xff]
    %v2293 = vld [vmem:[#allocation17 + $0x90] sm:$0xff]
    %v2294 = vld [vmem:[#allocation17 + $0x98] sm:$0xff]
    %v2295 = vld [vmem:[#allocation17 + $0xa0] sm:$0xff]
    %v2296 = vld [vmem:[#allocation17 + $0xa8] sm:$0xff]
    %v2297 = vld [vmem:[#allocation17 + $0xb0] sm:$0xff]
    %v2298 = vld [vmem:[#allocation17 + $0xb8] sm:$0xff]
    %v2299 = vld [vmem:[#allocation17 + $0xc0] sm:$0xff]
    %v2300 = vld [vmem:[#allocation17 + $0xc8] sm:$0xff]
    %v2301 = vld [vmem:[#allocation17 + $0xd0] sm:$0xff]
    %v2302 = vld [vmem:[#allocation17 + $0xd8] sm:$0xff]
    %v2303 = vld [vmem:[#allocation17 + $0xe0] sm:$0xff]
    %v2304 = vld [vmem:[#allocation17 + $0xe8] sm:$0xff]
    %v2305 = vld [vmem:[#allocation17 + $0xf0] sm:$0xff]
    %v2306 = vld [vmem:[#allocation17 + $0xf8] sm:$0xff]
    %v2307 = vunpack.c.l.s8.bf16 %v2275
    %v2308 = vunpack.c.l.s8.bf16 %v2276
    %v2309 = vunpack.c.l.s8.bf16 %v2277
    %v2310 = vunpack.c.l.s8.bf16 %v2278
    %v2311 = vunpack.c.h.s8.bf16 %v2275
    %v2312 = vunpack.c.h.s8.bf16 %v2276
    %v2313 = vunpack.c.h.s8.bf16 %v2277
    %v2314 = vunpack.c.h.s8.bf16 %v2278
    %v2315 = vunpack.c.l.s8.bf16 %v2279
    %v2316 = vunpack.c.l.s8.bf16 %v2280
    %v2317 = vunpack.c.l.s8.bf16 %v2281
    %v2318 = vunpack.c.l.s8.bf16 %v2282
    %v2319 = vunpack.c.h.s8.bf16 %v2279
    %v2320 = vunpack.c.h.s8.bf16 %v2280
    %v2321 = vunpack.c.h.s8.bf16 %v2281
    %v2322 = vunpack.c.h.s8.bf16 %v2282
    %v2323 = vunpack.c.l.s8.bf16 %v2283
    %v2324 = vunpack.c.l.s8.bf16 %v2284
    %v2325 = vunpack.c.l.s8.bf16 %v2285
    %v2326 = vunpack.c.l.s8.bf16 %v2286
    %v2327 = vunpack.c.h.s8.bf16 %v2283
    %v2328 = vunpack.c.h.s8.bf16 %v2284
    %v2329 = vunpack.c.h.s8.bf16 %v2285
    %v2330 = vunpack.c.h.s8.bf16 %v2286
    %v2331 = vunpack.c.l.s8.bf16 %v2287
    %v2332 = vunpack.c.l.s8.bf16 %v2288
    %v2333 = vunpack.c.l.s8.bf16 %v2289
    %v2334 = vunpack.c.l.s8.bf16 %v2290
    %v2335 = vunpack.c.h.s8.bf16 %v2287
    %v2336 = vunpack.c.h.s8.bf16 %v2288
    %v2337 = vunpack.c.h.s8.bf16 %v2289
    %v2338 = vunpack.c.h.s8.bf16 %v2290
    %v2339 = vunpack.c.l.s8.bf16 %v2291
    %v2340 = vunpack.c.l.s8.bf16 %v2292
    %v2341 = vunpack.c.l.s8.bf16 %v2293
    %v2342 = vunpack.c.l.s8.bf16 %v2294
    %v2343 = vunpack.c.h.s8.bf16 %v2291
    %v2344 = vunpack.c.h.s8.bf16 %v2292
    %v2345 = vunpack.c.h.s8.bf16 %v2293
    %v2346 = vunpack.c.h.s8.bf16 %v2294
    %v2347 = vunpack.c.l.s8.bf16 %v2295
    %v2348 = vunpack.c.l.s8.bf16 %v2296
    %v2349 = vunpack.c.l.s8.bf16 %v2297
    %v2350 = vunpack.c.l.s8.bf16 %v2298
    %v2351 = vunpack.c.h.s8.bf16 %v2295
    %v2352 = vunpack.c.h.s8.bf16 %v2296
    %v2353 = vunpack.c.h.s8.bf16 %v2297
    %v2354 = vunpack.c.h.s8.bf16 %v2298
    %v2355 = vunpack.c.l.s8.bf16 %v2299
    %v2356 = vunpack.c.l.s8.bf16 %v2300
    %v2357 = vunpack.c.l.s8.bf16 %v2301
    %v2358 = vunpack.c.l.s8.bf16 %v2302
    %v2359 = vunpack.c.h.s8.bf16 %v2299
    %v2360 = vunpack.c.h.s8.bf16 %v2300
    %v2361 = vunpack.c.h.s8.bf16 %v2301
    %v2362 = vunpack.c.h.s8.bf16 %v2302
    %v2363 = vunpack.c.l.s8.bf16 %v2303
    %v2364 = vunpack.c.l.s8.bf16 %v2304
    %v2365 = vunpack.c.l.s8.bf16 %v2305
    %v2366 = vunpack.c.l.s8.bf16 %v2306
    %v2367 = vunpack.c.h.s8.bf16 %v2303
    %v2368 = vunpack.c.h.s8.bf16 %v2304
    %v2369 = vunpack.c.h.s8.bf16 %v2305
    %v2370 = vunpack.c.h.s8.bf16 %v2306
    %2371 = vmatprep.subr.bf16.mxu0 %v2308
    %2372 = vmatpush1.bf16.msra.mxu0 %v2307
    %2373 = vmatprep.subr.bf16.mxu0 %v2312
    %2374 = vmatpush1.bf16.msra.mxu0 %v2311
    %2375 = vmatprep.subr.bf16.mxu0 %v2316
    %2376 = vmatpush1.bf16.msra.mxu0 %v2315
    %2377 = vmatprep.subr.bf16.mxu0 %v2320
    %2378 = vmatpush1.bf16.msra.mxu0 %v2319
    %2379 = vmatprep.subr.bf16.mxu0 %v2324
    %2380 = vmatpush1.bf16.msra.mxu0 %v2323
    %2381 = vmatprep.subr.bf16.mxu0 %v2328
    %2382 = vmatpush1.bf16.msra.mxu0 %v2327
    %2383 = vmatprep.subr.bf16.mxu0 %v2332
    %2384 = vmatpush1.bf16.msra.mxu0 %v2331
    %2385 = vmatprep.subr.bf16.mxu0 %v2336
    %2386 = vmatpush1.bf16.msra.mxu0 %v2335
    %2387 = vmatprep.subr.bf16.mxu0 %v2340
    %2388 = vmatpush1.bf16.msra.mxu0 %v2339
    %2389 = vmatprep.subr.bf16.mxu0 %v2344
    %2390 = vmatpush1.bf16.msra.mxu0 %v2343
    %2391 = vmatprep.subr.bf16.mxu0 %v2348
    %2392 = vmatpush1.bf16.msra.mxu0 %v2347
    %2393 = vmatprep.subr.bf16.mxu0 %v2352
    %2394 = vmatpush1.bf16.msra.mxu0 %v2351
    %2395 = vmatprep.subr.bf16.mxu0 %v2356
    %2396 = vmatpush1.bf16.msra.mxu0 %v2355
    %2397 = vmatprep.subr.bf16.mxu0 %v2360
    %2398 = vmatpush1.bf16.msra.mxu0 %v2359
    %2399 = vmatprep.subr.bf16.mxu0 %v2364
    %2400 = vmatpush1.bf16.msra.mxu0 %v2363
    %2401 = vmatprep.subr.bf16.mxu0 %v2368
    %2402 = vmatpush1.bf16.msra.mxu0 %v2367
    %2403 = vmatprep.mubr.bf16.mxu0 %v2274
    %2404 = vmatmul.mubr.bf16.gmra.mrb[0].mxu0 %v2273
    %v2405 = vpop.f32.mrb[0].mxu0
    %v2406 = vadd.f32 0.0, %v2405
    %v2407 = vpop.f32.mrb[0].mxu0
    %v2408 = vadd.f32 0.0, %v2407
    %v2409 = vpop.f32.mrb[0].mxu0
    %v2410 = vpop.f32.mrb[0].mxu0
    %2411 = vdwg.mxu0
    %2412 = vmatprep.subr.bf16.mxu0 %v2310
    %2413 = vmatpush1.bf16.msra.mxu0 %v2309
    %2414 = vmatprep.subr.bf16.mxu0 %v2314
    %2415 = vmatpush1.bf16.msra.mxu0 %v2313
    %2416 = vmatprep.subr.bf16.mxu0 %v2318
    %2417 = vmatpush1.bf16.msra.mxu0 %v2317
    %2418 = vmatprep.subr.bf16.mxu0 %v2322
    %2419 = vmatpush1.bf16.msra.mxu0 %v2321
    %2420 = vmatprep.subr.bf16.mxu0 %v2326
    %2421 = vmatpush1.bf16.msra.mxu0 %v2325
    %2422 = vmatprep.subr.bf16.mxu0 %v2330
    %2423 = vmatpush1.bf16.msra.mxu0 %v2329
    %2424 = vmatprep.subr.bf16.mxu0 %v2334
    %2425 = vmatpush1.bf16.msra.mxu0 %v2333
    %2426 = vmatprep.subr.bf16.mxu0 %v2338
    %2427 = vmatpush1.bf16.msra.mxu0 %v2337
    %2428 = vmatprep.subr.bf16.mxu0 %v2342
    %2429 = vmatpush1.bf16.msra.mxu0 %v2341
    %2430 = vmatprep.subr.bf16.mxu0 %v2346
    %2431 = vmatpush1.bf16.msra.mxu0 %v2345
    %2432 = vmatprep.subr.bf16.mxu0 %v2350
    %2433 = vmatpush1.bf16.msra.mxu0 %v2349
    %2434 = vmatprep.subr.bf16.mxu0 %v2354
    %2435 = vmatpush1.bf16.msra.mxu0 %v2353
    %2436 = vmatprep.subr.bf16.mxu0 %v2358
    %2437 = vmatpush1.bf16.msra.mxu0 %v2357
    %2438 = vmatprep.subr.bf16.mxu0 %v2362
    %2439 = vmatpush1.bf16.msra.mxu0 %v2361
    %2440 = vmatprep.subr.bf16.mxu0 %v2366
    %2441 = vmatpush1.bf16.msra.mxu0 %v2365
    %2442 = vmatprep.subr.bf16.mxu0 %v2370
    %2443 = vmatpush1.bf16.msra.mxu0 %v2369
    %2444 = vmatprep.mubr.bf16.mxu0 %v2274
    %2445 = vmatmul.mubr.bf16.gmra.mrb[0].mxu0 %v2273
    %v2446 = vpop.f32.mrb[0].mxu0
    %v2447 = vadd.f32 0.0, %v2446
    %v2448 = vpop.f32.mrb[0].mxu0
    %v2449 = vadd.f32 0.0, %v2448
    %v2450 = vpop.f32.mrb[0].mxu0
    %v2451 = vpop.f32.mrb[0].mxu0
    %2452 = vdwg.mxu0
    %v2453 = vld [vmem:[%s14] sm:$0xf]
    %v2455 = vlaneseq
    %v2456 = vshrl.u32 %v2455, 7
    %v2457 = vsub.s32 0, %v2456
    %v2458 = vrot.slane %v2453, %v2457
    %v2459 = vlaneseq
    %v2460 = vshrl.u32 %v2459, 7
    %v2461 = vsub.s32 1, %v2460
    %v2462 = vrot.slane %v2453, %v2461
    %v2463 = vlaneseq
    %v2464 = vshrl.u32 %v2463, 7
    %v2465 = vsub.s32 2, %v2464
    %v2466 = vrot.slane %v2453, %v2465
    %v2467 = vlaneseq
    %v2468 = vshrl.u32 %v2467, 7
    %v2469 = vsub.s32 3, %v2468
    %v2470 = vrot.slane %v2453, %v2469
    %v2475 = vmul.f32 %v2406, %v2458
    %v2476 = vmul.f32 %v2408, %v2462
    %v2477 = vmul.f32 %v2447, %v2466
    %v2478 = vmul.f32 %v2449, %v2470
    %v2479 = vld [vmem:[%s15] sm:$0xf]
    %v2481 = vlaneseq
    %v2482 = vshrl.u32 %v2481, 7
    %v2483 = vsub.s32 0, %v2482
    %v2484 = vrot.slane %v2479, %v2483
    %v2485 = vlaneseq
    %v2486 = vshrl.u32 %v2485, 7
    %v2487 = vsub.s32 1, %v2486
    %v2488 = vrot.slane %v2479, %v2487
    %v2489 = vlaneseq
    %v2490 = vshrl.u32 %v2489, 7
    %v2491 = vsub.s32 2, %v2490
    %v2492 = vrot.slane %v2479, %v2491
    %v2493 = vlaneseq
    %v2494 = vshrl.u32 %v2493, 7
    %v2495 = vsub.s32 3, %v2494
    %v2496 = vrot.slane %v2479, %v2495
    %v2501 = vadd.f32 %v2475, %v2484
    %v2502 = vadd.f32 %v2476, %v2488
    %v2503 = vadd.f32 %v2477, %v2492
    %v2504 = vadd.f32 %v2478, %v2496
    %v2505 = vmax.f32 %v2501, 0.0
    %v2506 = vmax.f32 %v2502, 0.0
    %v2507 = vmax.f32 %v2503, 0.0
    %v2508 = vmax.f32 %v2504, 0.0
    %v2509 = vpack.c.bf16 %v2505, %v2505
    %v2510 = vpack.c.bf16 %v2506, %v2506
    %v2511 = vpack.c.bf16 %v2507, %v2507
    %v2512 = vpack.c.bf16 %v2508, %v2508
    %v2513 = vld [vmem:[#allocation19] sm:$0xff]
    %v2514 = vld [vmem:[#allocation19 + $0x8] sm:$0xff]
    %v2515 = vld [vmem:[#allocation19 + $0x10] sm:$0xff]
    %v2516 = vld [vmem:[#allocation19 + $0x18] sm:$0xff]
    %v2517 = vld [vmem:[#allocation19 + $0x20] sm:$0xff]
    %v2518 = vld [vmem:[#allocation19 + $0x28] sm:$0xff]
    %v2519 = vld [vmem:[#allocation19 + $0x30] sm:$0xff]
    %v2520 = vld [vmem:[#allocation19 + $0x38] sm:$0xff]
    %v2521 = vld [vmem:[#allocation19 + $0x40] sm:$0xff]
    %v2522 = vld [vmem:[#allocation19 + $0x48] sm:$0xff]
    %v2523 = vld [vmem:[#allocation19 + $0x50] sm:$0xff]
    %v2524 = vld [vmem:[#allocation19 + $0x58] sm:$0xff]
    %v2525 = vld [vmem:[#allocation19 + $0x60] sm:$0xff]
    %v2526 = vld [vmem:[#allocation19 + $0x68] sm:$0xff]
    %v2527 = vld [vmem:[#allocation19 + $0x70] sm:$0xff]
    %v2528 = vld [vmem:[#allocation19 + $0x78] sm:$0xff]
    %v2529 = vld [vmem:[#allocation19 + $0x80] sm:$0xff]
    %v2530 = vld [vmem:[#allocation19 + $0x88] sm:$0xff]
    %v2531 = vld [vmem:[#allocation19 + $0x90] sm:$0xff]
    %v2532 = vld [vmem:[#allocation19 + $0x98] sm:$0xff]
    %v2533 = vld [vmem:[#allocation19 + $0xa0] sm:$0xff]
    %v2534 = vld [vmem:[#allocation19 + $0xa8] sm:$0xff]
    %v2535 = vld [vmem:[#allocation19 + $0xb0] sm:$0xff]
    %v2536 = vld [vmem:[#allocation19 + $0xb8] sm:$0xff]
    %v2537 = vld [vmem:[#allocation19 + $0xc0] sm:$0xff]
    %v2538 = vld [vmem:[#allocation19 + $0xc8] sm:$0xff]
    %v2539 = vld [vmem:[#allocation19 + $0xd0] sm:$0xff]
    %v2540 = vld [vmem:[#allocation19 + $0xd8] sm:$0xff]
    %v2541 = vld [vmem:[#allocation19 + $0xe0] sm:$0xff]
    %v2542 = vld [vmem:[#allocation19 + $0xe8] sm:$0xff]
    %v2543 = vld [vmem:[#allocation19 + $0xf0] sm:$0xff]
    %v2544 = vld [vmem:[#allocation19 + $0xf8] sm:$0xff]
    %v2545 = vld [vmem:[#allocation19 + $0x100] sm:$0xff]
    %v2546 = vld [vmem:[#allocation19 + $0x108] sm:$0xff]
    %v2547 = vld [vmem:[#allocation19 + $0x110] sm:$0xff]
    %v2548 = vld [vmem:[#allocation19 + $0x118] sm:$0xff]
    %v2549 = vld [vmem:[#allocation19 + $0x120] sm:$0xff]
    %v2550 = vld [vmem:[#allocation19 + $0x128] sm:$0xff]
    %v2551 = vld [vmem:[#allocation19 + $0x130] sm:$0xff]
    %v2552 = vld [vmem:[#allocation19 + $0x138] sm:$0xff]
    %v2553 = vld [vmem:[#allocation19 + $0x140] sm:$0xff]
    %v2554 = vld [vmem:[#allocation19 + $0x148] sm:$0xff]
    %v2555 = vld [vmem:[#allocation19 + $0x150] sm:$0xff]
    %v2556 = vld [vmem:[#allocation19 + $0x158] sm:$0xff]
    %v2557 = vld [vmem:[#allocation19 + $0x160] sm:$0xff]
    %v2558 = vld [vmem:[#allocation19 + $0x168] sm:$0xff]
    %v2559 = vld [vmem:[#allocation19 + $0x170] sm:$0xff]
    %v2560 = vld [vmem:[#allocation19 + $0x178] sm:$0xff]
    %v2561 = vld [vmem:[#allocation19 + $0x180] sm:$0xff]
    %v2562 = vld [vmem:[#allocation19 + $0x188] sm:$0xff]
    %v2563 = vld [vmem:[#allocation19 + $0x190] sm:$0xff]
    %v2564 = vld [vmem:[#allocation19 + $0x198] sm:$0xff]
    %v2565 = vld [vmem:[#allocation19 + $0x1a0] sm:$0xff]
    %v2566 = vld [vmem:[#allocation19 + $0x1a8] sm:$0xff]
    %v2567 = vld [vmem:[#allocation19 + $0x1b0] sm:$0xff]
    %v2568 = vld [vmem:[#allocation19 + $0x1b8] sm:$0xff]
    %v2569 = vld [vmem:[#allocation19 + $0x1c0] sm:$0xff]
    %v2570 = vld [vmem:[#allocation19 + $0x1c8] sm:$0xff]
    %v2571 = vld [vmem:[#allocation19 + $0x1d0] sm:$0xff]
    %v2572 = vld [vmem:[#allocation19 + $0x1d8] sm:$0xff]
    %v2573 = vld [vmem:[#allocation19 + $0x1e0] sm:$0xff]
    %v2574 = vld [vmem:[#allocation19 + $0x1e8] sm:$0xff]
    %v2575 = vld [vmem:[#allocation19 + $0x1f0] sm:$0xff]
    %v2576 = vld [vmem:[#allocation19 + $0x1f8] sm:$0xff]
    %v2577 = vld [vmem:[#allocation19 + $0x200] sm:$0xff]
    %v2578 = vld [vmem:[#allocation19 + $0x208] sm:$0xff]
    %v2579 = vld [vmem:[#allocation19 + $0x210] sm:$0xff]
    %v2580 = vld [vmem:[#allocation19 + $0x218] sm:$0xff]
    %v2581 = vld [vmem:[#allocation19 + $0x220] sm:$0xff]
    %v2582 = vld [vmem:[#allocation19 + $0x228] sm:$0xff]
    %v2583 = vld [vmem:[#allocation19 + $0x230] sm:$0xff]
    %v2584 = vld [vmem:[#allocation19 + $0x238] sm:$0xff]
    %v2585 = vld [vmem:[#allocation19 + $0x240] sm:$0xff]
    %v2586 = vld [vmem:[#allocation19 + $0x248] sm:$0xff]
    %v2587 = vld [vmem:[#allocation19 + $0x250] sm:$0xff]
    %v2588 = vld [vmem:[#allocation19 + $0x258] sm:$0xff]
    %v2589 = vld [vmem:[#allocation19 + $0x260] sm:$0xff]
    %v2590 = vld [vmem:[#allocation19 + $0x268] sm:$0xff]
    %v2591 = vld [vmem:[#allocation19 + $0x270] sm:$0xff]
    %v2592 = vld [vmem:[#allocation19 + $0x278] sm:$0xff]
    %v2593 = vld [vmem:[#allocation19 + $0x280] sm:$0xff]
    %v2594 = vld [vmem:[#allocation19 + $0x288] sm:$0xff]
    %v2595 = vld [vmem:[#allocation19 + $0x290] sm:$0xff]
    %v2596 = vld [vmem:[#allocation19 + $0x298] sm:$0xff]
    %v2597 = vld [vmem:[#allocation19 + $0x2a0] sm:$0xff]
    %v2598 = vld [vmem:[#allocation19 + $0x2a8] sm:$0xff]
    %v2599 = vld [vmem:[#allocation19 + $0x2b0] sm:$0xff]
    %v2600 = vld [vmem:[#allocation19 + $0x2b8] sm:$0xff]
    %v2601 = vld [vmem:[#allocation19 + $0x2c0] sm:$0xff]
    %v2602 = vld [vmem:[#allocation19 + $0x2c8] sm:$0xff]
    %v2603 = vld [vmem:[#allocation19 + $0x2d0] sm:$0xff]
    %v2604 = vld [vmem:[#allocation19 + $0x2d8] sm:$0xff]
    %v2605 = vld [vmem:[#allocation19 + $0x2e0] sm:$0xff]
    %v2606 = vld [vmem:[#allocation19 + $0x2e8] sm:$0xff]
    %v2607 = vld [vmem:[#allocation19 + $0x2f0] sm:$0xff]
    %v2608 = vld [vmem:[#allocation19 + $0x2f8] sm:$0xff]
    %v2609 = vld [vmem:[#allocation19 + $0x300] sm:$0xff]
    %v2610 = vld [vmem:[#allocation19 + $0x308] sm:$0xff]
    %v2611 = vld [vmem:[#allocation19 + $0x310] sm:$0xff]
    %v2612 = vld [vmem:[#allocation19 + $0x318] sm:$0xff]
    %v2613 = vld [vmem:[#allocation19 + $0x320] sm:$0xff]
    %v2614 = vld [vmem:[#allocation19 + $0x328] sm:$0xff]
    %v2615 = vld [vmem:[#allocation19 + $0x330] sm:$0xff]
    %v2616 = vld [vmem:[#allocation19 + $0x338] sm:$0xff]
    %v2617 = vld [vmem:[#allocation19 + $0x340] sm:$0xff]
    %v2618 = vld [vmem:[#allocation19 + $0x348] sm:$0xff]
    %v2619 = vld [vmem:[#allocation19 + $0x350] sm:$0xff]
    %v2620 = vld [vmem:[#allocation19 + $0x358] sm:$0xff]
    %v2621 = vld [vmem:[#allocation19 + $0x360] sm:$0xff]
    %v2622 = vld [vmem:[#allocation19 + $0x368] sm:$0xff]
    %v2623 = vld [vmem:[#allocation19 + $0x370] sm:$0xff]
    %v2624 = vld [vmem:[#allocation19 + $0x378] sm:$0xff]
    %v2625 = vunpack.c.l.s8.bf16 %v2513
    %v2626 = vunpack.c.l.s8.bf16 %v2514
    %v2627 = vunpack.c.l.s8.bf16 %v2515
    %v2628 = vunpack.c.l.s8.bf16 %v2516
    %v2629 = vunpack.c.l.s8.bf16 %v2517
    %v2630 = vunpack.c.l.s8.bf16 %v2518
    %v2631 = vunpack.c.l.s8.bf16 %v2519
    %v2632 = vunpack.c.h.s8.bf16 %v2513
    %v2633 = vunpack.c.h.s8.bf16 %v2514
    %v2634 = vunpack.c.h.s8.bf16 %v2515
    %v2635 = vunpack.c.h.s8.bf16 %v2516
    %v2636 = vunpack.c.h.s8.bf16 %v2517
    %v2637 = vunpack.c.h.s8.bf16 %v2518
    %v2638 = vunpack.c.h.s8.bf16 %v2519
    %v2639 = vunpack.c.l.s8.bf16 %v2520
    %v2640 = vunpack.c.l.s8.bf16 %v2521
    %v2641 = vunpack.c.l.s8.bf16 %v2522
    %v2642 = vunpack.c.l.s8.bf16 %v2523
    %v2643 = vunpack.c.l.s8.bf16 %v2524
    %v2644 = vunpack.c.l.s8.bf16 %v2525
    %v2645 = vunpack.c.l.s8.bf16 %v2526
    %v2646 = vunpack.c.h.s8.bf16 %v2520
    %v2647 = vunpack.c.h.s8.bf16 %v2521
    %v2648 = vunpack.c.h.s8.bf16 %v2522
    %v2649 = vunpack.c.h.s8.bf16 %v2523
    %v2650 = vunpack.c.h.s8.bf16 %v2524
    %v2651 = vunpack.c.h.s8.bf16 %v2525
    %v2652 = vunpack.c.h.s8.bf16 %v2526
    %v2653 = vunpack.c.l.s8.bf16 %v2527
    %v2654 = vunpack.c.l.s8.bf16 %v2528
    %v2655 = vunpack.c.l.s8.bf16 %v2529
    %v2656 = vunpack.c.l.s8.bf16 %v2530
    %v2657 = vunpack.c.l.s8.bf16 %v2531
    %v2658 = vunpack.c.l.s8.bf16 %v2532
    %v2659 = vunpack.c.l.s8.bf16 %v2533
    %v2660 = vunpack.c.h.s8.bf16 %v2527
    %v2661 = vunpack.c.h.s8.bf16 %v2528
    %v2662 = vunpack.c.h.s8.bf16 %v2529
    %v2663 = vunpack.c.h.s8.bf16 %v2530
    %v2664 = vunpack.c.h.s8.bf16 %v2531
    %v2665 = vunpack.c.h.s8.bf16 %v2532
    %v2666 = vunpack.c.h.s8.bf16 %v2533
    %v2667 = vunpack.c.l.s8.bf16 %v2534
    %v2668 = vunpack.c.l.s8.bf16 %v2535
    %v2669 = vunpack.c.l.s8.bf16 %v2536
    %v2670 = vunpack.c.l.s8.bf16 %v2537
    %v2671 = vunpack.c.l.s8.bf16 %v2538
    %v2672 = vunpack.c.l.s8.bf16 %v2539
    %v2673 = vunpack.c.l.s8.bf16 %v2540
    %v2674 = vunpack.c.h.s8.bf16 %v2534
    %v2675 = vunpack.c.h.s8.bf16 %v2535
    %v2676 = vunpack.c.h.s8.bf16 %v2536
    %v2677 = vunpack.c.h.s8.bf16 %v2537
    %v2678 = vunpack.c.h.s8.bf16 %v2538
    %v2679 = vunpack.c.h.s8.bf16 %v2539
    %v2680 = vunpack.c.h.s8.bf16 %v2540
    %v2681 = vunpack.c.l.s8.bf16 %v2541
    %v2682 = vunpack.c.l.s8.bf16 %v2542
    %v2683 = vunpack.c.l.s8.bf16 %v2543
    %v2684 = vunpack.c.l.s8.bf16 %v2544
    %v2685 = vunpack.c.l.s8.bf16 %v2545
    %v2686 = vunpack.c.l.s8.bf16 %v2546
    %v2687 = vunpack.c.l.s8.bf16 %v2547
    %v2688 = vunpack.c.h.s8.bf16 %v2541
    %v2689 = vunpack.c.h.s8.bf16 %v2542
    %v2690 = vunpack.c.h.s8.bf16 %v2543
    %v2691 = vunpack.c.h.s8.bf16 %v2544
    %v2692 = vunpack.c.h.s8.bf16 %v2545
    %v2693 = vunpack.c.h.s8.bf16 %v2546
    %v2694 = vunpack.c.h.s8.bf16 %v2547
    %v2695 = vunpack.c.l.s8.bf16 %v2548
    %v2696 = vunpack.c.l.s8.bf16 %v2549
    %v2697 = vunpack.c.l.s8.bf16 %v2550
    %v2698 = vunpack.c.l.s8.bf16 %v2551
    %v2699 = vunpack.c.l.s8.bf16 %v2552
    %v2700 = vunpack.c.l.s8.bf16 %v2553
    %v2701 = vunpack.c.l.s8.bf16 %v2554
    %v2702 = vunpack.c.h.s8.bf16 %v2548
    %v2703 = vunpack.c.h.s8.bf16 %v2549
    %v2704 = vunpack.c.h.s8.bf16 %v2550
    %v2705 = vunpack.c.h.s8.bf16 %v2551
    %v2706 = vunpack.c.h.s8.bf16 %v2552
    %v2707 = vunpack.c.h.s8.bf16 %v2553
    %v2708 = vunpack.c.h.s8.bf16 %v2554
    %v2709 = vunpack.c.l.s8.bf16 %v2555
    %v2710 = vunpack.c.l.s8.bf16 %v2556
    %v2711 = vunpack.c.l.s8.bf16 %v2557
    %v2712 = vunpack.c.l.s8.bf16 %v2558
    %v2713 = vunpack.c.l.s8.bf16 %v2559
    %v2714 = vunpack.c.l.s8.bf16 %v2560
    %v2715 = vunpack.c.l.s8.bf16 %v2561
    %v2716 = vunpack.c.h.s8.bf16 %v2555
    %v2717 = vunpack.c.h.s8.bf16 %v2556
    %v2718 = vunpack.c.h.s8.bf16 %v2557
    %v2719 = vunpack.c.h.s8.bf16 %v2558
    %v2720 = vunpack.c.h.s8.bf16 %v2559
    %v2721 = vunpack.c.h.s8.bf16 %v2560
    %v2722 = vunpack.c.h.s8.bf16 %v2561
    %v2723 = vunpack.c.l.s8.bf16 %v2562
    %v2724 = vunpack.c.l.s8.bf16 %v2563
    %v2725 = vunpack.c.l.s8.bf16 %v2564
    %v2726 = vunpack.c.l.s8.bf16 %v2565
    %v2727 = vunpack.c.l.s8.bf16 %v2566
    %v2728 = vunpack.c.l.s8.bf16 %v2567
    %v2729 = vunpack.c.l.s8.bf16 %v2568
    %v2730 = vunpack.c.h.s8.bf16 %v2562
    %v2731 = vunpack.c.h.s8.bf16 %v2563
    %v2732 = vunpack.c.h.s8.bf16 %v2564
    %v2733 = vunpack.c.h.s8.bf16 %v2565
    %v2734 = vunpack.c.h.s8.bf16 %v2566
    %v2735 = vunpack.c.h.s8.bf16 %v2567
    %v2736 = vunpack.c.h.s8.bf16 %v2568
    %v2737 = vunpack.c.l.s8.bf16 %v2569
    %v2738 = vunpack.c.l.s8.bf16 %v2570
    %v2739 = vunpack.c.l.s8.bf16 %v2571
    %v2740 = vunpack.c.l.s8.bf16 %v2572
    %v2741 = vunpack.c.l.s8.bf16 %v2573
    %v2742 = vunpack.c.l.s8.bf16 %v2574
    %v2743 = vunpack.c.l.s8.bf16 %v2575
    %v2744 = vunpack.c.h.s8.bf16 %v2569
    %v2745 = vunpack.c.h.s8.bf16 %v2570
    %v2746 = vunpack.c.h.s8.bf16 %v2571
    %v2747 = vunpack.c.h.s8.bf16 %v2572
    %v2748 = vunpack.c.h.s8.bf16 %v2573
    %v2749 = vunpack.c.h.s8.bf16 %v2574
    %v2750 = vunpack.c.h.s8.bf16 %v2575
    %v2751 = vunpack.c.l.s8.bf16 %v2576
    %v2752 = vunpack.c.l.s8.bf16 %v2577
    %v2753 = vunpack.c.l.s8.bf16 %v2578
    %v2754 = vunpack.c.l.s8.bf16 %v2579
    %v2755 = vunpack.c.l.s8.bf16 %v2580
    %v2756 = vunpack.c.l.s8.bf16 %v2581
    %v2757 = vunpack.c.l.s8.bf16 %v2582
    %v2758 = vunpack.c.h.s8.bf16 %v2576
    %v2759 = vunpack.c.h.s8.bf16 %v2577
    %v2760 = vunpack.c.h.s8.bf16 %v2578
    %v2761 = vunpack.c.h.s8.bf16 %v2579
    %v2762 = vunpack.c.h.s8.bf16 %v2580
    %v2763 = vunpack.c.h.s8.bf16 %v2581
    %v2764 = vunpack.c.h.s8.bf16 %v2582
    %v2765 = vunpack.c.l.s8.bf16 %v2583
    %v2766 = vunpack.c.l.s8.bf16 %v2584
    %v2767 = vunpack.c.l.s8.bf16 %v2585
    %v2768 = vunpack.c.l.s8.bf16 %v2586
    %v2769 = vunpack.c.l.s8.bf16 %v2587
    %v2770 = vunpack.c.l.s8.bf16 %v2588
    %v2771 = vunpack.c.l.s8.bf16 %v2589
    %v2772 = vunpack.c.h.s8.bf16 %v2583
    %v2773 = vunpack.c.h.s8.bf16 %v2584
    %v2774 = vunpack.c.h.s8.bf16 %v2585
    %v2775 = vunpack.c.h.s8.bf16 %v2586
    %v2776 = vunpack.c.h.s8.bf16 %v2587
    %v2777 = vunpack.c.h.s8.bf16 %v2588
    %v2778 = vunpack.c.h.s8.bf16 %v2589
    %v2779 = vunpack.c.l.s8.bf16 %v2590
    %v2780 = vunpack.c.l.s8.bf16 %v2591
    %v2781 = vunpack.c.l.s8.bf16 %v2592
    %v2782 = vunpack.c.l.s8.bf16 %v2593
    %v2783 = vunpack.c.l.s8.bf16 %v2594
    %v2784 = vunpack.c.l.s8.bf16 %v2595
    %v2785 = vunpack.c.l.s8.bf16 %v2596
    %v2786 = vunpack.c.h.s8.bf16 %v2590
    %v2787 = vunpack.c.h.s8.bf16 %v2591
    %v2788 = vunpack.c.h.s8.bf16 %v2592
    %v2789 = vunpack.c.h.s8.bf16 %v2593
    %v2790 = vunpack.c.h.s8.bf16 %v2594
    %v2791 = vunpack.c.h.s8.bf16 %v2595
    %v2792 = vunpack.c.h.s8.bf16 %v2596
    %v2793 = vunpack.c.l.s8.bf16 %v2597
    %v2794 = vunpack.c.l.s8.bf16 %v2598
    %v2795 = vunpack.c.l.s8.bf16 %v2599
    %v2796 = vunpack.c.l.s8.bf16 %v2600
    %v2797 = vunpack.c.l.s8.bf16 %v2601
    %v2798 = vunpack.c.l.s8.bf16 %v2602
    %v2799 = vunpack.c.l.s8.bf16 %v2603
    %v2800 = vunpack.c.h.s8.bf16 %v2597
    %v2801 = vunpack.c.h.s8.bf16 %v2598
    %v2802 = vunpack.c.h.s8.bf16 %v2599
    %v2803 = vunpack.c.h.s8.bf16 %v2600
    %v2804 = vunpack.c.h.s8.bf16 %v2601
    %v2805 = vunpack.c.h.s8.bf16 %v2602
    %v2806 = vunpack.c.h.s8.bf16 %v2603
    %v2807 = vunpack.c.l.s8.bf16 %v2604
    %v2808 = vunpack.c.l.s8.bf16 %v2605
    %v2809 = vunpack.c.l.s8.bf16 %v2606
    %v2810 = vunpack.c.l.s8.bf16 %v2607
    %v2811 = vunpack.c.l.s8.bf16 %v2608
    %v2812 = vunpack.c.l.s8.bf16 %v2609
    %v2813 = vunpack.c.l.s8.bf16 %v2610
    %v2814 = vunpack.c.h.s8.bf16 %v2604
    %v2815 = vunpack.c.h.s8.bf16 %v2605
    %v2816 = vunpack.c.h.s8.bf16 %v2606
    %v2817 = vunpack.c.h.s8.bf16 %v2607
    %v2818 = vunpack.c.h.s8.bf16 %v2608
    %v2819 = vunpack.c.h.s8.bf16 %v2609
    %v2820 = vunpack.c.h.s8.bf16 %v2610
    %v2821 = vunpack.c.l.s8.bf16 %v2611
    %v2822 = vunpack.c.l.s8.bf16 %v2612
    %v2823 = vunpack.c.l.s8.bf16 %v2613
    %v2824 = vunpack.c.l.s8.bf16 %v2614
    %v2825 = vunpack.c.l.s8.bf16 %v2615
    %v2826 = vunpack.c.l.s8.bf16 %v2616
    %v2827 = vunpack.c.l.s8.bf16 %v2617
    %v2828 = vunpack.c.h.s8.bf16 %v2611
    %v2829 = vunpack.c.h.s8.bf16 %v2612
    %v2830 = vunpack.c.h.s8.bf16 %v2613
    %v2831 = vunpack.c.h.s8.bf16 %v2614
    %v2832 = vunpack.c.h.s8.bf16 %v2615
    %v2833 = vunpack.c.h.s8.bf16 %v2616
    %v2834 = vunpack.c.h.s8.bf16 %v2617
    %v2835 = vunpack.c.l.s8.bf16 %v2618
    %v2836 = vunpack.c.l.s8.bf16 %v2619
    %v2837 = vunpack.c.l.s8.bf16 %v2620
    %v2838 = vunpack.c.l.s8.bf16 %v2621
    %v2839 = vunpack.c.l.s8.bf16 %v2622
    %v2840 = vunpack.c.l.s8.bf16 %v2623
    %v2841 = vunpack.c.l.s8.bf16 %v2624
    %v2842 = vunpack.c.h.s8.bf16 %v2618
    %v2843 = vunpack.c.h.s8.bf16 %v2619
    %v2844 = vunpack.c.h.s8.bf16 %v2620
    %v2845 = vunpack.c.h.s8.bf16 %v2621
    %v2846 = vunpack.c.h.s8.bf16 %v2622
    %v2847 = vunpack.c.h.s8.bf16 %v2623
    %v2848 = vunpack.c.h.s8.bf16 %v2624
    %2849 = vmatprep.subr.bf16.mxu0 %v2626
    %2850 = vmatpush1.bf16.msra.mxu0 %v2625
    %2851 = vmatprep.subr.bf16.mxu0 %v2633
    %2852 = vmatpush1.bf16.msra.mxu0 %v2632
    %2853 = vmatprep.subr.bf16.mxu0 %v2640
    %2854 = vmatpush1.bf16.msra.mxu0 %v2639
    %2855 = vmatprep.subr.bf16.mxu0 %v2647
    %2856 = vmatpush1.bf16.msra.mxu0 %v2646
    %2857 = vmatprep.subr.bf16.mxu0 %v2654
    %2858 = vmatpush1.bf16.msra.mxu0 %v2653
    %2859 = vmatprep.subr.bf16.mxu0 %v2661
    %2860 = vmatpush1.bf16.msra.mxu0 %v2660
    %2861 = vmatprep.subr.bf16.mxu0 %v2668
    %2862 = vmatpush1.bf16.msra.mxu0 %v2667
    %2863 = vmatprep.subr.bf16.mxu0 %v2675
    %2864 = vmatpush1.bf16.msra.mxu0 %v2674
    %2865 = vmatprep.subr.bf16.mxu0 %v2682
    %2866 = vmatpush1.bf16.msra.mxu0 %v2681
    %2867 = vmatprep.subr.bf16.mxu0 %v2689
    %2868 = vmatpush1.bf16.msra.mxu0 %v2688
    %2869 = vmatprep.subr.bf16.mxu0 %v2696
    %2870 = vmatpush1.bf16.msra.mxu0 %v2695
    %2871 = vmatprep.subr.bf16.mxu0 %v2703
    %2872 = vmatpush1.bf16.msra.mxu0 %v2702
    %2873 = vmatprep.subr.bf16.mxu0 %v2710
    %2874 = vmatpush1.bf16.msra.mxu0 %v2709
    %2875 = vmatprep.subr.bf16.mxu0 %v2717
    %2876 = vmatpush1.bf16.msra.mxu0 %v2716
    %2877 = vmatprep.subr.bf16.mxu0 %v2724
    %2878 = vmatpush1.bf16.msra.mxu0 %v2723
    %2879 = vmatprep.subr.bf16.mxu0 %v2731
    %2880 = vmatpush1.bf16.msra.mxu0 %v2730
    %2881 = vmatprep.mubr.bf16.mxu0 %v2510
    %2882 = vmatmul.mubr.bf16.gmra.mrb[0].mxu0 %v2509
    %v2883 = vpop.f32.mrb[0].mxu0
    %v2884 = vadd.f32 0.0, %v2883
    %v2885 = vpop.f32.mrb[0].mxu0
    %v2886 = vadd.f32 0.0, %v2885
    %v2887 = vpop.f32.mrb[0].mxu0
    %v2888 = vpop.f32.mrb[0].mxu0
    %2889 = vdwg.mxu0
    %2890 = vmatprep.subr.bf16.mxu0 %v2738
    %2891 = vmatpush1.bf16.msra.mxu0 %v2737
    %2892 = vmatprep.subr.bf16.mxu0 %v2745
    %2893 = vmatpush1.bf16.msra.mxu0 %v2744
    %2894 = vmatprep.subr.bf16.mxu0 %v2752
    %2895 = vmatpush1.bf16.msra.mxu0 %v2751
    %2896 = vmatprep.subr.bf16.mxu0 %v2759
    %2897 = vmatpush1.bf16.msra.mxu0 %v2758
    %2898 = vmatprep.subr.bf16.mxu0 %v2766
    %2899 = vmatpush1.bf16.msra.mxu0 %v2765
    %2900 = vmatprep.subr.bf16.mxu0 %v2773
    %2901 = vmatpush1.bf16.msra.mxu0 %v2772
    %2902 = vmatprep.subr.bf16.mxu0 %v2780
    %2903 = vmatpush1.bf16.msra.mxu0 %v2779
    %2904 = vmatprep.subr.bf16.mxu0 %v2787
    %2905 = vmatpush1.bf16.msra.mxu0 %v2786
    %2906 = vmatprep.subr.bf16.mxu0 %v2794
    %2907 = vmatpush1.bf16.msra.mxu0 %v2793
    %2908 = vmatprep.subr.bf16.mxu0 %v2801
    %2909 = vmatpush1.bf16.msra.mxu0 %v2800
    %2910 = vmatprep.subr.bf16.mxu0 %v2808
    %2911 = vmatpush1.bf16.msra.mxu0 %v2807
    %2912 = vmatprep.subr.bf16.mxu0 %v2815
    %2913 = vmatpush1.bf16.msra.mxu0 %v2814
    %2914 = vmatprep.subr.bf16.mxu0 %v2822
    %2915 = vmatpush1.bf16.msra.mxu0 %v2821
    %2916 = vmatprep.subr.bf16.mxu0 %v2829
    %2917 = vmatpush1.bf16.msra.mxu0 %v2828
    %2918 = vmatprep.subr.bf16.mxu0 %v2836
    %2919 = vmatpush1.bf16.msra.mxu0 %v2835
    %2920 = vmatprep.subr.bf16.mxu0 %v2843
    %2921 = vmatpush1.bf16.msra.mxu0 %v2842
    %2922 = vmatprep.mubr.bf16.mxu0 %v2512
    %2923 = vmatmul.mubr.bf16.gmra.mrb[0].mxu0 %v2511
    %v2924 = vpop.f32.mrb[0].mxu0
    %v2925 = vadd.f32 %v2884, %v2924
    %v2926 = vpop.f32.mrb[0].mxu0
    %v2927 = vadd.f32 %v2886, %v2926
    %v2928 = vpop.f32.mrb[0].mxu0
    %v2929 = vpop.f32.mrb[0].mxu0
    %2930 = vdwg.mxu0
    %2931 = vmatprep.subr.bf16.mxu0 %v2628
    %2932 = vmatpush1.bf16.msra.mxu0 %v2627
    %2933 = vmatprep.subr.bf16.mxu0 %v2635
    %2934 = vmatpush1.bf16.msra.mxu0 %v2634
    %2935 = vmatprep.subr.bf16.mxu0 %v2642
    %2936 = vmatpush1.bf16.msra.mxu0 %v2641
    %2937 = vmatprep.subr.bf16.mxu0 %v2649
    %2938 = vmatpush1.bf16.msra.mxu0 %v2648
    %2939 = vmatprep.subr.bf16.mxu0 %v2656
    %2940 = vmatpush1.bf16.msra.mxu0 %v2655
    %2941 = vmatprep.subr.bf16.mxu0 %v2663
    %2942 = vmatpush1.bf16.msra.mxu0 %v2662
    %2943 = vmatprep.subr.bf16.mxu0 %v2670
    %2944 = vmatpush1.bf16.msra.mxu0 %v2669
    %2945 = vmatprep.subr.bf16.mxu0 %v2677
    %2946 = vmatpush1.bf16.msra.mxu0 %v2676
    %2947 = vmatprep.subr.bf16.mxu0 %v2684
    %2948 = vmatpush1.bf16.msra.mxu0 %v2683
    %2949 = vmatprep.subr.bf16.mxu0 %v2691
    %2950 = vmatpush1.bf16.msra.mxu0 %v2690
    %2951 = vmatprep.subr.bf16.mxu0 %v2698
    %2952 = vmatpush1.bf16.msra.mxu0 %v2697
    %2953 = vmatprep.subr.bf16.mxu0 %v2705
    %2954 = vmatpush1.bf16.msra.mxu0 %v2704
    %2955 = vmatprep.subr.bf16.mxu0 %v2712
    %2956 = vmatpush1.bf16.msra.mxu0 %v2711
    %2957 = vmatprep.subr.bf16.mxu0 %v2719
    %2958 = vmatpush1.bf16.msra.mxu0 %v2718
    %2959 = vmatprep.subr.bf16.mxu0 %v2726
    %2960 = vmatpush1.bf16.msra.mxu0 %v2725
    %2961 = vmatprep.subr.bf16.mxu0 %v2733
    %2962 = vmatpush1.bf16.msra.mxu0 %v2732
    %2963 = vmatprep.mubr.bf16.mxu0 %v2510
    %2964 = vmatmul.mubr.bf16.gmra.mrb[0].mxu0 %v2509
    %v2965 = vpop.f32.mrb[0].mxu0
    %v2966 = vadd.f32 0.0, %v2965
    %v2967 = vpop.f32.mrb[0].mxu0
    %v2968 = vadd.f32 0.0, %v2967
    %v2969 = vpop.f32.mrb[0].mxu0
    %v2970 = vpop.f32.mrb[0].mxu0
    %2971 = vdwg.mxu0
    %2972 = vmatprep.subr.bf16.mxu0 %v2740
    %2973 = vmatpush1.bf16.msra.mxu0 %v2739
    %2974 = vmatprep.subr.bf16.mxu0 %v2747
    %2975 = vmatpush1.bf16.msra.mxu0 %v2746
    %2976 = vmatprep.subr.bf16.mxu0 %v2754
    %2977 = vmatpush1.bf16.msra.mxu0 %v2753
    %2978 = vmatprep.subr.bf16.mxu0 %v2761
    %2979 = vmatpush1.bf16.msra.mxu0 %v2760
    %2980 = vmatprep.subr.bf16.mxu0 %v2768
    %2981 = vmatpush1.bf16.msra.mxu0 %v2767
    %2982 = vmatprep.subr.bf16.mxu0 %v2775
    %2983 = vmatpush1.bf16.msra.mxu0 %v2774
    %2984 = vmatprep.subr.bf16.mxu0 %v2782
    %2985 = vmatpush1.bf16.msra.mxu0 %v2781
    %2986 = vmatprep.subr.bf16.mxu0 %v2789
    %2987 = vmatpush1.bf16.msra.mxu0 %v2788
    %2988 = vmatprep.subr.bf16.mxu0 %v2796
    %2989 = vmatpush1.bf16.msra.mxu0 %v2795
    %2990 = vmatprep.subr.bf16.mxu0 %v2803
    %2991 = vmatpush1.bf16.msra.mxu0 %v2802
    %2992 = vmatprep.subr.bf16.mxu0 %v2810
    %2993 = vmatpush1.bf16.msra.mxu0 %v2809
    %2994 = vmatprep.subr.bf16.mxu0 %v2817
    %2995 = vmatpush1.bf16.msra.mxu0 %v2816
    %2996 = vmatprep.subr.bf16.mxu0 %v2824
    %2997 = vmatpush1.bf16.msra.mxu0 %v2823
    %2998 = vmatprep.subr.bf16.mxu0 %v2831
    %2999 = vmatpush1.bf16.msra.mxu0 %v2830
    %3000 = vmatprep.subr.bf16.mxu0 %v2838
    %3001 = vmatpush1.bf16.msra.mxu0 %v2837
    %3002 = vmatprep.subr.bf16.mxu0 %v2845
    %3003 = vmatpush1.bf16.msra.mxu0 %v2844
    %3004 = vmatprep.mubr.bf16.mxu0 %v2512
    %3005 = vmatmul.mubr.bf16.gmra.mrb[0].mxu0 %v2511
    %v3006 = vpop.f32.mrb[0].mxu0
    %v3007 = vadd.f32 %v2966, %v3006
    %v3008 = vpop.f32.mrb[0].mxu0
    %v3009 = vadd.f32 %v2968, %v3008
    %v3010 = vpop.f32.mrb[0].mxu0
    %v3011 = vpop.f32.mrb[0].mxu0
    %3012 = vdwg.mxu0
    %3013 = vmatprep.subr.bf16.mxu0 %v2630
    %3014 = vmatpush1.bf16.msra.mxu0 %v2629
    %3015 = vmatprep.subr.bf16.mxu0 %v2637
    %3016 = vmatpush1.bf16.msra.mxu0 %v2636
    %3017 = vmatprep.subr.bf16.mxu0 %v2644
    %3018 = vmatpush1.bf16.msra.mxu0 %v2643
    %3019 = vmatprep.subr.bf16.mxu0 %v2651
    %3020 = vmatpush1.bf16.msra.mxu0 %v2650
    %3021 = vmatprep.subr.bf16.mxu0 %v2658
    %3022 = vmatpush1.bf16.msra.mxu0 %v2657
    %3023 = vmatprep.subr.bf16.mxu0 %v2665
    %3024 = vmatpush1.bf16.msra.mxu0 %v2664
    %3025 = vmatprep.subr.bf16.mxu0 %v2672
    %3026 = vmatpush1.bf16.msra.mxu0 %v2671
    %3027 = vmatprep.subr.bf16.mxu0 %v2679
    %3028 = vmatpush1.bf16.msra.mxu0 %v2678
    %3029 = vmatprep.subr.bf16.mxu0 %v2686
    %3030 = vmatpush1.bf16.msra.mxu0 %v2685
    %3031 = vmatprep.subr.bf16.mxu0 %v2693
    %3032 = vmatpush1.bf16.msra.mxu0 %v2692
    %3033 = vmatprep.subr.bf16.mxu0 %v2700
    %3034 = vmatpush1.bf16.msra.mxu0 %v2699
    %3035 = vmatprep.subr.bf16.mxu0 %v2707
    %3036 = vmatpush1.bf16.msra.mxu0 %v2706
    %3037 = vmatprep.subr.bf16.mxu0 %v2714
    %3038 = vmatpush1.bf16.msra.mxu0 %v2713
    %3039 = vmatprep.subr.bf16.mxu0 %v2721
    %3040 = vmatpush1.bf16.msra.mxu0 %v2720
    %3041 = vmatprep.subr.bf16.mxu0 %v2728
    %3042 = vmatpush1.bf16.msra.mxu0 %v2727
    %3043 = vmatprep.subr.bf16.mxu0 %v2735
    %3044 = vmatpush1.bf16.msra.mxu0 %v2734
    %3045 = vmatprep.mubr.bf16.mxu0 %v2510
    %3046 = vmatmul.mubr.bf16.gmra.mrb[0].mxu0 %v2509
    %v3047 = vpop.f32.mrb[0].mxu0
    %v3048 = vadd.f32 0.0, %v3047
    %v3049 = vpop.f32.mrb[0].mxu0
    %v3050 = vadd.f32 0.0, %v3049
    %v3051 = vpop.f32.mrb[0].mxu0
    %v3052 = vpop.f32.mrb[0].mxu0
    %3053 = vdwg.mxu0
    %3054 = vmatprep.subr.bf16.mxu0 %v2742
    %3055 = vmatpush1.bf16.msra.mxu0 %v2741
    %3056 = vmatprep.subr.bf16.mxu0 %v2749
    %3057 = vmatpush1.bf16.msra.mxu0 %v2748
    %3058 = vmatprep.subr.bf16.mxu0 %v2756
    %3059 = vmatpush1.bf16.msra.mxu0 %v2755
    %3060 = vmatprep.subr.bf16.mxu0 %v2763
    %3061 = vmatpush1.bf16.msra.mxu0 %v2762
    %3062 = vmatprep.subr.bf16.mxu0 %v2770
    %3063 = vmatpush1.bf16.msra.mxu0 %v2769
    %3064 = vmatprep.subr.bf16.mxu0 %v2777
    %3065 = vmatpush1.bf16.msra.mxu0 %v2776
    %3066 = vmatprep.subr.bf16.mxu0 %v2784
    %3067 = vmatpush1.bf16.msra.mxu0 %v2783
    %3068 = vmatprep.subr.bf16.mxu0 %v2791
    %3069 = vmatpush1.bf16.msra.mxu0 %v2790
    %3070 = vmatprep.subr.bf16.mxu0 %v2798
    %3071 = vmatpush1.bf16.msra.mxu0 %v2797
    %3072 = vmatprep.subr.bf16.mxu0 %v2805
    %3073 = vmatpush1.bf16.msra.mxu0 %v2804
    %3074 = vmatprep.subr.bf16.mxu0 %v2812
    %3075 = vmatpush1.bf16.msra.mxu0 %v2811
    %3076 = vmatprep.subr.bf16.mxu0 %v2819
    %3077 = vmatpush1.bf16.msra.mxu0 %v2818
    %3078 = vmatprep.subr.bf16.mxu0 %v2826
    %3079 = vmatpush1.bf16.msra.mxu0 %v2825
    %3080 = vmatprep.subr.bf16.mxu0 %v2833
    %3081 = vmatpush1.bf16.msra.mxu0 %v2832
    %3082 = vmatprep.subr.bf16.mxu0 %v2840
    %3083 = vmatpush1.bf16.msra.mxu0 %v2839
    %3084 = vmatprep.subr.bf16.mxu0 %v2847
    %3085 = vmatpush1.bf16.msra.mxu0 %v2846
    %3086 = vmatprep.mubr.bf16.mxu0 %v2512
    %3087 = vmatmul.mubr.bf16.gmra.mrb[0].mxu0 %v2511
    %v3088 = vpop.f32.mrb[0].mxu0
    %v3089 = vadd.f32 %v3048, %v3088
    %v3090 = vpop.f32.mrb[0].mxu0
    %v3091 = vadd.f32 %v3050, %v3090
    %v3092 = vpop.f32.mrb[0].mxu0
    %v3093 = vpop.f32.mrb[0].mxu0
    %3094 = vdwg.mxu0
    %3095 = vmatprep.subr.bf16.mxu0 0
    %3096 = vmatpush1.bf16.msra.mxu0 %v2631
    %3097 = vmatprep.subr.bf16.mxu0 0
    %3098 = vmatpush1.bf16.msra.mxu0 %v2638
    %3099 = vmatprep.subr.bf16.mxu0 0
    %3100 = vmatpush1.bf16.msra.mxu0 %v2645
    %3101 = vmatprep.subr.bf16.mxu0 0
    %3102 = vmatpush1.bf16.msra.mxu0 %v2652
    %3103 = vmatprep.subr.bf16.mxu0 0
    %3104 = vmatpush1.bf16.msra.mxu0 %v2659
    %3105 = vmatprep.subr.bf16.mxu0 0
    %3106 = vmatpush1.bf16.msra.mxu0 %v2666
    %3107 = vmatprep.subr.bf16.mxu0 0
    %3108 = vmatpush1.bf16.msra.mxu0 %v2673
    %3109 = vmatprep.subr.bf16.mxu0 0
    %3110 = vmatpush1.bf16.msra.mxu0 %v2680
    %3111 = vmatprep.subr.bf16.mxu0 0
    %3112 = vmatpush1.bf16.msra.mxu0 %v2687
    %3113 = vmatprep.subr.bf16.mxu0 0
    %3114 = vmatpush1.bf16.msra.mxu0 %v2694
    %3115 = vmatprep.subr.bf16.mxu0 0
    %3116 = vmatpush1.bf16.msra.mxu0 %v2701
    %3117 = vmatprep.subr.bf16.mxu0 0
    %3118 = vmatpush1.bf16.msra.mxu0 %v2708
    %3119 = vmatprep.subr.bf16.mxu0 0
    %3120 = vmatpush1.bf16.msra.mxu0 %v2715
    %3121 = vmatprep.subr.bf16.mxu0 0
    %3122 = vmatpush1.bf16.msra.mxu0 %v2722
    %3123 = vmatprep.subr.bf16.mxu0 0
    %3124 = vmatpush1.bf16.msra.mxu0 %v2729
    %3125 = vmatprep.subr.bf16.mxu0 0
    %3126 = vmatpush1.bf16.msra.mxu0 %v2736
    %3127 = vmatprep.mubr.bf16.mxu0 %v2510
    %3128 = vmatmul.mubr.bf16.gmra.mrb[0].mxu0 %v2509
    %v3129 = vpop.f32.mrb[0].mxu0
    %v3130 = vadd.f32 0.0, %v3129
    %v3131 = vpop.f32.mrb[0].mxu0
    %v3132 = vpop.f32.mrb[0].mxu0
    %v3133 = vpop.f32.mrb[0].mxu0
    %3134 = vdwg.mxu0
    %3135 = vmatprep.subr.bf16.mxu0 0
    %3136 = vmatpush1.bf16.msra.mxu0 %v2743
    %3137 = vmatprep.subr.bf16.mxu0 0
    %3138 = vmatpush1.bf16.msra.mxu0 %v2750
    %3139 = vmatprep.subr.bf16.mxu0 0
    %3140 = vmatpush1.bf16.msra.mxu0 %v2757
    %3141 = vmatprep.subr.bf16.mxu0 0
    %3142 = vmatpush1.bf16.msra.mxu0 %v2764
    %3143 = vmatprep.subr.bf16.mxu0 0
    %3144 = vmatpush1.bf16.msra.mxu0 %v2771
    %3145 = vmatprep.subr.bf16.mxu0 0
    %3146 = vmatpush1.bf16.msra.mxu0 %v2778
    %3147 = vmatprep.subr.bf16.mxu0 0
    %3148 = vmatpush1.bf16.msra.mxu0 %v2785
    %3149 = vmatprep.subr.bf16.mxu0 0
    %3150 = vmatpush1.bf16.msra.mxu0 %v2792
    %3151 = vmatprep.subr.bf16.mxu0 0
    %3152 = vmatpush1.bf16.msra.mxu0 %v2799
    %3153 = vmatprep.subr.bf16.mxu0 0
    %3154 = vmatpush1.bf16.msra.mxu0 %v2806
    %3155 = vmatprep.subr.bf16.mxu0 0
    %3156 = vmatpush1.bf16.msra.mxu0 %v2813
    %3157 = vmatprep.subr.bf16.mxu0 0
    %3158 = vmatpush1.bf16.msra.mxu0 %v2820
    %3159 = vmatprep.subr.bf16.mxu0 0
    %3160 = vmatpush1.bf16.msra.mxu0 %v2827
    %3161 = vmatprep.subr.bf16.mxu0 0
    %3162 = vmatpush1.bf16.msra.mxu0 %v2834
    %3163 = vmatprep.subr.bf16.mxu0 0
    %3164 = vmatpush1.bf16.msra.mxu0 %v2841
    %3165 = vmatprep.subr.bf16.mxu0 0
    %3166 = vmatpush1.bf16.msra.mxu0 %v2848
    %3167 = vmatprep.mubr.bf16.mxu0 %v2512
    %3168 = vmatmul.mubr.bf16.gmra.mrb[0].mxu0 %v2511
    %v3169 = vpop.f32.mrb[0].mxu0
    %v3170 = vadd.f32 %v3130, %v3169
    %v3171 = vpop.f32.mrb[0].mxu0
    %v3172 = vpop.f32.mrb[0].mxu0
    %v3173 = vpop.f32.mrb[0].mxu0
    %3174 = vdwg.mxu0
    %v3175 = vld [vmem:[%s17] sm:$0xff]
    %v3177 = vlaneseq
    %v3178 = vshrl.u32 %v3177, 7
    %v3179 = vsub.s32 0, %v3178
    %v3180 = vrot.slane %v3175, %v3179
    %v3181 = vlaneseq
    %v3182 = vshrl.u32 %v3181, 7
    %v3183 = vsub.s32 1, %v3182
    %v3184 = vrot.slane %v3175, %v3183
    %v3185 = vlaneseq
    %v3186 = vshrl.u32 %v3185, 7
    %v3187 = vsub.s32 2, %v3186
    %v3188 = vrot.slane %v3175, %v3187
    %v3189 = vlaneseq
    %v3190 = vshrl.u32 %v3189, 7
    %v3191 = vsub.s32 3, %v3190
    %v3192 = vrot.slane %v3175, %v3191
    %v3193 = vlaneseq
    %v3194 = vshrl.u32 %v3193, 7
    %v3195 = vsub.s32 4, %v3194
    %v3196 = vrot.slane %v3175, %v3195
    %v3197 = vlaneseq
    %v3198 = vshrl.u32 %v3197, 7
    %v3199 = vsub.s32 5, %v3198
    %v3200 = vrot.slane %v3175, %v3199
    %v3201 = vlaneseq
    %v3202 = vshrl.u32 %v3201, 7
    %v3203 = vsub.s32 6, %v3202
    %v3204 = vrot.slane %v3175, %v3203
    %v3212 = vmul.f32 %v2925, %v3180
    %v3213 = vmul.f32 %v2927, %v3184
    %v3214 = vmul.f32 %v3007, %v3188
    %v3215 = vmul.f32 %v3009, %v3192
    %v3216 = vmul.f32 %v3089, %v3196
    %v3217 = vmul.f32 %v3091, %v3200
    %v3218 = vmul.f32 %v3170, %v3204
    %v3219 = vld [vmem:[%s18] sm:$0xff]
    %v3221 = vlaneseq
    %v3222 = vshrl.u32 %v3221, 7
    %v3223 = vsub.s32 0, %v3222
    %v3224 = vrot.slane %v3219, %v3223
    %v3225 = vlaneseq
    %v3226 = vshrl.u32 %v3225, 7
    %v3227 = vsub.s32 1, %v3226
    %v3228 = vrot.slane %v3219, %v3227
    %v3229 = vlaneseq
    %v3230 = vshrl.u32 %v3229, 7
    %v3231 = vsub.s32 2, %v3230
    %v3232 = vrot.slane %v3219, %v3231
    %v3233 = vlaneseq
    %v3234 = vshrl.u32 %v3233, 7
    %v3235 = vsub.s32 3, %v3234
    %v3236 = vrot.slane %v3219, %v3235
    %v3237 = vlaneseq
    %v3238 = vshrl.u32 %v3237, 7
    %v3239 = vsub.s32 4, %v3238
    %v3240 = vrot.slane %v3219, %v3239
    %v3241 = vlaneseq
    %v3242 = vshrl.u32 %v3241, 7
    %v3243 = vsub.s32 5, %v3242
    %v3244 = vrot.slane %v3219, %v3243
    %v3245 = vlaneseq
    %v3246 = vshrl.u32 %v3245, 7
    %v3247 = vsub.s32 6, %v3246
    %v3248 = vrot.slane %v3219, %v3247
    %v3256 = vadd.f32 %v3212, %v3224
    %v3257 = vadd.f32 %v3213, %v3228
    %v3258 = vadd.f32 %v3214, %v3232
    %v3259 = vadd.f32 %v3215, %v3236
    %v3260 = vadd.f32 %v3216, %v3240
    %v3261 = vadd.f32 %v3217, %v3244
    %v3262 = vadd.f32 %v3218, %v3248
    %v3263 = vpack.c.bf16 %v3256, %v3256
    %v3264 = vpack.c.bf16 %v3257, %v3257
    %v3265 = vpack.c.bf16 %v3258, %v3258
    %v3266 = vpack.c.bf16 %v3259, %v3259
    %v3267 = vpack.c.bf16 %v3260, %v3260
    %v3268 = vpack.c.bf16 %v3261, %v3261
    %v3269 = vpack.c.bf16 %v3262, %v3262
    %v3277 = vunpack.c.l.b16 %v3263
    %v3278 = vunpack.c.l.b16 %v3264
    %v3279 = vunpack.c.l.b16 %v3265
    %v3280 = vunpack.c.l.b16 %v3266
    %v3281 = vunpack.c.l.b16 %v3267
    %v3282 = vunpack.c.l.b16 %v3268
    %v3283 = vunpack.c.l.b16 %v3269
    %v3284 = vpack.c.b16 %v3278, %v3277
    %v3285 = vpack.c.b16 %v3280, %v3279
    %v3286 = vpack.c.b16 %v3282, %v3281
    %v3287 = vpack.c.b16 %v3283, %v3283
    %3292 = vst [vmem:[#allocation21] sm:$0xff] %v3284
    %3293 = vst [vmem:[#allocation21 + $0x8] sm:$0xff] %v3285
    %3294 = vst [vmem:[#allocation21 + $0x10] sm:$0xff] %v3286
    %3295 = vst [vmem:[#allocation21 + $0x18] sm:$0xf] %v3287
    // Predicated region
    $region122: #{tpu_custom_call.1} parent=1 // pred_check
      _
    $region123: #{tpu_custom_call.1} parent=1 // pred_check_branch
      %3297 = sbr.rel (0) target = $region125
    $region124: #{tpu_custom_call.1} parent=1 // pred_region
      %s3299 = ssub.s32 64, 64
      %3300 = vsyncadd [#allocation4], %s3299
      %s3302 = sshll.u32 [#allocation20], 4
      %s3303 = int_to_ptr.vmem [resolvable:$true] %s3302
      %3305 = dma.vmem_to_hbm [thread:$0]  %s3303, 64, %s19, [#allocation4]
    $region125: #{tpu_custom_call.1} parent=1 // pred_fallthru
      _
    // Predicated region
    $region126: #{tpu_custom_call.1} parent=1 // pred_check
      _
    $region127: #{tpu_custom_call.1} parent=1 // pred_check_branch
      %3307 = sbr.rel (0) target = $region129
    $region128: #{tpu_custom_call.1} parent=1 // pred_region
      %s3309 = ssub.s32 448, 448
      %3310 = vsyncadd [#allocation22], %s3309
      %s3312 = sshll.u32 [#allocation21], 4
      %s3313 = int_to_ptr.vmem [resolvable:$true] %s3312
      %3315 = dma.vmem_to_hbm [thread:$0]  %s3313, 448, %s20, [#allocation22]
    $region129: #{tpu_custom_call.1} parent=1 // pred_fallthru
      _
    // Predicated region
    $region130: #{tpu_custom_call.1} parent=1 // pred_check
      _
    $region131: #{tpu_custom_call.1} parent=1 // pred_check_branch
      %3317 = sbr.rel (0) target = $region133
    $region132: #{tpu_custom_call.1} parent=1 // pred_region
      %3318 = dma.done [#allocation4], 64
    $region133: #{tpu_custom_call.1} parent=1 // pred_fallthru
      _
    // Predicated region
    $region134: #{tpu_custom_call.1} parent=1 // pred_check
      _
    $region135: #{tpu_custom_call.1} parent=1 // pred_check_branch
      %3320 = sbr.rel (0) target = $region137
    $region136: #{tpu_custom_call.1} parent=1 // pred_region
      %3321 = dma.done [#allocation22], 448
    $region137: #{tpu_custom_call.1} parent=1 // pred_fallthru
      _
    %3322 = vsyncpa [#allocation3], 1
    %3323 = vsyncpa [#allocation6], 1
    %3324 = vsyncpa [#allocation9], 1
    %3325 = vsyncpa [#allocation12], 1
    %3326 = vsyncpa [#allocation15], 1
    %3327 = vsyncpa [#allocation18], 1
    %3328 = vsyncpa [#allocation4], 1
    %3329 = vsyncpa [#allocation22], 1

</llo_original>
